<compile_context>
chip_gen: v6e
topology: v6e:2x2x1
jax: 0.10.0
libtpu: 0.0.40
codegen_flags: <defaults>
</compile_context>

<pallas_src>
import functools

import jax
import jax.numpy as jnp
from jax.experimental import pallas as pl
from jax.experimental.pallas import tpu as pltpu

Q_LEN = 36  # the module always queries with the first 36 tokens


def _cross_attn_kernel(x_ref, wq_ref, wk_ref, wv_ref, wp_ref, bp_ref, o_ref,
                       *, num_heads, scale, q_pad, n_valid):
    """Cross-attention for a block of `Bt` batch elements.

    x_ref : (Bt, Np, C)     VMEM, compute dtype (bf16); Np >= n_valid (zero padded)
    wq/wk/wv_ref : (C, C)   VMEM, compute dtype, pre-transposed (in, out)
    wp_ref: (H, hd, C)      VMEM, compute dtype, proj weight pre-split per head
    bp_ref: (1, C)          VMEM, f32 proj bias
    o_ref : (Bt, q_pad, C)  VMEM (q_pad >= 36; extra rows sliced off outside)
    """
    Bt, Np, C = x_ref.shape
    H = num_heads
    hd = C // H
    f32 = jnp.float32
    cdt = wq_ref.dtype                                 # compute dtype (bf16)

    x = x_ref[...]                                     # (Bt, Np, C)
    x_kv = x.reshape(Bt * Np, C)                       # fold batch into matmul M
    x_q = x[:, :q_pad, :].reshape(Bt * q_pad, C)       # padded query rows

    # QKV projections as three batch-folded MXU matmuls, f32 accumulation.
    # Softmax scale is folded into q here (touches Bt*q_pad*C elements instead
    # of H*Bt*q_pad*Np score elements).  Results are rounded to the compute
    # dtype so the attention matmuls below run as native-bf16 MXU ops and the
    # head-major relayout copies move half the bytes of f32.
    q2 = (jnp.dot(x_q, wq_ref[...], preferred_element_type=f32) * scale).astype(cdt)
    k2 = jnp.dot(x_kv, wk_ref[...], preferred_element_type=f32).astype(cdt)
    v2 = jnp.dot(x_kv, wv_ref[...], preferred_element_type=f32).astype(cdt)

    q3 = q2.reshape(Bt, q_pad, C)
    k3 = k2.reshape(Bt, Np, C)
    v3 = v2.reshape(Bt, Np, C)

    # Heads to a leading batch dim (g = h*Bt + b), built from static lane
    # slices + a major-axis concatenate (no lane-splitting reshape / 4-D
    # transpose), so it lowers cleanly.
    def heads_major(t3):
        return jnp.concatenate(
            [t3[:, :, h * hd:(h + 1) * hd] for h in range(H)], axis=0)

    qh = heads_major(q3)          # (G, q_pad, hd), G = H*Bt
    kh = heads_major(k3)          # (G, Np, hd)
    vh = heads_major(v3)          # (G, Np, hd)

    # One batched score matmul over all (head, batch) pairs; contraction on
    # the last dim, so no explicit k transpose is materialized.
    s = jnp.einsum('gqd,gkd->gqk', qh, kh, preferred_element_type=f32)

    # Mask padded key columns (zero-padded rows of x) before softmax.
    if n_valid < Np:
        key_idx = jax.lax.broadcasted_iota(jnp.int32, (q_pad, Np), 1)
        s = jnp.where((key_idx < n_valid)[None, :, :], s, f32(-1e30))

    s = s - jnp.max(s, axis=-1, keepdims=True)
    p = jnp.exp(s)
    # NOTE: approx reciprocal (EUP slot) => rows sum to 1 only to ~1e-3
    # relative; intentional deviation from the exact PyTorch softmax.
    p = p * pl.reciprocal(jnp.sum(p, axis=-1, keepdims=True), approx=True)
    p = p.astype(cdt)             # bf16 probabilities for the P@V MXU matmul

    oh = jnp.einsum('gqk,gkd->gqd', p, vh, preferred_element_type=f32)  # (G, q_pad, hd)

    # Output projection with the head merge folded in: instead of a lane-dim
    # concat into (Bt*q_pad, C) followed by one K=C matmul, accumulate
    # o = bias + sum_h oh_h @ Wp^T[h*hd:(h+1)*hd, :].  This deletes the
    # lane-concat relayout and the `attn` intermediate; accumulation stays f32.
    o = None
    for h in range(H):
        oh_h = oh[h * Bt:(h + 1) * Bt].reshape(Bt * q_pad, hd).astype(cdt)
        contrib = jnp.dot(oh_h, wp_ref[h], preferred_element_type=f32)
        o = contrib if o is None else o + contrib
    o = o + bp_ref[...]                                # (1, C) bias broadcast
    o_ref[...] = o.reshape(Bt, q_pad, C).astype(o_ref.dtype)


def _chip_caps():
    """Best-effort (physical VMEM bytes, TensorCores per device)."""
    kind = ""
    try:
        kind = jax.devices()[0].device_kind.lower()
    except Exception:
        pass
    num_cores = 2 if ("v4" in kind or "v7" in kind or "7x" in kind) else 1
    vmem = None
    try:
        vmem = int(getattr(pltpu.get_tpu_info(), "vmem_capacity_bytes", 0)) or None
    except Exception:
        vmem = None
    if vmem is None:
        # Conservative fallbacks: 64 MiB/core on 2-TC chips (v7x), 128 MiB else.
        vmem = (64 if num_cores == 2 else 128) * 1024 * 1024
    return vmem, num_cores


def _vmem_estimate(bt, n_pad, q_pad, C, H, cdt_bytes, out_bytes):
    """Conservative per-grid-step VMEM footprint: pipeline buffers (x/out
    double-buffered, 4 weights + bias double-buffered since they use standard
    BlockSpecs) plus live in-kernel intermediates."""
    g = H * bt
    hd = C // H
    x_blk = 2 * bt * n_pad * C * cdt_bytes
    out_blk = 2 * bt * q_pad * C * out_bytes
    weights = 2 * (4 * C * C * cdt_bytes + C * 4)
    proj_f32 = bt * (q_pad + 2 * n_pad) * C * 4                 # q2/k2/v2 f32 accum
    head_major = 2 * bt * (q_pad + 2 * n_pad) * C * cdt_bytes   # bf16 proj + head-major copies
    scores = g * q_pad * n_pad * (2 * 4 + cdt_bytes)            # s, p (f32) + p (bf16)
    head_out = g * q_pad * hd * 4                               # oh f32
    out_acc = bt * q_pad * C * 4                                # f32 output accumulator
    return (x_blk + out_blk + weights + proj_f32 + head_major + scores
            + head_out + out_acc)


def _pick_block_b(B, n_pad, q_pad, C, H, cdt_bytes, out_bytes, vmem_budget,
                  num_cores):
    """Largest batch fold that fits the per-step VMEM budget.  On multi-TC
    chips (v7x) keep >= num_cores grid steps so the 'parallel' axis can be
    sharded across TensorCores; on single-TC chips (v5e/v6e) allow
    block_b == B.  Larger block_b also raises matmul M toward 256-row MXU fill."""
    best = 1
    for cand in range(1, min(B, 128) + 1):
        if B % cand:
            continue
        if num_cores > 1 and B > 1 and (B // cand) < num_cores:
            continue
        if _vmem_estimate(cand, n_pad, q_pad, C, H, cdt_bytes, out_bytes) > vmem_budget:
            continue
        best = cand
    return best


def cross_attention_cropy(x, wq_t, wk_t, wv_t, wp_t, bp, *, num_heads,
                          block_b=None, compute_dtype=jnp.bfloat16,
                          out_dtype=None):
    """x: (B, N, C); wq_t/wk_t/wv_t/wp_t: (C, C) already transposed (in, out);
    bp: (C,).  Returns (B, 36, C).  Set compute_dtype=jnp.float32 for a
    full-precision fallback; out_dtype controls the writeback dtype."""
    B, N, C = x.shape
    assert N >= Q_LEN, "module slices x[:, 0:36]"
    assert C % num_heads == 0
    hd = C // num_heads
    scale = hd ** (-0.5)
    out_dtype = x.dtype if out_dtype is None else out_dtype

    cdt_bytes = jnp.dtype(compute_dtype).itemsize
    out_bytes = jnp.dtype(out_dtype).itemsize
    sub = 8 * (4 // cdt_bytes)          # packed sublane multiple: 8 (f32) / 16 (bf16)

    # Pad the sequence to a packed-tile multiple (real ViT N = 197/401 is not
    # aligned); padded key columns are masked inside the kernel.
    n_pad = ((N + sub - 1) // sub) * sub
    # Pad the 36 query rows to the same multiple so every leading-dim reshape
    # in the kernel stays packed-tile aligned; extra rows are dropped outside.
    q_pad = min(n_pad, ((Q_LEN + sub - 1) // sub) * sub)

    vmem_phys, num_cores = _chip_caps()
    vmem_budget = int(vmem_phys * 0.40)        # headroom for compiler scratch/spills

    if block_b is None:
        block_b = _pick_block_b(B, n_pad, q_pad, C, num_heads, cdt_bytes,
                                out_bytes, vmem_budget, num_cores)
    assert B % block_b == 0

    est = _vmem_estimate(block_b, n_pad, q_pad, C, num_heads, cdt_bytes, out_bytes)
    vmem_limit = int(min(0.75 * vmem_phys, max(48 * 1024 * 1024, 3 * est)))

    # bf16 inputs (MXU-native on v6e/v7x, halves DMA bytes); accumulation stays f32.
    xb = x.astype(compute_dtype)
    if n_pad != N:
        xb = jnp.pad(xb, ((0, 0), (0, n_pad - N), (0, 0)))
    wqb = wq_t.astype(compute_dtype)
    wkb = wk_t.astype(compute_dtype)
    wvb = wv_t.astype(compute_dtype)
    wpb = wp_t.astype(compute_dtype).reshape(num_heads, hd, C)  # per-head row blocks
    bp2 = bp.reshape(1, C).astype(jnp.float32)

    kernel = functools.partial(_cross_attn_kernel, num_heads=num_heads,
                               scale=scale, q_pad=q_pad, n_valid=N)

    grid = (B // block_b,)
    # TODO(synk): for B // block_b < 2 on v7x, add a second "parallel" grid axis
    # over head groups (weights pre-split per group) so both TensorCores get work.
    out_padded = pl.pallas_call(
        kernel,
        out_shape=jax.ShapeDtypeStruct((B, q_pad, C), out_dtype),
        grid_spec=pltpu.PrefetchScalarGridSpec(
            num_scalar_prefetch=0,
            grid=grid,
            in_specs=[
                pl.BlockSpec((block_b, n_pad, C), lambda b: (b, 0, 0)),     # x block
                pl.BlockSpec((C, C), lambda b: (0, 0)),                     # wq^T (resident)
                pl.BlockSpec((C, C), lambda b: (0, 0)),                     # wk^T
                pl.BlockSpec((C, C), lambda b: (0, 0)),                     # wv^T
                pl.BlockSpec((num_heads, hd, C), lambda b: (0, 0, 0)),      # wp^T per head
                pl.BlockSpec((1, C), lambda b: (0, 0)),                     # proj bias
            ],
            out_specs=pl.BlockSpec((block_b, q_pad, C), lambda b: (b, 0, 0)),
        ),
        compiler_params=pltpu.CompilerParams(
            dimension_semantics=("parallel",),
            vmem_limit_bytes=vmem_limit),
    )(xb, wqb, wkb, wvb, wpb, bp2)

    return out_padded[:, :Q_LEN, :]


def _reference(x, wq_t, wk_t, wv_t, wp_t, bp, num_heads):
    """Pure-JAX reference mirroring the PyTorch forward (f32 math)."""
    B, N, C = x.shape
    hd = C // num_heads
    scale = hd ** (-0.5)
    q = (x[:, 0:Q_LEN] @ wq_t).reshape(B, Q_LEN, num_heads, hd).transpose(0, 2, 1, 3)
    k = (x @ wk_t).reshape(B, N, num_heads, hd).transpose(0, 2, 1, 3)
    v = (x @ wv_t).reshape(B, N, num_heads, hd).transpose(0, 2, 1, 3)
    attn = jnp.einsum('bhqd,bhkd->bhqk', q, k) * scale
    attn = jax.nn.softmax(attn, axis=-1)
    o = jnp.einsum('bhqk,bhkd->bhqd', attn, v).transpose(0, 2, 1, 3).reshape(B, Q_LEN, C)
    return o @ wp_t + bp


if __name__ == "__main__":
    def run_case(B, N, C, num_heads, seed):
        key = jax.random.PRNGKey(seed)
        kx, kq, kk, kv, kp, kb = jax.random.split(key, 6)
        x = jax.random.normal(kx, (B, N, C), dtype=jnp.float32)
        # Deterministic synthetic parameters; stored as (C_in, C_out) = W.T
        # (qkv_bias=False in the module, proj has bias).
        w_scale = 1.0 / jnp.sqrt(jnp.float32(C))
        wq_t = jax.random.normal(kq, (C, C), dtype=jnp.float32) * w_scale
        wk_t = jax.random.normal(kk, (C, C), dtype=jnp.float32) * w_scale
        wv_t = jax.random.normal(kv, (C, C), dtype=jnp.float32) * w_scale
        wp_t = jax.random.normal(kp, (C, C), dtype=jnp.float32) * w_scale
        bp = jax.random.normal(kb, (C,), dtype=jnp.float32) * 0.01

        out = cross_attention_cropy(x, wq_t, wk_t, wv_t, wp_t, bp,
                                    num_heads=num_heads)
        out = jax.block_until_ready(out)
        assert out.shape == (B, Q_LEN, C)

        # Check against a reference fed the same bf16-rounded inputs the kernel
        # uses (isolates kernel math from the intentional bf16 input cast).
        rd = lambda a: a.astype(jnp.bfloat16).astype(jnp.float32)
        ref_bf = _reference(rd(x), rd(wq_t), rd(wk_t), rd(wv_t), rd(wp_t), bp, num_heads)
        assert jnp.allclose(out, ref_bf, atol=5e-2, rtol=5e-2), \
            "mismatch vs bf16-rounded-input reference"

        # Loose check against exact f32 module math (bf16 rounding dominates).
        ref_f32 = _reference(x, wq_t, wk_t, wv_t, wp_t, bp, num_heads)
        assert jnp.allclose(out, ref_f32, atol=1e-1, rtol=1e-1), \
            "mismatch vs f32 reference"

    # Aligned case (N multiple of 16) and an unaligned case that exercises the
    # sequence-padding + key-mask path (like real CrossViT N = 197 / 401).
    run_case(B=2, N=64, C=64, num_heads=8, seed=0)
    run_case(B=2, N=52, C=64, num_heads=4, seed=1)

    print("KERNEL_OK")
</pallas_src>

<mosaic_0001>
module attributes {stable_mosaic.version = 11 : i64} {
  func.func @_cross_attn_kernel(%arg0: i32, %arg1: memref<2x64x64xbf16, #tpu.memory_space<vmem>>, %arg2: memref<64x64xbf16, #tpu.memory_space<vmem>>, %arg3: memref<64x64xbf16, #tpu.memory_space<vmem>>, %arg4: memref<64x64xbf16, #tpu.memory_space<vmem>>, %arg5: memref<8x8x64xbf16, #tpu.memory_space<vmem>>, %arg6: memref<1x64xf32, #tpu.memory_space<vmem>>, %arg7: memref<2x48x64xf32, #tpu.memory_space<vmem>>) attributes {dimension_semantics = [#tpu.dimension_semantics<parallel>], iteration_bounds = array<i64: 1>, scalar_prefetch = 0 : i64, scratch_operands = 0 : i64, tpu.core_type = #tpu.core_type<tc>, window_params = [{transform_indices = @transform_0, window_bounds = array<i64: 2, 64, 64>}, {pipeline_mode = #tpu.pipeline_mode<synchronous>, transform_indices = @transform_1, window_bounds = array<i64: 64, 64>}, {pipeline_mode = #tpu.pipeline_mode<synchronous>, transform_indices = @transform_2, window_bounds = array<i64: 64, 64>}, {pipeline_mode = #tpu.pipeline_mode<synchronous>, transform_indices = @transform_3, window_bounds = array<i64: 64, 64>}, {pipeline_mode = #tpu.pipeline_mode<synchronous>, transform_indices = @transform_4, window_bounds = array<i64: 8, 8, 64>}, {pipeline_mode = #tpu.pipeline_mode<synchronous>, transform_indices = @transform_5, window_bounds = array<i64: 1, 64>}, {transform_indices = @transform_6, window_bounds = array<i64: 2, 48, 64>}]} {
    %c0 = arith.constant 0 : index
    %c0_0 = arith.constant 0 : index
    %c0_1 = arith.constant 0 : index
    %0 = vector.load %arg1[%c0, %c0_0, %c0_1] : memref<2x64x64xbf16, #tpu.memory_space<vmem>>, vector<2x64x64xbf16>
    %1 = vector.shape_cast %0 : vector<2x64x64xbf16> to vector<128x64xbf16>
    %2 = vector.extract_strided_slice %0 {offsets = [0, 0, 0], sizes = [2, 48, 64], strides = [1, 1, 1]} : vector<2x64x64xbf16> to vector<2x48x64xbf16>
    %3 = vector.shape_cast %2 : vector<2x48x64xbf16> to vector<96x64xbf16>
    %c0_2 = arith.constant 0 : index
    %c0_3 = arith.constant 0 : index
    %4 = vector.load %arg2[%c0_2, %c0_3] : memref<64x64xbf16, #tpu.memory_space<vmem>>, vector<64x64xbf16>
    %cst = arith.constant dense<0.000000e+00> : vector<96x64xf32>
    %5 = tpu.matmul %3, %4, %cst {dimension_numbers = #tpu.dot_dimension_numbers<[1], [0], [0], [1], [0, 0, 1, 1], [], []>} : vector<96x64xbf16>, vector<64x64xbf16>, vector<96x64xf32> -> vector<96x64xf32>
    %cst_4 = arith.constant 0.353553385 : f32
    %6 = vector.broadcast %cst_4 : f32 to vector<96x64xf32>
    %7 = arith.mulf %5, %6 : vector<96x64xf32>
    %8 = arith.truncf %7 : vector<96x64xf32> to vector<96x64xbf16>
    %c0_5 = arith.constant 0 : index
    %c0_6 = arith.constant 0 : index
    %9 = vector.load %arg3[%c0_5, %c0_6] : memref<64x64xbf16, #tpu.memory_space<vmem>>, vector<64x64xbf16>
    %cst_7 = arith.constant dense<0.000000e+00> : vector<128x64xf32>
    %10 = tpu.matmul %1, %9, %cst_7 {dimension_numbers = #tpu.dot_dimension_numbers<[1], [0], [0], [1], [0, 0, 1, 1], [], []>} : vector<128x64xbf16>, vector<64x64xbf16>, vector<128x64xf32> -> vector<128x64xf32>
    %11 = arith.truncf %10 : vector<128x64xf32> to vector<128x64xbf16>
    %c0_8 = arith.constant 0 : index
    %c0_9 = arith.constant 0 : index
    %12 = vector.load %arg4[%c0_8, %c0_9] : memref<64x64xbf16, #tpu.memory_space<vmem>>, vector<64x64xbf16>
    %cst_10 = arith.constant dense<0.000000e+00> : vector<128x64xf32>
    %13 = tpu.matmul %1, %12, %cst_10 {dimension_numbers = #tpu.dot_dimension_numbers<[1], [0], [0], [1], [0, 0, 1, 1], [], []>} : vector<128x64xbf16>, vector<64x64xbf16>, vector<128x64xf32> -> vector<128x64xf32>
    %14 = arith.truncf %13 : vector<128x64xf32> to vector<128x64xbf16>
    %15 = vector.shape_cast %8 : vector<96x64xbf16> to vector<2x48x64xbf16>
    %16 = vector.shape_cast %11 : vector<128x64xbf16> to vector<2x64x64xbf16>
    %17 = vector.shape_cast %14 : vector<128x64xbf16> to vector<2x64x64xbf16>
    %18 = vector.extract_strided_slice %15 {offsets = [0, 0, 0], sizes = [2, 48, 8], strides = [1, 1, 1]} : vector<2x48x64xbf16> to vector<2x48x8xbf16>
    %19 = vector.extract_strided_slice %15 {offsets = [0, 0, 8], sizes = [2, 48, 8], strides = [1, 1, 1]} : vector<2x48x64xbf16> to vector<2x48x8xbf16>
    %20 = vector.extract_strided_slice %15 {offsets = [0, 0, 16], sizes = [2, 48, 8], strides = [1, 1, 1]} : vector<2x48x64xbf16> to vector<2x48x8xbf16>
    %21 = vector.extract_strided_slice %15 {offsets = [0, 0, 24], sizes = [2, 48, 8], strides = [1, 1, 1]} : vector<2x48x64xbf16> to vector<2x48x8xbf16>
    %22 = vector.extract_strided_slice %15 {offsets = [0, 0, 32], sizes = [2, 48, 8], strides = [1, 1, 1]} : vector<2x48x64xbf16> to vector<2x48x8xbf16>
    %23 = vector.extract_strided_slice %15 {offsets = [0, 0, 40], sizes = [2, 48, 8], strides = [1, 1, 1]} : vector<2x48x64xbf16> to vector<2x48x8xbf16>
    %24 = vector.extract_strided_slice %15 {offsets = [0, 0, 48], sizes = [2, 48, 8], strides = [1, 1, 1]} : vector<2x48x64xbf16> to vector<2x48x8xbf16>
    %25 = vector.extract_strided_slice %15 {offsets = [0, 0, 56], sizes = [2, 48, 8], strides = [1, 1, 1]} : vector<2x48x64xbf16> to vector<2x48x8xbf16>
    %26 = tpu.concatenate %18, %19, %20, %21, %22, %23, %24, %25 in 0 : vector<2x48x8xbf16>, vector<2x48x8xbf16>, vector<2x48x8xbf16>, vector<2x48x8xbf16>, vector<2x48x8xbf16>, vector<2x48x8xbf16>, vector<2x48x8xbf16>, vector<2x48x8xbf16> -> vector<16x48x8xbf16>
    %27 = vector.extract_strided_slice %16 {offsets = [0, 0, 0], sizes = [2, 64, 8], strides = [1, 1, 1]} : vector<2x64x64xbf16> to vector<2x64x8xbf16>
    %28 = vector.extract_strided_slice %16 {offsets = [0, 0, 8], sizes = [2, 64, 8], strides = [1, 1, 1]} : vector<2x64x64xbf16> to vector<2x64x8xbf16>
    %29 = vector.extract_strided_slice %16 {offsets = [0, 0, 16], sizes = [2, 64, 8], strides = [1, 1, 1]} : vector<2x64x64xbf16> to vector<2x64x8xbf16>
    %30 = vector.extract_strided_slice %16 {offsets = [0, 0, 24], sizes = [2, 64, 8], strides = [1, 1, 1]} : vector<2x64x64xbf16> to vector<2x64x8xbf16>
    %31 = vector.extract_strided_slice %16 {offsets = [0, 0, 32], sizes = [2, 64, 8], strides = [1, 1, 1]} : vector<2x64x64xbf16> to vector<2x64x8xbf16>
    %32 = vector.extract_strided_slice %16 {offsets = [0, 0, 40], sizes = [2, 64, 8], strides = [1, 1, 1]} : vector<2x64x64xbf16> to vector<2x64x8xbf16>
    %33 = vector.extract_strided_slice %16 {offsets = [0, 0, 48], sizes = [2, 64, 8], strides = [1, 1, 1]} : vector<2x64x64xbf16> to vector<2x64x8xbf16>
    %34 = vector.extract_strided_slice %16 {offsets = [0, 0, 56], sizes = [2, 64, 8], strides = [1, 1, 1]} : vector<2x64x64xbf16> to vector<2x64x8xbf16>
    %35 = tpu.concatenate %27, %28, %29, %30, %31, %32, %33, %34 in 0 : vector<2x64x8xbf16>, vector<2x64x8xbf16>, vector<2x64x8xbf16>, vector<2x64x8xbf16>, vector<2x64x8xbf16>, vector<2x64x8xbf16>, vector<2x64x8xbf16>, vector<2x64x8xbf16> -> vector<16x64x8xbf16>
    %36 = vector.extract_strided_slice %17 {offsets = [0, 0, 0], sizes = [2, 64, 8], strides = [1, 1, 1]} : vector<2x64x64xbf16> to vector<2x64x8xbf16>
    %37 = vector.extract_strided_slice %17 {offsets = [0, 0, 8], sizes = [2, 64, 8], strides = [1, 1, 1]} : vector<2x64x64xbf16> to vector<2x64x8xbf16>
    %38 = vector.extract_strided_slice %17 {offsets = [0, 0, 16], sizes = [2, 64, 8], strides = [1, 1, 1]} : vector<2x64x64xbf16> to vector<2x64x8xbf16>
    %39 = vector.extract_strided_slice %17 {offsets = [0, 0, 24], sizes = [2, 64, 8], strides = [1, 1, 1]} : vector<2x64x64xbf16> to vector<2x64x8xbf16>
    %40 = vector.extract_strided_slice %17 {offsets = [0, 0, 32], sizes = [2, 64, 8], strides = [1, 1, 1]} : vector<2x64x64xbf16> to vector<2x64x8xbf16>
    %41 = vector.extract_strided_slice %17 {offsets = [0, 0, 40], sizes = [2, 64, 8], strides = [1, 1, 1]} : vector<2x64x64xbf16> to vector<2x64x8xbf16>
    %42 = vector.extract_strided_slice %17 {offsets = [0, 0, 48], sizes = [2, 64, 8], strides = [1, 1, 1]} : vector<2x64x64xbf16> to vector<2x64x8xbf16>
    %43 = vector.extract_strided_slice %17 {offsets = [0, 0, 56], sizes = [2, 64, 8], strides = [1, 1, 1]} : vector<2x64x64xbf16> to vector<2x64x8xbf16>
    %44 = tpu.concatenate %36, %37, %38, %39, %40, %41, %42, %43 in 0 : vector<2x64x8xbf16>, vector<2x64x8xbf16>, vector<2x64x8xbf16>, vector<2x64x8xbf16>, vector<2x64x8xbf16>, vector<2x64x8xbf16>, vector<2x64x8xbf16>, vector<2x64x8xbf16> -> vector<16x64x8xbf16>
    "tpu.trace_start"() <{level = 10 : i32, message = "gqd,gkd->gqk"}> : () -> ()
    %cst_11 = arith.constant dense<0.000000e+00> : vector<16x48x64xf32>
    %45 = tpu.matmul %26, %35, %cst_11 {dimension_numbers = #tpu.dot_dimension_numbers<[2], [2], [1], [1], [0, 0, 0, 1, 1, 1], [0], [0]>} : vector<16x48x8xbf16>, vector<16x64x8xbf16>, vector<16x48x64xf32> -> vector<16x48x64xf32>
    "tpu.trace_stop"() : () -> ()
    %cst_12 = arith.constant dense<0xFF800000> : vector<16x48xf32>
    %46 = vector.multi_reduction <maximumf>, %45, %cst_12 [2] : vector<16x48x64xf32> to vector<16x48xf32>
    %47 = vector.shape_cast %46 : vector<16x48xf32> to vector<16x48x1xf32>
    %48 = vector.broadcast %47 : vector<16x48x1xf32> to vector<16x48x64xf32>
    %49 = arith.subf %45, %48 : vector<16x48x64xf32>
    %50 = math.exp %49 : vector<16x48x64xf32>
    %cst_13 = arith.constant dense<0.000000e+00> : vector<16x48xf32>
    %51 = vector.multi_reduction <add>, %50, %cst_13 [2] : vector<16x48x64xf32> to vector<16x48xf32>
    %52 = vector.shape_cast %51 : vector<16x48xf32> to vector<16x48x1xf32>
    %53 = tpu.reciprocal %52 {approx = true} : vector<16x48x1xf32> -> vector<16x48x1xf32>
    %54 = vector.broadcast %53 : vector<16x48x1xf32> to vector<16x48x64xf32>
    %55 = arith.mulf %50, %54 : vector<16x48x64xf32>
    %56 = arith.truncf %55 : vector<16x48x64xf32> to vector<16x48x64xbf16>
    "tpu.trace_start"() <{level = 10 : i32, message = "gqk,gkd->gqd"}> : () -> ()
    %cst_14 = arith.constant dense<0.000000e+00> : vector<16x48x8xf32>
    %57 = tpu.matmul %56, %44, %cst_14 {dimension_numbers = #tpu.dot_dimension_numbers<[2], [1], [1], [2], [0, 0, 0, 1, 1, 2], [0], [0]>} : vector<16x48x64xbf16>, vector<16x64x8xbf16>, vector<16x48x8xf32> -> vector<16x48x8xf32>
    "tpu.trace_stop"() : () -> ()
    %58 = vector.extract_strided_slice %57 {offsets = [0, 0, 0], sizes = [2, 48, 8], strides = [1, 1, 1]} : vector<16x48x8xf32> to vector<2x48x8xf32>
    %59 = vector.shape_cast %58 : vector<2x48x8xf32> to vector<96x8xf32>
    %60 = arith.truncf %59 : vector<96x8xf32> to vector<96x8xbf16>
    %c0_15 = arith.constant 0 : index
    %c0_16 = arith.constant 0 : index
    %c0_17 = arith.constant 0 : index
    %61 = vector.load %arg5[%c0_15, %c0_16, %c0_17] : memref<8x8x64xbf16, #tpu.memory_space<vmem>>, vector<1x8x64xbf16>
    %62 = vector.shape_cast %61 : vector<1x8x64xbf16> to vector<8x64xbf16>
    %cst_18 = arith.constant dense<0.000000e+00> : vector<96x64xf32>
    %63 = tpu.matmul %60, %62, %cst_18 {dimension_numbers = #tpu.dot_dimension_numbers<[1], [0], [0], [1], [0, 0, 1, 1], [], []>} : vector<96x8xbf16>, vector<8x64xbf16>, vector<96x64xf32> -> vector<96x64xf32>
    %64 = vector.extract_strided_slice %57 {offsets = [2, 0, 0], sizes = [2, 48, 8], strides = [1, 1, 1]} : vector<16x48x8xf32> to vector<2x48x8xf32>
    %65 = vector.shape_cast %64 : vector<2x48x8xf32> to vector<96x8xf32>
    %66 = arith.truncf %65 : vector<96x8xf32> to vector<96x8xbf16>
    %c1 = arith.constant 1 : index
    %c0_19 = arith.constant 0 : index
    %c0_20 = arith.constant 0 : index
    %67 = vector.load %arg5[%c1, %c0_19, %c0_20] : memref<8x8x64xbf16, #tpu.memory_space<vmem>>, vector<1x8x64xbf16>
    %68 = vector.shape_cast %67 : vector<1x8x64xbf16> to vector<8x64xbf16>
    %cst_21 = arith.constant dense<0.000000e+00> : vector<96x64xf32>
    %69 = tpu.matmul %66, %68, %cst_21 {dimension_numbers = #tpu.dot_dimension_numbers<[1], [0], [0], [1], [0, 0, 1, 1], [], []>} : vector<96x8xbf16>, vector<8x64xbf16>, vector<96x64xf32> -> vector<96x64xf32>
    %70 = arith.addf %63, %69 : vector<96x64xf32>
    %71 = vector.extract_strided_slice %57 {offsets = [4, 0, 0], sizes = [2, 48, 8], strides = [1, 1, 1]} : vector<16x48x8xf32> to vector<2x48x8xf32>
    %72 = vector.shape_cast %71 : vector<2x48x8xf32> to vector<96x8xf32>
    %73 = arith.truncf %72 : vector<96x8xf32> to vector<96x8xbf16>
    %c2 = arith.constant 2 : index
    %c0_22 = arith.constant 0 : index
    %c0_23 = arith.constant 0 : index
    %74 = vector.load %arg5[%c2, %c0_22, %c0_23] : memref<8x8x64xbf16, #tpu.memory_space<vmem>>, vector<1x8x64xbf16>
    %75 = vector.shape_cast %74 : vector<1x8x64xbf16> to vector<8x64xbf16>
    %cst_24 = arith.constant dense<0.000000e+00> : vector<96x64xf32>
    %76 = tpu.matmul %73, %75, %cst_24 {dimension_numbers = #tpu.dot_dimension_numbers<[1], [0], [0], [1], [0, 0, 1, 1], [], []>} : vector<96x8xbf16>, vector<8x64xbf16>, vector<96x64xf32> -> vector<96x64xf32>
    %77 = arith.addf %70, %76 : vector<96x64xf32>
    %78 = vector.extract_strided_slice %57 {offsets = [6, 0, 0], sizes = [2, 48, 8], strides = [1, 1, 1]} : vector<16x48x8xf32> to vector<2x48x8xf32>
    %79 = vector.shape_cast %78 : vector<2x48x8xf32> to vector<96x8xf32>
    %80 = arith.truncf %79 : vector<96x8xf32> to vector<96x8xbf16>
    %c3 = arith.constant 3 : index
    %c0_25 = arith.constant 0 : index
    %c0_26 = arith.constant 0 : index
    %81 = vector.load %arg5[%c3, %c0_25, %c0_26] : memref<8x8x64xbf16, #tpu.memory_space<vmem>>, vector<1x8x64xbf16>
    %82 = vector.shape_cast %81 : vector<1x8x64xbf16> to vector<8x64xbf16>
    %cst_27 = arith.constant dense<0.000000e+00> : vector<96x64xf32>
    %83 = tpu.matmul %80, %82, %cst_27 {dimension_numbers = #tpu.dot_dimension_numbers<[1], [0], [0], [1], [0, 0, 1, 1], [], []>} : vector<96x8xbf16>, vector<8x64xbf16>, vector<96x64xf32> -> vector<96x64xf32>
    %84 = arith.addf %77, %83 : vector<96x64xf32>
    %85 = vector.extract_strided_slice %57 {offsets = [8, 0, 0], sizes = [2, 48, 8], strides = [1, 1, 1]} : vector<16x48x8xf32> to vector<2x48x8xf32>
    %86 = vector.shape_cast %85 : vector<2x48x8xf32> to vector<96x8xf32>
    %87 = arith.truncf %86 : vector<96x8xf32> to vector<96x8xbf16>
    %c4 = arith.constant 4 : index
    %c0_28 = arith.constant 0 : index
    %c0_29 = arith.constant 0 : index
    %88 = vector.load %arg5[%c4, %c0_28, %c0_29] : memref<8x8x64xbf16, #tpu.memory_space<vmem>>, vector<1x8x64xbf16>
    %89 = vector.shape_cast %88 : vector<1x8x64xbf16> to vector<8x64xbf16>
    %cst_30 = arith.constant dense<0.000000e+00> : vector<96x64xf32>
    %90 = tpu.matmul %87, %89, %cst_30 {dimension_numbers = #tpu.dot_dimension_numbers<[1], [0], [0], [1], [0, 0, 1, 1], [], []>} : vector<96x8xbf16>, vector<8x64xbf16>, vector<96x64xf32> -> vector<96x64xf32>
    %91 = arith.addf %84, %90 : vector<96x64xf32>
    %92 = vector.extract_strided_slice %57 {offsets = [10, 0, 0], sizes = [2, 48, 8], strides = [1, 1, 1]} : vector<16x48x8xf32> to vector<2x48x8xf32>
    %93 = vector.shape_cast %92 : vector<2x48x8xf32> to vector<96x8xf32>
    %94 = arith.truncf %93 : vector<96x8xf32> to vector<96x8xbf16>
    %c5 = arith.constant 5 : index
    %c0_31 = arith.constant 0 : index
    %c0_32 = arith.constant 0 : index
    %95 = vector.load %arg5[%c5, %c0_31, %c0_32] : memref<8x8x64xbf16, #tpu.memory_space<vmem>>, vector<1x8x64xbf16>
    %96 = vector.shape_cast %95 : vector<1x8x64xbf16> to vector<8x64xbf16>
    %cst_33 = arith.constant dense<0.000000e+00> : vector<96x64xf32>
    %97 = tpu.matmul %94, %96, %cst_33 {dimension_numbers = #tpu.dot_dimension_numbers<[1], [0], [0], [1], [0, 0, 1, 1], [], []>} : vector<96x8xbf16>, vector<8x64xbf16>, vector<96x64xf32> -> vector<96x64xf32>
    %98 = arith.addf %91, %97 : vector<96x64xf32>
    %99 = vector.extract_strided_slice %57 {offsets = [12, 0, 0], sizes = [2, 48, 8], strides = [1, 1, 1]} : vector<16x48x8xf32> to vector<2x48x8xf32>
    %100 = vector.shape_cast %99 : vector<2x48x8xf32> to vector<96x8xf32>
    %101 = arith.truncf %100 : vector<96x8xf32> to vector<96x8xbf16>
    %c6 = arith.constant 6 : index
    %c0_34 = arith.constant 0 : index
    %c0_35 = arith.constant 0 : index
    %102 = vector.load %arg5[%c6, %c0_34, %c0_35] : memref<8x8x64xbf16, #tpu.memory_space<vmem>>, vector<1x8x64xbf16>
    %103 = vector.shape_cast %102 : vector<1x8x64xbf16> to vector<8x64xbf16>
    %cst_36 = arith.constant dense<0.000000e+00> : vector<96x64xf32>
    %104 = tpu.matmul %101, %103, %cst_36 {dimension_numbers = #tpu.dot_dimension_numbers<[1], [0], [0], [1], [0, 0, 1, 1], [], []>} : vector<96x8xbf16>, vector<8x64xbf16>, vector<96x64xf32> -> vector<96x64xf32>
    %105 = arith.addf %98, %104 : vector<96x64xf32>
    %106 = vector.extract_strided_slice %57 {offsets = [14, 0, 0], sizes = [2, 48, 8], strides = [1, 1, 1]} : vector<16x48x8xf32> to vector<2x48x8xf32>
    %107 = vector.shape_cast %106 : vector<2x48x8xf32> to vector<96x8xf32>
    %108 = arith.truncf %107 : vector<96x8xf32> to vector<96x8xbf16>
    %c7 = arith.constant 7 : index
    %c0_37 = arith.constant 0 : index
    %c0_38 = arith.constant 0 : index
    %109 = vector.load %arg5[%c7, %c0_37, %c0_38] : memref<8x8x64xbf16, #tpu.memory_space<vmem>>, vector<1x8x64xbf16>
    %110 = vector.shape_cast %109 : vector<1x8x64xbf16> to vector<8x64xbf16>
    %cst_39 = arith.constant dense<0.000000e+00> : vector<96x64xf32>
    %111 = tpu.matmul %108, %110, %cst_39 {dimension_numbers = #tpu.dot_dimension_numbers<[1], [0], [0], [1], [0, 0, 1, 1], [], []>} : vector<96x8xbf16>, vector<8x64xbf16>, vector<96x64xf32> -> vector<96x64xf32>
    %112 = arith.addf %105, %111 : vector<96x64xf32>
    %c0_40 = arith.constant 0 : index
    %c0_41 = arith.constant 0 : index
    %113 = vector.load %arg6[%c0_40, %c0_41] : memref<1x64xf32, #tpu.memory_space<vmem>>, vector<1x64xf32>
    %114 = vector.broadcast %113 : vector<1x64xf32> to vector<96x64xf32>
    %115 = arith.addf %112, %114 : vector<96x64xf32>
    %116 = vector.shape_cast %115 : vector<96x64xf32> to vector<2x48x64xf32>
    %c0_42 = arith.constant 0 : index
    %c0_43 = arith.constant 0 : index
    %c0_44 = arith.constant 0 : index
    %117 = vector.load %arg7[%c0_42, %c0_43, %c0_44] : memref<2x48x64xf32, #tpu.memory_space<vmem>>, vector<2x48x64xf32>
    tpu.vector_store %arg7[%c0_42, %c0_43, %c0_44], %116 {strides = array<i32>} : memref<2x48x64xf32, #tpu.memory_space<vmem>>, vector<2x48x64xf32>,
    return
  }
  func.func @transform_0(%arg0: i32) -> (i32, i32, i32) {
    %c0_i32 = arith.constant 0 : i32
    %c0_i32_0 = arith.constant 0 : i32
    %c0_i32_1 = arith.constant 0 : i32
    return %arg0, %c0_i32, %c0_i32_0 : i32, i32, i32
  }
  func.func @transform_1(%arg0: i32) -> (i32, i32) {
    %c0_i32 = arith.constant 0 : i32
    %c0_i32_0 = arith.constant 0 : i32
    %c0_i32_1 = arith.constant 0 : i32
    return %c0_i32, %c0_i32_0 : i32, i32
  }
  func.func @transform_2(%arg0: i32) -> (i32, i32) {
    %c0_i32 = arith.constant 0 : i32
    %c0_i32_0 = arith.constant 0 : i32
    %c0_i32_1 = arith.constant 0 : i32
    return %c0_i32, %c0_i32_0 : i32, i32
  }
  func.func @transform_3(%arg0: i32) -> (i32, i32) {
    %c0_i32 = arith.constant 0 : i32
    %c0_i32_0 = arith.constant 0 : i32
    %c0_i32_1 = arith.constant 0 : i32
    return %c0_i32, %c0_i32_0 : i32, i32
  }
  func.func @transform_4(%arg0: i32) -> (i32, i32, i32) {
    %c0_i32 = arith.constant 0 : i32
    %c0_i32_0 = arith.constant 0 : i32
    %c0_i32_1 = arith.constant 0 : i32
    %c0_i32_2 = arith.constant 0 : i32
    return %c0_i32, %c0_i32_0, %c0_i32_1 : i32, i32, i32
  }
  func.func @transform_5(%arg0: i32) -> (i32, i32) {
    %c0_i32 = arith.constant 0 : i32
    %c0_i32_0 = arith.constant 0 : i32
    %c0_i32_1 = arith.constant 0 : i32
    return %c0_i32, %c0_i32_0 : i32, i32
  }
  func.func @transform_6(%arg0: i32) -> (i32, i32, i32) {
    %c0_i32 = arith.constant 0 : i32
    %c0_i32_0 = arith.constant 0 : i32
    %c0_i32_1 = arith.constant 0 : i32
    return %arg0, %c0_i32, %c0_i32_0 : i32, i32, i32
  }
}

</mosaic_0001>

<llo_original>
// kernel: tpu_custom_call.1
$region0: #{tpu_custom_call.1}
  #allocation0 [shape = 'u32[]', space=smem, size = 0x4, offset = 0x4, fixed_abs, tag = 'smem constant byte address 0x4 - core index']
  #allocation1 [shape = 'u32[144,128]{1,0:T(1,128)}', space=vmem, size = 0x12000, scoped, tag = 'internal scratch']
  %s0 = inlined_call_operand.hbm [shape: bf16[2,64,64], index: 0, kind: input, shape index: {}]
  %s1 = inlined_call_operand.hbm [shape: bf16[64,64], index: 1, kind: input, shape index: {}]
  %s2 = inlined_call_operand.hbm [shape: bf16[64,64], index: 2, kind: input, shape index: {}]
  %s3 = inlined_call_operand.hbm [shape: bf16[64,64], index: 3, kind: input, shape index: {}]
  %s4 = inlined_call_operand.hbm [shape: bf16[8,8,64], index: 4, kind: input, shape index: {}]
  %s5 = inlined_call_operand.vmem [shape: f32[1,64], index: 5, kind: input, shape index: {}]
  %s6 = inlined_call_operand.hbm [shape: f32[2,48,64], index: 6, kind: output, shape index: {}]
  %s7 = sld [smem:[#allocation0]]
  $region54: #{tpu_custom_call.1} parent=0
    _
  %s9 = ssub.s32 1, %s7
  %s10 = scalar_select 0, %s9, %s7
  $region1: #{tpu_custom_call.1} parent=0
    #allocation2 [shape = 'u8[32768]{0}', space=vmem, size = 0x8000, scoped, tag = 'input window, operand 0, single buffered']
    #allocation3 [shape = 's32[1]{0}', space=sflag, size = 0x4, scoped, tag = 'scoped memory for tpu_custom_call.1']
    #allocation4 [shape = 's32[1]{0}', space=sflag, size = 0x4, scoped, tag = 'scoped memory for tpu_custom_call.1']
    #allocation5 [shape = 'u8[16384]{0}', space=vmem, size = 0x4000, scoped, tag = 'input window, operand 1, single buffered']
    #allocation6 [shape = 's32[1]{0}', space=sflag, size = 0x4, scoped, tag = 'scoped memory for tpu_custom_call.1']
    #allocation7 [shape = 'u8[16384]{0}', space=vmem, size = 0x4000, scoped, tag = 'input window, operand 2, single buffered']
    #allocation8 [shape = 'u8[16384]{0}', space=vmem, size = 0x4000, scoped, tag = 'input window, operand 3, single buffered']
    #allocation9 [shape = 's32[1]{0}', space=sflag, size = 0x4, scoped, tag = 'scoped memory for tpu_custom_call.1']
    #allocation10 [shape = 'u8[16384]{0}', space=vmem, size = 0x4000, scoped, tag = 'input window, operand 4, single buffered']
    #allocation11 [shape = 'u8[49152]{0}', space=vmem, size = 0xc000, scoped, tag = 'output window, operand 0, single buffered']
    %11 = vsyncpa [#allocation3], 0
    %12 = vsyncpa [#allocation6], 0
    %13 = vsyncpa [#allocation9], 0
    %14 = vsyncpa [#allocation4], 0
    // Predicated region
    $region2: #{tpu_custom_call.1} parent=1 // pred_check
      _
    $region3: #{tpu_custom_call.1} parent=1 // pred_check_branch
      %16 = sbr.rel (0) target = $region5
    $region4: #{tpu_custom_call.1} parent=1 // pred_region
      %s18 = ssub.s32 1024, 1024
      %19 = vsyncadd [#allocation3], %s18
      %s20 = sshll.u32 [#allocation2], 4
      %s21 = int_to_ptr.vmem [resolvable:$true] %s20
      %26 = dma.hbm_to_vmem [thread:$0]  %s0, 1024, %s21, [#allocation3], 64, 64, 4
    $region5: #{tpu_custom_call.1} parent=1 // pred_fallthru
      _
    // Predicated region
    $region6: #{tpu_custom_call.1} parent=1 // pred_check
      _
    $region7: #{tpu_custom_call.1} parent=1 // pred_check_branch
      %28 = sbr.rel (0) target = $region9
    $region8: #{tpu_custom_call.1} parent=1 // pred_region
      %s30 = ssub.s32 512, 512
      %31 = vsyncadd [#allocation6], %s30
      %s32 = sshll.u32 [#allocation5], 4
      %s33 = int_to_ptr.vmem [resolvable:$true] %s32
      %38 = dma.hbm_to_vmem [thread:$0]  %s1, 512, %s33, [#allocation6], 64, 64, 4
    $region9: #{tpu_custom_call.1} parent=1 // pred_fallthru
      _
    // Predicated region
    $region10: #{tpu_custom_call.1} parent=1 // pred_check
      _
    $region11: #{tpu_custom_call.1} parent=1 // pred_check_branch
      %40 = sbr.rel (0) target = $region13
    $region12: #{tpu_custom_call.1} parent=1 // pred_region
      %s42 = ssub.s32 512, 512
      %43 = vsyncadd [#allocation6], %s42
      %s44 = sshll.u32 [#allocation7], 4
      %s45 = int_to_ptr.vmem [resolvable:$true] %s44
      %50 = dma.hbm_to_vmem [thread:$0]  %s2, 512, %s45, [#allocation6], 64, 64, 4
    $region13: #{tpu_custom_call.1} parent=1 // pred_fallthru
      _
    // Predicated region
    $region14: #{tpu_custom_call.1} parent=1 // pred_check
      _
    $region15: #{tpu_custom_call.1} parent=1 // pred_check_branch
      %52 = sbr.rel (0) target = $region17
    $region16: #{tpu_custom_call.1} parent=1 // pred_region
      %s54 = ssub.s32 512, 512
      %55 = vsyncadd [#allocation9], %s54
      %s56 = sshll.u32 [#allocation8], 4
      %s57 = int_to_ptr.vmem [resolvable:$true] %s56
      %62 = dma.hbm_to_vmem [thread:$0]  %s3, 512, %s57, [#allocation9], 64, 64, 4
    $region17: #{tpu_custom_call.1} parent=1 // pred_fallthru
      _
    // Predicated region
    $region18: #{tpu_custom_call.1} parent=1 // pred_check
      _
    $region19: #{tpu_custom_call.1} parent=1 // pred_check_branch
      %64 = sbr.rel (0) target = $region21
    $region20: #{tpu_custom_call.1} parent=1 // pred_region
      %s66 = ssub.s32 512, 512
      %67 = vsyncadd [#allocation9], %s66
      %s68 = sshll.u32 [#allocation10], 4
      %s69 = int_to_ptr.vmem [resolvable:$true] %s68
      %74 = dma.hbm_to_vmem [thread:$0]  %s4, 512, %s69, [#allocation9], 64, 64, 4
    $region21: #{tpu_custom_call.1} parent=1 // pred_fallthru
      _
    // Predicated region
    $region22: #{tpu_custom_call.1} parent=1 // pred_check
      _
    $region23: #{tpu_custom_call.1} parent=1 // pred_check_branch
      %76 = sbr.rel (0) target = $region25
    $region24: #{tpu_custom_call.1} parent=1 // pred_region
      _
    $region25: #{tpu_custom_call.1} parent=1 // pred_fallthru
      _
    // Predicated region
    $region26: #{tpu_custom_call.1} parent=1 // pred_check
      _
    $region27: #{tpu_custom_call.1} parent=1 // pred_check_branch
      %78 = sbr.rel (0) target = $region29
    $region28: #{tpu_custom_call.1} parent=1 // pred_region
      %79 = dma.done [#allocation3], 1024
    $region29: #{tpu_custom_call.1} parent=1 // pred_fallthru
      _
    // Predicated region
    $region30: #{tpu_custom_call.1} parent=1 // pred_check
      _
    $region31: #{tpu_custom_call.1} parent=1 // pred_check_branch
      %81 = sbr.rel (0) target = $region33
    $region32: #{tpu_custom_call.1} parent=1 // pred_region
      %82 = dma.done [#allocation6], 512
    $region33: #{tpu_custom_call.1} parent=1 // pred_fallthru
      _
    // Predicated region
    $region34: #{tpu_custom_call.1} parent=1 // pred_check
      _
    $region35: #{tpu_custom_call.1} parent=1 // pred_check_branch
      %84 = sbr.rel (0) target = $region37
    $region36: #{tpu_custom_call.1} parent=1 // pred_region
      %85 = dma.done [#allocation6], 512
    $region37: #{tpu_custom_call.1} parent=1 // pred_fallthru
      _
    // Predicated region
    $region38: #{tpu_custom_call.1} parent=1 // pred_check
      _
    $region39: #{tpu_custom_call.1} parent=1 // pred_check_branch
      %87 = sbr.rel (0) target = $region41
    $region40: #{tpu_custom_call.1} parent=1 // pred_region
      %88 = dma.done [#allocation9], 512
    $region41: #{tpu_custom_call.1} parent=1 // pred_fallthru
      _
    // Predicated region
    $region42: #{tpu_custom_call.1} parent=1 // pred_check
      _
    $region43: #{tpu_custom_call.1} parent=1 // pred_check_branch
      %90 = sbr.rel (0) target = $region45
    $region44: #{tpu_custom_call.1} parent=1 // pred_region
      %91 = dma.done [#allocation9], 512
    $region45: #{tpu_custom_call.1} parent=1 // pred_fallthru
      _
    %v93 = vld [vmem:[#allocation2] sm:$0xf]
    %v94 = vld [vmem:[#allocation2 + $0x4] sm:$0xf]
    %v95 = vld [vmem:[#allocation2 + $0x8] sm:$0xf]
    %v96 = vld [vmem:[#allocation2 + $0xc] sm:$0xf]
    %v97 = vld [vmem:[#allocation2 + $0x10] sm:$0xf]
    %v98 = vld [vmem:[#allocation2 + $0x14] sm:$0xf]
    %v99 = vld [vmem:[#allocation2 + $0x18] sm:$0xf]
    %v100 = vld [vmem:[#allocation2 + $0x1c] sm:$0xf]
    %v101 = vld [vmem:[#allocation2 + $0x20] sm:$0xf]
    %v102 = vld [vmem:[#allocation2 + $0x24] sm:$0xf]
    %v103 = vld [vmem:[#allocation2 + $0x28] sm:$0xf]
    %v104 = vld [vmem:[#allocation2 + $0x2c] sm:$0xf]
    %v105 = vld [vmem:[#allocation2 + $0x30] sm:$0xf]
    %v106 = vld [vmem:[#allocation2 + $0x34] sm:$0xf]
    %v107 = vld [vmem:[#allocation2 + $0x38] sm:$0xf]
    %v108 = vld [vmem:[#allocation2 + $0x3c] sm:$0xf]
    %v109 = vld [vmem:[#allocation5] sm:$0xf]
    %v110 = vld [vmem:[#allocation5 + $0x4] sm:$0xf]
    %v111 = vld [vmem:[#allocation5 + $0x8] sm:$0xf]
    %v112 = vld [vmem:[#allocation5 + $0xc] sm:$0xf]
    %v113 = vld [vmem:[#allocation5 + $0x10] sm:$0xf]
    %v114 = vld [vmem:[#allocation5 + $0x14] sm:$0xf]
    %v115 = vld [vmem:[#allocation5 + $0x18] sm:$0xf]
    %v116 = vld [vmem:[#allocation5 + $0x1c] sm:$0xf]
    %v129 = vunpack.c.l.b16 %v93
    %v130 = vunpack.c.l.b16 %v94
    %v131 = vunpack.c.l.b16 %v95
    %v132 = vunpack.c.l.b16 %v96
    %v133 = vunpack.c.l.b16 %v97
    %v134 = vunpack.c.l.b16 %v98
    %v135 = vunpack.c.l.b16 %v101
    %v136 = vunpack.c.l.b16 %v102
    %v137 = vunpack.c.l.b16 %v103
    %v138 = vunpack.c.l.b16 %v104
    %v139 = vunpack.c.l.b16 %v105
    %v140 = vunpack.c.l.b16 %v106
    %v141 = vpack.c.b16 %v130, %v129
    %v142 = vpack.c.b16 %v132, %v131
    %v143 = vpack.c.b16 %v134, %v133
    %v144 = vpack.c.b16 %v136, %v135
    %v145 = vpack.c.b16 %v138, %v137
    %v146 = vpack.c.b16 %v140, %v139
    %v155 = vunpack.c.l.b16 %v109
    %v156 = vunpack.c.l.b16 %v110
    %v157 = vunpack.c.l.b16 %v111
    %v158 = vunpack.c.l.b16 %v112
    %v159 = vunpack.c.l.b16 %v113
    %v160 = vunpack.c.l.b16 %v114
    %v161 = vunpack.c.l.b16 %v115
    %v162 = vunpack.c.l.b16 %v116
    %v163 = vpack.c.b16 %v156, %v155
    %v164 = vpack.c.b16 %v158, %v157
    %v165 = vpack.c.b16 %v160, %v159
    %v166 = vpack.c.b16 %v162, %v161
    %vm171 = vcmask 523264
    %v173 = vsel %vm171, %v141, 0
    %v176 = vsel %vm171, %v142, 0
    %v179 = vsel %vm171, %v143, 0
    %v182 = vsel %vm171, %v144, 0
    %v185 = vsel %vm171, %v145, 0
    %v188 = vsel %vm171, %v146, 0
    %190 = vmatprep.subr.bf16.mxu0 0
    %191 = vmatpush1.bf16.msra.mxu0 0
    %192 = vmatprep.subr.bf16.mxu0 0
    %193 = vmatpush1.bf16.msra.mxu0 0
    %194 = vmatprep.subr.bf16.mxu0 0
    %195 = vmatpush1.bf16.msra.mxu0 0
    %196 = vmatprep.subr.bf16.mxu0 0
    %197 = vmatpush1.bf16.msra.mxu0 0
    %198 = vmatprep.subr.bf16.mxu0 0
    %199 = vmatpush1.bf16.msra.mxu0 %v166
    %200 = vmatprep.subr.bf16.mxu0 0
    %201 = vmatpush1.bf16.msra.mxu0 %v165
    %202 = vmatprep.subr.bf16.mxu0 0
    %203 = vmatpush1.bf16.msra.mxu0 %v164
    %204 = vmatprep.subr.bf16.mxu0 0
    %205 = vmatpush1.bf16.msra.mxu0 %v163
    %206 = vmatprep.subr.bf16.mxu0 0
    %207 = vmatpush2.bf16.msra.mxu0 0
    %208 = vmatprep.subr.bf16.mxu0 0
    %209 = vmatpush2.bf16.msra.mxu0 0
    %210 = vmatprep.subr.bf16.mxu0 0
    %211 = vmatpush2.bf16.msra.mxu0 0
    %212 = vmatprep.subr.bf16.mxu0 0
    %213 = vmatpush2.bf16.msra.mxu0 0
    %214 = vmatprep.subr.bf16.mxu0 0
    %215 = vmatpush2.bf16.msra.mxu0 0
    %216 = vmatprep.subr.bf16.mxu0 0
    %217 = vmatpush2.bf16.msra.mxu0 0
    %218 = vmatprep.subr.bf16.mxu0 0
    %219 = vmatpush2.bf16.msra.mxu0 0
    %220 = vmatprep.subr.bf16.mxu0 0
    %221 = vmatpush2.bf16.msra.mxu0 0
    %222 = vmatprep.mubr.bf16.mxu0 0
    %223 = vmatmul.mubr.bf16.gmra.mxu0 %v173
    %v224 = vpop.f32.mrf.mxu0
    %v225 = vadd.f32 0.0, %v224
    %v226 = vpop.f32.mrf.mxu0
    %v227 = vpop.f32.mrf.mxu0
    %v228 = vadd.f32 0.0, %v227
    %v229 = vpop.f32.mrf.mxu0
    %230 = vmatprep.mubr.bf16.mxu0 0
    %231 = vmatmul.mubr.bf16.gmra.mxu0 %v176
    %v232 = vpop.f32.mrf.mxu0
    %v233 = vadd.f32 0.0, %v232
    %v234 = vpop.f32.mrf.mxu0
    %v235 = vpop.f32.mrf.mxu0
    %v236 = vadd.f32 0.0, %v235
    %v237 = vpop.f32.mrf.mxu0
    %238 = vmatprep.mubr.bf16.mxu0 0
    %239 = vmatmul.mubr.bf16.gmra.mxu0 %v179
    %v240 = vpop.f32.mrf.mxu0
    %v241 = vadd.f32 0.0, %v240
    %v242 = vpop.f32.mrf.mxu0
    %v243 = vpop.f32.mrf.mxu0
    %v244 = vadd.f32 0.0, %v243
    %v245 = vpop.f32.mrf.mxu0
    %246 = vmatprep.mubr.bf16.mxu0 0
    %247 = vmatmul.mubr.bf16.gmra.mxu0 %v182
    %v248 = vpop.f32.mrf.mxu0
    %v249 = vadd.f32 0.0, %v248
    %v250 = vpop.f32.mrf.mxu0
    %v251 = vpop.f32.mrf.mxu0
    %v252 = vadd.f32 0.0, %v251
    %v253 = vpop.f32.mrf.mxu0
    %254 = vmatprep.mubr.bf16.mxu0 0
    %255 = vmatmul.mubr.bf16.gmra.mxu0 %v185
    %v256 = vpop.f32.mrf.mxu0
    %v257 = vadd.f32 0.0, %v256
    %v258 = vpop.f32.mrf.mxu0
    %v259 = vpop.f32.mrf.mxu0
    %v260 = vadd.f32 0.0, %v259
    %v261 = vpop.f32.mrf.mxu0
    %262 = vmatprep.mubr.bf16.mxu0 0
    %263 = vmatmul.mubr.bf16.gmra.mxu0 %v188
    %v264 = vpop.f32.mrf.mxu0
    %v265 = vadd.f32 0.0, %v264
    %v266 = vpop.f32.mrf.mxu0
    %v267 = vpop.f32.mrf.mxu0
    %v268 = vadd.f32 0.0, %v267
    %v269 = vpop.f32.mrf.mxu0
    %270 = vdwg.mxu0
    %v271 = vmul.f32 %v225, 0.35355338
    %v272 = vmul.f32 %v228, 0.35355338
    %v273 = vmul.f32 %v233, 0.35355338
    %v274 = vmul.f32 %v236, 0.35355338
    %v275 = vmul.f32 %v241, 0.35355338
    %v276 = vmul.f32 %v244, 0.35355338
    %v277 = vmul.f32 %v249, 0.35355338
    %v278 = vmul.f32 %v252, 0.35355338
    %v279 = vmul.f32 %v257, 0.35355338
    %v280 = vmul.f32 %v260, 0.35355338
    %v281 = vmul.f32 %v265, 0.35355338
    %v282 = vmul.f32 %v268, 0.35355338
    %v283 = vpack.c.bf16 %v272, %v271
    %v284 = vpack.c.bf16 %v274, %v273
    %v285 = vpack.c.bf16 %v276, %v275
    %v286 = vpack.c.bf16 %v278, %v277
    %v287 = vpack.c.bf16 %v280, %v279
    %v288 = vpack.c.bf16 %v282, %v281
    %v289 = vld [vmem:[#allocation7] sm:$0xf]
    %v290 = vld [vmem:[#allocation7 + $0x4] sm:$0xf]
    %v291 = vld [vmem:[#allocation7 + $0x8] sm:$0xf]
    %v292 = vld [vmem:[#allocation7 + $0xc] sm:$0xf]
    %v293 = vld [vmem:[#allocation7 + $0x10] sm:$0xf]
    %v294 = vld [vmem:[#allocation7 + $0x14] sm:$0xf]
    %v295 = vld [vmem:[#allocation7 + $0x18] sm:$0xf]
    %v296 = vld [vmem:[#allocation7 + $0x1c] sm:$0xf]
    %v301 = vunpack.c.l.b16 %v99
    %v302 = vunpack.c.l.b16 %v100
    %v303 = vunpack.c.l.b16 %v107
    %v304 = vunpack.c.l.b16 %v108
    %v305 = vpack.c.b16 %v302, %v301
    %v306 = vpack.c.b16 %v304, %v303
    %v315 = vunpack.c.l.b16 %v289
    %v316 = vunpack.c.l.b16 %v290
    %v317 = vunpack.c.l.b16 %v291
    %v318 = vunpack.c.l.b16 %v292
    %v319 = vunpack.c.l.b16 %v293
    %v320 = vunpack.c.l.b16 %v294
    %v321 = vunpack.c.l.b16 %v295
    %v322 = vunpack.c.l.b16 %v296
    %v323 = vpack.c.b16 %v316, %v315
    %v324 = vpack.c.b16 %v318, %v317
    %v325 = vpack.c.b16 %v320, %v319
    %v326 = vpack.c.b16 %v322, %v321
    %v332 = vsel %vm171, %v305, 0
    %v335 = vsel %vm171, %v306, 0
    %337 = vmatprep.subr.bf16.mxu0 0
    %338 = vmatpush1.bf16.msra.mxu0 0
    %339 = vmatprep.subr.bf16.mxu0 0
    %340 = vmatpush1.bf16.msra.mxu0 0
    %341 = vmatprep.subr.bf16.mxu0 0
    %342 = vmatpush1.bf16.msra.mxu0 0
    %343 = vmatprep.subr.bf16.mxu0 0
    %344 = vmatpush1.bf16.msra.mxu0 0
    %345 = vmatprep.subr.bf16.mxu0 0
    %346 = vmatpush1.bf16.msra.mxu0 %v326
    %347 = vmatprep.subr.bf16.mxu0 0
    %348 = vmatpush1.bf16.msra.mxu0 %v325
    %349 = vmatprep.subr.bf16.mxu0 0
    %350 = vmatpush1.bf16.msra.mxu0 %v324
    %351 = vmatprep.subr.bf16.mxu0 0
    %352 = vmatpush1.bf16.msra.mxu0 %v323
    %353 = vmatprep.subr.bf16.mxu0 0
    %354 = vmatpush2.bf16.msra.mxu0 0
    %355 = vmatprep.subr.bf16.mxu0 0
    %356 = vmatpush2.bf16.msra.mxu0 0
    %357 = vmatprep.subr.bf16.mxu0 0
    %358 = vmatpush2.bf16.msra.mxu0 0
    %359 = vmatprep.subr.bf16.mxu0 0
    %360 = vmatpush2.bf16.msra.mxu0 0
    %361 = vmatprep.subr.bf16.mxu0 0
    %362 = vmatpush2.bf16.msra.mxu0 0
    %363 = vmatprep.subr.bf16.mxu0 0
    %364 = vmatpush2.bf16.msra.mxu0 0
    %365 = vmatprep.subr.bf16.mxu0 0
    %366 = vmatpush2.bf16.msra.mxu0 0
    %367 = vmatprep.subr.bf16.mxu0 0
    %368 = vmatpush2.bf16.msra.mxu0 0
    %369 = vmatprep.mubr.bf16.mxu0 0
    %370 = vmatmul.mubr.bf16.gmra.mxu0 %v173
    %v371 = vpop.f32.mrf.mxu0
    %v372 = vadd.f32 0.0, %v371
    %v373 = vpop.f32.mrf.mxu0
    %v374 = vpop.f32.mrf.mxu0
    %v375 = vadd.f32 0.0, %v374
    %v376 = vpop.f32.mrf.mxu0
    %377 = vmatprep.mubr.bf16.mxu0 0
    %378 = vmatmul.mubr.bf16.gmra.mxu0 %v176
    %v379 = vpop.f32.mrf.mxu0
    %v380 = vadd.f32 0.0, %v379
    %v381 = vpop.f32.mrf.mxu0
    %v382 = vpop.f32.mrf.mxu0
    %v383 = vadd.f32 0.0, %v382
    %v384 = vpop.f32.mrf.mxu0
    %385 = vmatprep.mubr.bf16.mxu0 0
    %386 = vmatmul.mubr.bf16.gmra.mxu0 %v179
    %v387 = vpop.f32.mrf.mxu0
    %v388 = vadd.f32 0.0, %v387
    %v389 = vpop.f32.mrf.mxu0
    %v390 = vpop.f32.mrf.mxu0
    %v391 = vadd.f32 0.0, %v390
    %v392 = vpop.f32.mrf.mxu0
    %393 = vmatprep.mubr.bf16.mxu0 0
    %394 = vmatmul.mubr.bf16.gmra.mxu0 %v332
    %v395 = vpop.f32.mrf.mxu0
    %v396 = vadd.f32 0.0, %v395
    %v397 = vpop.f32.mrf.mxu0
    %v398 = vpop.f32.mrf.mxu0
    %v399 = vadd.f32 0.0, %v398
    %v400 = vpop.f32.mrf.mxu0
    %401 = vmatprep.mubr.bf16.mxu0 0
    %402 = vmatmul.mubr.bf16.gmra.mxu0 %v182
    %v403 = vpop.f32.mrf.mxu0
    %v404 = vadd.f32 0.0, %v403
    %v405 = vpop.f32.mrf.mxu0
    %v406 = vpop.f32.mrf.mxu0
    %v407 = vadd.f32 0.0, %v406
    %v408 = vpop.f32.mrf.mxu0
    %409 = vmatprep.mubr.bf16.mxu0 0
    %410 = vmatmul.mubr.bf16.gmra.mxu0 %v185
    %v411 = vpop.f32.mrf.mxu0
    %v412 = vadd.f32 0.0, %v411
    %v413 = vpop.f32.mrf.mxu0
    %v414 = vpop.f32.mrf.mxu0
    %v415 = vadd.f32 0.0, %v414
    %v416 = vpop.f32.mrf.mxu0
    %417 = vmatprep.mubr.bf16.mxu0 0
    %418 = vmatmul.mubr.bf16.gmra.mxu0 %v188
    %v419 = vpop.f32.mrf.mxu0
    %v420 = vadd.f32 0.0, %v419
    %v421 = vpop.f32.mrf.mxu0
    %v422 = vpop.f32.mrf.mxu0
    %v423 = vadd.f32 0.0, %v422
    %v424 = vpop.f32.mrf.mxu0
    %425 = vmatprep.mubr.bf16.mxu0 0
    %426 = vmatmul.mubr.bf16.gmra.mxu0 %v335
    %v427 = vpop.f32.mrf.mxu0
    %v428 = vadd.f32 0.0, %v427
    %v429 = vpop.f32.mrf.mxu0
    %v430 = vpop.f32.mrf.mxu0
    %v431 = vadd.f32 0.0, %v430
    %v432 = vpop.f32.mrf.mxu0
    %433 = vdwg.mxu0
    %v434 = vpack.c.bf16 %v375, %v372
    %v435 = vpack.c.bf16 %v383, %v380
    %v436 = vpack.c.bf16 %v391, %v388
    %v437 = vpack.c.bf16 %v399, %v396
    %v438 = vpack.c.bf16 %v407, %v404
    %v439 = vpack.c.bf16 %v415, %v412
    %v440 = vpack.c.bf16 %v423, %v420
    %v441 = vpack.c.bf16 %v431, %v428
    %v442 = vld [vmem:[#allocation8] sm:$0xf]
    %v443 = vld [vmem:[#allocation8 + $0x4] sm:$0xf]
    %v444 = vld [vmem:[#allocation8 + $0x8] sm:$0xf]
    %v445 = vld [vmem:[#allocation8 + $0xc] sm:$0xf]
    %v446 = vld [vmem:[#allocation8 + $0x10] sm:$0xf]
    %v447 = vld [vmem:[#allocation8 + $0x14] sm:$0xf]
    %v448 = vld [vmem:[#allocation8 + $0x18] sm:$0xf]
    %v449 = vld [vmem:[#allocation8 + $0x1c] sm:$0xf]
    %v458 = vunpack.c.l.b16 %v442
    %v459 = vunpack.c.l.b16 %v443
    %v460 = vunpack.c.l.b16 %v444
    %v461 = vunpack.c.l.b16 %v445
    %v462 = vunpack.c.l.b16 %v446
    %v463 = vunpack.c.l.b16 %v447
    %v464 = vunpack.c.l.b16 %v448
    %v465 = vunpack.c.l.b16 %v449
    %v466 = vpack.c.b16 %v459, %v458
    %v467 = vpack.c.b16 %v461, %v460
    %v468 = vpack.c.b16 %v463, %v462
    %v469 = vpack.c.b16 %v465, %v464
    %474 = vmatprep.subr.bf16.mxu0 0
    %475 = vmatpush1.bf16.msra.mxu0 0
    %476 = vmatprep.subr.bf16.mxu0 0
    %477 = vmatpush1.bf16.msra.mxu0 0
    %478 = vmatprep.subr.bf16.mxu0 0
    %479 = vmatpush1.bf16.msra.mxu0 0
    %480 = vmatprep.subr.bf16.mxu0 0
    %481 = vmatpush1.bf16.msra.mxu0 0
    %482 = vmatprep.subr.bf16.mxu0 0
    %483 = vmatpush1.bf16.msra.mxu0 %v469
    %484 = vmatprep.subr.bf16.mxu0 0
    %485 = vmatpush1.bf16.msra.mxu0 %v468
    %486 = vmatprep.subr.bf16.mxu0 0
    %487 = vmatpush1.bf16.msra.mxu0 %v467
    %488 = vmatprep.subr.bf16.mxu0 0
    %489 = vmatpush1.bf16.msra.mxu0 %v466
    %490 = vmatprep.subr.bf16.mxu0 0
    %491 = vmatpush2.bf16.msra.mxu0 0
    %492 = vmatprep.subr.bf16.mxu0 0
    %493 = vmatpush2.bf16.msra.mxu0 0
    %494 = vmatprep.subr.bf16.mxu0 0
    %495 = vmatpush2.bf16.msra.mxu0 0
    %496 = vmatprep.subr.bf16.mxu0 0
    %497 = vmatpush2.bf16.msra.mxu0 0
    %498 = vmatprep.subr.bf16.mxu0 0
    %499 = vmatpush2.bf16.msra.mxu0 0
    %500 = vmatprep.subr.bf16.mxu0 0
    %501 = vmatpush2.bf16.msra.mxu0 0
    %502 = vmatprep.subr.bf16.mxu0 0
    %503 = vmatpush2.bf16.msra.mxu0 0
    %504 = vmatprep.subr.bf16.mxu0 0
    %505 = vmatpush2.bf16.msra.mxu0 0
    %506 = vmatprep.mubr.bf16.mxu0 0
    %507 = vmatmul.mubr.bf16.gmra.mxu0 %v173
    %v508 = vpop.f32.mrf.mxu0
    %v509 = vadd.f32 0.0, %v508
    %v510 = vpop.f32.mrf.mxu0
    %v511 = vpop.f32.mrf.mxu0
    %v512 = vadd.f32 0.0, %v511
    %v513 = vpop.f32.mrf.mxu0
    %514 = vmatprep.mubr.bf16.mxu0 0
    %515 = vmatmul.mubr.bf16.gmra.mxu0 %v176
    %v516 = vpop.f32.mrf.mxu0
    %v517 = vadd.f32 0.0, %v516
    %v518 = vpop.f32.mrf.mxu0
    %v519 = vpop.f32.mrf.mxu0
    %v520 = vadd.f32 0.0, %v519
    %v521 = vpop.f32.mrf.mxu0
    %522 = vmatprep.mubr.bf16.mxu0 0
    %523 = vmatmul.mubr.bf16.gmra.mxu0 %v179
    %v524 = vpop.f32.mrf.mxu0
    %v525 = vadd.f32 0.0, %v524
    %v526 = vpop.f32.mrf.mxu0
    %v527 = vpop.f32.mrf.mxu0
    %v528 = vadd.f32 0.0, %v527
    %v529 = vpop.f32.mrf.mxu0
    %530 = vmatprep.mubr.bf16.mxu0 0
    %531 = vmatmul.mubr.bf16.gmra.mxu0 %v332
    %v532 = vpop.f32.mrf.mxu0
    %v533 = vadd.f32 0.0, %v532
    %v534 = vpop.f32.mrf.mxu0
    %v535 = vpop.f32.mrf.mxu0
    %v536 = vadd.f32 0.0, %v535
    %v537 = vpop.f32.mrf.mxu0
    %538 = vmatprep.mubr.bf16.mxu0 0
    %539 = vmatmul.mubr.bf16.gmra.mxu0 %v182
    %v540 = vpop.f32.mrf.mxu0
    %v541 = vadd.f32 0.0, %v540
    %v542 = vpop.f32.mrf.mxu0
    %v543 = vpop.f32.mrf.mxu0
    %v544 = vadd.f32 0.0, %v543
    %v545 = vpop.f32.mrf.mxu0
    %546 = vmatprep.mubr.bf16.mxu0 0
    %547 = vmatmul.mubr.bf16.gmra.mxu0 %v185
    %v548 = vpop.f32.mrf.mxu0
    %v549 = vadd.f32 0.0, %v548
    %v550 = vpop.f32.mrf.mxu0
    %v551 = vpop.f32.mrf.mxu0
    %v552 = vadd.f32 0.0, %v551
    %v553 = vpop.f32.mrf.mxu0
    %554 = vmatprep.mubr.bf16.mxu0 0
    %555 = vmatmul.mubr.bf16.gmra.mxu0 %v188
    %v556 = vpop.f32.mrf.mxu0
    %v557 = vadd.f32 0.0, %v556
    %v558 = vpop.f32.mrf.mxu0
    %v559 = vpop.f32.mrf.mxu0
    %v560 = vadd.f32 0.0, %v559
    %v561 = vpop.f32.mrf.mxu0
    %562 = vmatprep.mubr.bf16.mxu0 0
    %563 = vmatmul.mubr.bf16.gmra.mxu0 %v335
    %v564 = vpop.f32.mrf.mxu0
    %v565 = vadd.f32 0.0, %v564
    %v566 = vpop.f32.mrf.mxu0
    %v567 = vpop.f32.mrf.mxu0
    %v568 = vadd.f32 0.0, %v567
    %v569 = vpop.f32.mrf.mxu0
    %570 = vdwg.mxu0
    %v571 = vpack.c.bf16 %v512, %v509
    %v572 = vpack.c.bf16 %v520, %v517
    %v573 = vpack.c.bf16 %v528, %v525
    %v574 = vpack.c.bf16 %v536, %v533
    %v575 = vpack.c.bf16 %v544, %v541
    %v576 = vpack.c.bf16 %v552, %v549
    %v577 = vpack.c.bf16 %v560, %v557
    %v578 = vpack.c.bf16 %v568, %v565
    %585 = vrot.lane.b32.xlu0 %v283, 120
    %v586 = vpop.permute.xlu0 %585
    %587 = vrot.lane.b32.xlu0 %v284, 120
    %v588 = vpop.permute.xlu0 %587
    %589 = vrot.lane.b32.xlu0 %v285, 120
    %v590 = vpop.permute.xlu0 %589
    %591 = vrot.lane.b32.xlu0 %v286, 120
    %v592 = vpop.permute.xlu0 %591
    %593 = vrot.lane.b32.xlu0 %v287, 120
    %v594 = vpop.permute.xlu0 %593
    %595 = vrot.lane.b32.xlu0 %v288, 120
    %v596 = vpop.permute.xlu0 %595
    %597 = vrot.lane.b32.xlu0 %v283, 112
    %v598 = vpop.permute.xlu0 %597
    %599 = vrot.lane.b32.xlu0 %v284, 112
    %v600 = vpop.permute.xlu0 %599
    %601 = vrot.lane.b32.xlu0 %v285, 112
    %v602 = vpop.permute.xlu0 %601
    %603 = vrot.lane.b32.xlu0 %v286, 112
    %v604 = vpop.permute.xlu0 %603
    %605 = vrot.lane.b32.xlu0 %v287, 112
    %v606 = vpop.permute.xlu0 %605
    %607 = vrot.lane.b32.xlu0 %v288, 112
    %v608 = vpop.permute.xlu0 %607
    %609 = vrot.lane.b32.xlu0 %v283, 104
    %v610 = vpop.permute.xlu0 %609
    %611 = vrot.lane.b32.xlu0 %v284, 104
    %v612 = vpop.permute.xlu0 %611
    %613 = vrot.lane.b32.xlu0 %v285, 104
    %v614 = vpop.permute.xlu0 %613
    %615 = vrot.lane.b32.xlu0 %v286, 104
    %v616 = vpop.permute.xlu0 %615
    %617 = vrot.lane.b32.xlu0 %v287, 104
    %v618 = vpop.permute.xlu0 %617
    %619 = vrot.lane.b32.xlu0 %v288, 104
    %v620 = vpop.permute.xlu0 %619
    %621 = vrot.lane.b32.xlu0 %v283, 96
    %v622 = vpop.permute.xlu0 %621
    %623 = vrot.lane.b32.xlu0 %v284, 96
    %v624 = vpop.permute.xlu0 %623
    %625 = vrot.lane.b32.xlu0 %v285, 96
    %v626 = vpop.permute.xlu0 %625
    %627 = vrot.lane.b32.xlu0 %v286, 96
    %v628 = vpop.permute.xlu0 %627
    %629 = vrot.lane.b32.xlu0 %v287, 96
    %v630 = vpop.permute.xlu0 %629
    %631 = vrot.lane.b32.xlu0 %v288, 96
    %v632 = vpop.permute.xlu0 %631
    %633 = vrot.lane.b32.xlu0 %v283, 88
    %v634 = vpop.permute.xlu0 %633
    %635 = vrot.lane.b32.xlu0 %v284, 88
    %v636 = vpop.permute.xlu0 %635
    %637 = vrot.lane.b32.xlu0 %v285, 88
    %v638 = vpop.permute.xlu0 %637
    %639 = vrot.lane.b32.xlu0 %v286, 88
    %v640 = vpop.permute.xlu0 %639
    %641 = vrot.lane.b32.xlu0 %v287, 88
    %v642 = vpop.permute.xlu0 %641
    %643 = vrot.lane.b32.xlu0 %v288, 88
    %v644 = vpop.permute.xlu0 %643
    %645 = vrot.lane.b32.xlu0 %v283, 80
    %v646 = vpop.permute.xlu0 %645
    %647 = vrot.lane.b32.xlu0 %v284, 80
    %v648 = vpop.permute.xlu0 %647
    %649 = vrot.lane.b32.xlu0 %v285, 80
    %v650 = vpop.permute.xlu0 %649
    %651 = vrot.lane.b32.xlu0 %v286, 80
    %v652 = vpop.permute.xlu0 %651
    %653 = vrot.lane.b32.xlu0 %v287, 80
    %v654 = vpop.permute.xlu0 %653
    %655 = vrot.lane.b32.xlu0 %v288, 80
    %v656 = vpop.permute.xlu0 %655
    %657 = vrot.lane.b32.xlu0 %v283, 72
    %v658 = vpop.permute.xlu0 %657
    %659 = vrot.lane.b32.xlu0 %v284, 72
    %v660 = vpop.permute.xlu0 %659
    %661 = vrot.lane.b32.xlu0 %v285, 72
    %v662 = vpop.permute.xlu0 %661
    %663 = vrot.lane.b32.xlu0 %v286, 72
    %v664 = vpop.permute.xlu0 %663
    %665 = vrot.lane.b32.xlu0 %v287, 72
    %v666 = vpop.permute.xlu0 %665
    %667 = vrot.lane.b32.xlu0 %v288, 72
    %v668 = vpop.permute.xlu0 %667
    %677 = vrot.lane.b32.xlu0 %v434, 120
    %v678 = vpop.permute.xlu0 %677
    %679 = vrot.lane.b32.xlu0 %v435, 120
    %v680 = vpop.permute.xlu0 %679
    %681 = vrot.lane.b32.xlu0 %v436, 120
    %v682 = vpop.permute.xlu0 %681
    %683 = vrot.lane.b32.xlu0 %v437, 120
    %v684 = vpop.permute.xlu0 %683
    %685 = vrot.lane.b32.xlu0 %v438, 120
    %v686 = vpop.permute.xlu0 %685
    %687 = vrot.lane.b32.xlu0 %v439, 120
    %v688 = vpop.permute.xlu0 %687
    %689 = vrot.lane.b32.xlu0 %v440, 120
    %v690 = vpop.permute.xlu0 %689
    %691 = vrot.lane.b32.xlu0 %v441, 120
    %v692 = vpop.permute.xlu0 %691
    %693 = vrot.lane.b32.xlu0 %v434, 112
    %v694 = vpop.permute.xlu0 %693
    %695 = vrot.lane.b32.xlu0 %v435, 112
    %v696 = vpop.permute.xlu0 %695
    %697 = vrot.lane.b32.xlu0 %v436, 112
    %v698 = vpop.permute.xlu0 %697
    %699 = vrot.lane.b32.xlu0 %v437, 112
    %v700 = vpop.permute.xlu0 %699
    %701 = vrot.lane.b32.xlu0 %v438, 112
    %v702 = vpop.permute.xlu0 %701
    %703 = vrot.lane.b32.xlu0 %v439, 112
    %v704 = vpop.permute.xlu0 %703
    %705 = vrot.lane.b32.xlu0 %v440, 112
    %v706 = vpop.permute.xlu0 %705
    %707 = vrot.lane.b32.xlu0 %v441, 112
    %v708 = vpop.permute.xlu0 %707
    %709 = vrot.lane.b32.xlu0 %v434, 104
    %v710 = vpop.permute.xlu0 %709
    %711 = vrot.lane.b32.xlu0 %v435, 104
    %v712 = vpop.permute.xlu0 %711
    %713 = vrot.lane.b32.xlu0 %v436, 104
    %v714 = vpop.permute.xlu0 %713
    %715 = vrot.lane.b32.xlu0 %v437, 104
    %v716 = vpop.permute.xlu0 %715
    %717 = vrot.lane.b32.xlu0 %v438, 104
    %v718 = vpop.permute.xlu0 %717
    %719 = vrot.lane.b32.xlu0 %v439, 104
    %v720 = vpop.permute.xlu0 %719
    %721 = vrot.lane.b32.xlu0 %v440, 104
    %v722 = vpop.permute.xlu0 %721
    %723 = vrot.lane.b32.xlu0 %v441, 104
    %v724 = vpop.permute.xlu0 %723
    %725 = vrot.lane.b32.xlu0 %v434, 96
    %v726 = vpop.permute.xlu0 %725
    %727 = vrot.lane.b32.xlu0 %v435, 96
    %v728 = vpop.permute.xlu0 %727
    %729 = vrot.lane.b32.xlu0 %v436, 96
    %v730 = vpop.permute.xlu0 %729
    %731 = vrot.lane.b32.xlu0 %v437, 96
    %v732 = vpop.permute.xlu0 %731
    %733 = vrot.lane.b32.xlu0 %v438, 96
    %v734 = vpop.permute.xlu0 %733
    %735 = vrot.lane.b32.xlu0 %v439, 96
    %v736 = vpop.permute.xlu0 %735
    %737 = vrot.lane.b32.xlu0 %v440, 96
    %v738 = vpop.permute.xlu0 %737
    %739 = vrot.lane.b32.xlu0 %v441, 96
    %v740 = vpop.permute.xlu0 %739
    %741 = vrot.lane.b32.xlu0 %v434, 88
    %v742 = vpop.permute.xlu0 %741
    %743 = vrot.lane.b32.xlu0 %v435, 88
    %v744 = vpop.permute.xlu0 %743
    %745 = vrot.lane.b32.xlu0 %v436, 88
    %v746 = vpop.permute.xlu0 %745
    %747 = vrot.lane.b32.xlu0 %v437, 88
    %v748 = vpop.permute.xlu0 %747
    %749 = vrot.lane.b32.xlu0 %v438, 88
    %v750 = vpop.permute.xlu0 %749
    %751 = vrot.lane.b32.xlu0 %v439, 88
    %v752 = vpop.permute.xlu0 %751
    %753 = vrot.lane.b32.xlu0 %v440, 88
    %v754 = vpop.permute.xlu0 %753
    %755 = vrot.lane.b32.xlu0 %v441, 88
    %v756 = vpop.permute.xlu0 %755
    %757 = vrot.lane.b32.xlu0 %v434, 80
    %v758 = vpop.permute.xlu0 %757
    %759 = vrot.lane.b32.xlu0 %v435, 80
    %v760 = vpop.permute.xlu0 %759
    %761 = vrot.lane.b32.xlu0 %v436, 80
    %v762 = vpop.permute.xlu0 %761
    %763 = vrot.lane.b32.xlu0 %v437, 80
    %v764 = vpop.permute.xlu0 %763
    %765 = vrot.lane.b32.xlu0 %v438, 80
    %v766 = vpop.permute.xlu0 %765
    %767 = vrot.lane.b32.xlu0 %v439, 80
    %v768 = vpop.permute.xlu0 %767
    %769 = vrot.lane.b32.xlu0 %v440, 80
    %v770 = vpop.permute.xlu0 %769
    %771 = vrot.lane.b32.xlu0 %v441, 80
    %v772 = vpop.permute.xlu0 %771
    %773 = vrot.lane.b32.xlu0 %v434, 72
    %v774 = vpop.permute.xlu0 %773
    %775 = vrot.lane.b32.xlu0 %v435, 72
    %v776 = vpop.permute.xlu0 %775
    %777 = vrot.lane.b32.xlu0 %v436, 72
    %v778 = vpop.permute.xlu0 %777
    %779 = vrot.lane.b32.xlu0 %v437, 72
    %v780 = vpop.permute.xlu0 %779
    %781 = vrot.lane.b32.xlu0 %v438, 72
    %v782 = vpop.permute.xlu0 %781
    %783 = vrot.lane.b32.xlu0 %v439, 72
    %v784 = vpop.permute.xlu0 %783
    %785 = vrot.lane.b32.xlu0 %v440, 72
    %v786 = vpop.permute.xlu0 %785
    %787 = vrot.lane.b32.xlu0 %v441, 72
    %v788 = vpop.permute.xlu0 %787
    %797 = vrot.lane.b32.xlu0 %v571, 120
    %v798 = vpop.permute.xlu0 %797
    %799 = vrot.lane.b32.xlu0 %v572, 120
    %v800 = vpop.permute.xlu0 %799
    %801 = vrot.lane.b32.xlu0 %v573, 120
    %v802 = vpop.permute.xlu0 %801
    %803 = vrot.lane.b32.xlu0 %v574, 120
    %v804 = vpop.permute.xlu0 %803
    %805 = vrot.lane.b32.xlu0 %v575, 120
    %v806 = vpop.permute.xlu0 %805
    %807 = vrot.lane.b32.xlu0 %v576, 120
    %v808 = vpop.permute.xlu0 %807
    %809 = vrot.lane.b32.xlu0 %v577, 120
    %v810 = vpop.permute.xlu0 %809
    %811 = vrot.lane.b32.xlu0 %v578, 120
    %v812 = vpop.permute.xlu0 %811
    %821 = vrot.lane.b32.xlu0 %v571, 112
    %v822 = vpop.permute.xlu0 %821
    %823 = vrot.lane.b32.xlu0 %v572, 112
    %v824 = vpop.permute.xlu0 %823
    %825 = vrot.lane.b32.xlu0 %v573, 112
    %v826 = vpop.permute.xlu0 %825
    %827 = vrot.lane.b32.xlu0 %v574, 112
    %v828 = vpop.permute.xlu0 %827
    %829 = vrot.lane.b32.xlu0 %v575, 112
    %v830 = vpop.permute.xlu0 %829
    %831 = vrot.lane.b32.xlu0 %v576, 112
    %v832 = vpop.permute.xlu0 %831
    %833 = vrot.lane.b32.xlu0 %v577, 112
    %v834 = vpop.permute.xlu0 %833
    %835 = vrot.lane.b32.xlu0 %v578, 112
    %v836 = vpop.permute.xlu0 %835
    %845 = vrot.lane.b32.xlu0 %v571, 104
    %v846 = vpop.permute.xlu0 %845
    %847 = vrot.lane.b32.xlu0 %v572, 104
    %v848 = vpop.permute.xlu0 %847
    %849 = vrot.lane.b32.xlu0 %v573, 104
    %v850 = vpop.permute.xlu0 %849
    %851 = vrot.lane.b32.xlu0 %v574, 104
    %v852 = vpop.permute.xlu0 %851
    %853 = vrot.lane.b32.xlu0 %v575, 104
    %v854 = vpop.permute.xlu0 %853
    %855 = vrot.lane.b32.xlu0 %v576, 104
    %v856 = vpop.permute.xlu0 %855
    %857 = vrot.lane.b32.xlu0 %v577, 104
    %v858 = vpop.permute.xlu0 %857
    %859 = vrot.lane.b32.xlu0 %v578, 104
    %v860 = vpop.permute.xlu0 %859
    %869 = vrot.lane.b32.xlu0 %v571, 96
    %v870 = vpop.permute.xlu0 %869
    %871 = vrot.lane.b32.xlu0 %v572, 96
    %v872 = vpop.permute.xlu0 %871
    %873 = vrot.lane.b32.xlu0 %v573, 96
    %v874 = vpop.permute.xlu0 %873
    %875 = vrot.lane.b32.xlu0 %v574, 96
    %v876 = vpop.permute.xlu0 %875
    %877 = vrot.lane.b32.xlu0 %v575, 96
    %v878 = vpop.permute.xlu0 %877
    %879 = vrot.lane.b32.xlu0 %v576, 96
    %v880 = vpop.permute.xlu0 %879
    %881 = vrot.lane.b32.xlu0 %v577, 96
    %v882 = vpop.permute.xlu0 %881
    %883 = vrot.lane.b32.xlu0 %v578, 96
    %v884 = vpop.permute.xlu0 %883
    %893 = vrot.lane.b32.xlu0 %v571, 88
    %v894 = vpop.permute.xlu0 %893
    %895 = vrot.lane.b32.xlu0 %v572, 88
    %v896 = vpop.permute.xlu0 %895
    %897 = vrot.lane.b32.xlu0 %v573, 88
    %v898 = vpop.permute.xlu0 %897
    %899 = vrot.lane.b32.xlu0 %v574, 88
    %v900 = vpop.permute.xlu0 %899
    %901 = vrot.lane.b32.xlu0 %v575, 88
    %v902 = vpop.permute.xlu0 %901
    %903 = vrot.lane.b32.xlu0 %v576, 88
    %v904 = vpop.permute.xlu0 %903
    %905 = vrot.lane.b32.xlu0 %v577, 88
    %v906 = vpop.permute.xlu0 %905
    %907 = vrot.lane.b32.xlu0 %v578, 88
    %v908 = vpop.permute.xlu0 %907
    %917 = vrot.lane.b32.xlu0 %v571, 80
    %v918 = vpop.permute.xlu0 %917
    %919 = vrot.lane.b32.xlu0 %v572, 80
    %v920 = vpop.permute.xlu0 %919
    %921 = vrot.lane.b32.xlu0 %v573, 80
    %v922 = vpop.permute.xlu0 %921
    %923 = vrot.lane.b32.xlu0 %v574, 80
    %v924 = vpop.permute.xlu0 %923
    %925 = vrot.lane.b32.xlu0 %v575, 80
    %v926 = vpop.permute.xlu0 %925
    %927 = vrot.lane.b32.xlu0 %v576, 80
    %v928 = vpop.permute.xlu0 %927
    %929 = vrot.lane.b32.xlu0 %v577, 80
    %v930 = vpop.permute.xlu0 %929
    %931 = vrot.lane.b32.xlu0 %v578, 80
    %v932 = vpop.permute.xlu0 %931
    %941 = vrot.lane.b32.xlu0 %v571, 72
    %v942 = vpop.permute.xlu0 %941
    %943 = vrot.lane.b32.xlu0 %v572, 72
    %v944 = vpop.permute.xlu0 %943
    %945 = vrot.lane.b32.xlu0 %v573, 72
    %v946 = vpop.permute.xlu0 %945
    %947 = vrot.lane.b32.xlu0 %v574, 72
    %v948 = vpop.permute.xlu0 %947
    %949 = vrot.lane.b32.xlu0 %v575, 72
    %v950 = vpop.permute.xlu0 %949
    %951 = vrot.lane.b32.xlu0 %v576, 72
    %v952 = vpop.permute.xlu0 %951
    %953 = vrot.lane.b32.xlu0 %v577, 72
    %v954 = vpop.permute.xlu0 %953
    %955 = vrot.lane.b32.xlu0 %v578, 72
    %v956 = vpop.permute.xlu0 %955
    %vm965 = vcmask 64512
    %v967 = vsel %vm965, %v283, 0
    %v970 = vsel %vm965, %v284, 0
    %v973 = vsel %vm965, %v285, 0
    %v976 = vsel %vm965, %v434, 0
    %v979 = vsel %vm965, %v435, 0
    %v982 = vsel %vm965, %v436, 0
    %v985 = vsel %vm965, %v437, 0
    %987 = vmatprep.subr.bf16.mxu0 0
    %988 = vmatpush1.bf16.xpose.msra.mxu0 0
    %989 = vmatprep.subr.bf16.mxu0 0
    %990 = vmatpush1.bf16.xpose.msra.mxu0 0
    %991 = vmatprep.subr.bf16.mxu0 0
    %992 = vmatpush1.bf16.xpose.msra.mxu0 0
    %993 = vmatprep.subr.bf16.mxu0 0
    %994 = vmatpush1.bf16.xpose.msra.mxu0 0
    %995 = vmatprep.subr.bf16.mxu0 0
    %996 = vmatpush1.bf16.xpose.msra.mxu0 %v985
    %997 = vmatprep.subr.bf16.mxu0 0
    %998 = vmatpush1.bf16.xpose.msra.mxu0 %v982
    %999 = vmatprep.subr.bf16.mxu0 0
    %1000 = vmatpush1.bf16.xpose.msra.mxu0 %v979
    %1001 = vmatprep.subr.bf16.mxu0 0
    %1002 = vmatpush1.bf16.xpose.msra.mxu0 %v976
    %1003 = vmatprep.subr.bf16.mxu0 0
    %1004 = vmatpush2.bf16.xpose.msra.mxu0 0
    %1005 = vmatprep.subr.bf16.mxu0 0
    %1006 = vmatpush2.bf16.xpose.msra.mxu0 0
    %1007 = vmatprep.subr.bf16.mxu0 0
    %1008 = vmatpush2.bf16.xpose.msra.mxu0 0
    %1009 = vmatprep.subr.bf16.mxu0 0
    %1010 = vmatpush2.bf16.xpose.msra.mxu0 0
    %1011 = vmatprep.subr.bf16.mxu0 0
    %1012 = vmatpush2.bf16.xpose.msra.mxu0 0
    %1013 = vmatprep.subr.bf16.mxu0 0
    %1014 = vmatpush2.bf16.xpose.msra.mxu0 0
    %1015 = vmatprep.subr.bf16.mxu0 0
    %1016 = vmatpush2.bf16.xpose.msra.mxu0 0
    %1017 = vmatprep.subr.bf16.mxu0 0
    %1018 = vmatpush2.bf16.xpose.msra.mxu0 0
    %1019 = vmatprep.mubr.bf16.mxu0 0
    %1020 = vmatmul.mubr.bf16.gmra.mxu0 %v967
    %v1021 = vpop.f32.mrf.mxu0
    %v1022 = vadd.f32 0.0, %v1021
    %v1023 = vpop.f32.mrf.mxu0
    %v1024 = vpop.f32.mrf.mxu0
    %v1025 = vadd.f32 0.0, %v1024
    %v1026 = vpop.f32.mrf.mxu0
    %1027 = vmatprep.mubr.bf16.mxu0 0
    %1028 = vmatmul.mubr.bf16.gmra.mxu0 %v970
    %v1029 = vpop.f32.mrf.mxu0
    %v1030 = vadd.f32 0.0, %v1029
    %v1031 = vpop.f32.mrf.mxu0
    %v1032 = vpop.f32.mrf.mxu0
    %v1033 = vadd.f32 0.0, %v1032
    %v1034 = vpop.f32.mrf.mxu0
    %1035 = vmatprep.mubr.bf16.mxu0 0
    %1036 = vmatmul.mubr.bf16.gmra.mxu0 %v973
    %v1037 = vpop.f32.mrf.mxu0
    %v1038 = vadd.f32 0.0, %v1037
    %v1039 = vpop.f32.mrf.mxu0
    %v1040 = vpop.f32.mrf.mxu0
    %v1041 = vadd.f32 0.0, %v1040
    %v1042 = vpop.f32.mrf.mxu0
    %1043 = vdwg.mxu0
    %v1045 = vsel %vm965, %v286, 0
    %v1048 = vsel %vm965, %v287, 0
    %v1051 = vsel %vm965, %v288, 0
    %v1054 = vsel %vm965, %v438, 0
    %v1057 = vsel %vm965, %v439, 0
    %v1060 = vsel %vm965, %v440, 0
    %v1063 = vsel %vm965, %v441, 0
    %1065 = vmatprep.subr.bf16.mxu0 0
    %1066 = vmatpush1.bf16.xpose.msra.mxu0 0
    %1067 = vmatprep.subr.bf16.mxu0 0
    %1068 = vmatpush1.bf16.xpose.msra.mxu0 0
    %1069 = vmatprep.subr.bf16.mxu0 0
    %1070 = vmatpush1.bf16.xpose.msra.mxu0 0
    %1071 = vmatprep.subr.bf16.mxu0 0
    %1072 = vmatpush1.bf16.xpose.msra.mxu0 0
    %1073 = vmatprep.subr.bf16.mxu0 0
    %1074 = vmatpush1.bf16.xpose.msra.mxu0 %v1063
    %1075 = vmatprep.subr.bf16.mxu0 0
    %1076 = vmatpush1.bf16.xpose.msra.mxu0 %v1060
    %1077 = vmatprep.subr.bf16.mxu0 0
    %1078 = vmatpush1.bf16.xpose.msra.mxu0 %v1057
    %1079 = vmatprep.subr.bf16.mxu0 0
    %1080 = vmatpush1.bf16.xpose.msra.mxu0 %v1054
    %1081 = vmatprep.subr.bf16.mxu0 0
    %1082 = vmatpush2.bf16.xpose.msra.mxu0 0
    %1083 = vmatprep.subr.bf16.mxu0 0
    %1084 = vmatpush2.bf16.xpose.msra.mxu0 0
    %1085 = vmatprep.subr.bf16.mxu0 0
    %1086 = vmatpush2.bf16.xpose.msra.mxu0 0
    %1087 = vmatprep.subr.bf16.mxu0 0
    %1088 = vmatpush2.bf16.xpose.msra.mxu0 0
    %1089 = vmatprep.subr.bf16.mxu0 0
    %1090 = vmatpush2.bf16.xpose.msra.mxu0 0
    %1091 = vmatprep.subr.bf16.mxu0 0
    %1092 = vmatpush2.bf16.xpose.msra.mxu0 0
    %1093 = vmatprep.subr.bf16.mxu0 0
    %1094 = vmatpush2.bf16.xpose.msra.mxu0 0
    %1095 = vmatprep.subr.bf16.mxu0 0
    %1096 = vmatpush2.bf16.xpose.msra.mxu0 0
    %1097 = vmatprep.mubr.bf16.mxu0 0
    %1098 = vmatmul.mubr.bf16.gmra.mxu0 %v1045
    %v1099 = vpop.f32.mrf.mxu0
    %v1100 = vadd.f32 0.0, %v1099
    %v1101 = vpop.f32.mrf.mxu0
    %v1102 = vpop.f32.mrf.mxu0
    %v1103 = vadd.f32 0.0, %v1102
    %v1104 = vpop.f32.mrf.mxu0
    %1105 = vmatprep.mubr.bf16.mxu0 0
    %1106 = vmatmul.mubr.bf16.gmra.mxu0 %v1048
    %v1107 = vpop.f32.mrf.mxu0
    %v1108 = vadd.f32 0.0, %v1107
    %v1109 = vpop.f32.mrf.mxu0
    %v1110 = vpop.f32.mrf.mxu0
    %v1111 = vadd.f32 0.0, %v1110
    %v1112 = vpop.f32.mrf.mxu0
    %1113 = vmatprep.mubr.bf16.mxu0 0
    %1114 = vmatmul.mubr.bf16.gmra.mxu0 %v1051
    %v1115 = vpop.f32.mrf.mxu0
    %v1116 = vadd.f32 0.0, %v1115
    %v1117 = vpop.f32.mrf.mxu0
    %v1118 = vpop.f32.mrf.mxu0
    %v1119 = vadd.f32 0.0, %v1118
    %v1120 = vpop.f32.mrf.mxu0
    %1121 = vdwg.mxu0
    %v1123 = vsel %vm965, %v586, 0
    %v1126 = vsel %vm965, %v588, 0
    %v1129 = vsel %vm965, %v590, 0
    %v1132 = vsel %vm965, %v678, 0
    %v1135 = vsel %vm965, %v680, 0
    %v1138 = vsel %vm965, %v682, 0
    %v1141 = vsel %vm965, %v684, 0
    %1143 = vmatprep.subr.bf16.mxu0 0
    %1144 = vmatpush1.bf16.xpose.msra.mxu0 0
    %1145 = vmatprep.subr.bf16.mxu0 0
    %1146 = vmatpush1.bf16.xpose.msra.mxu0 0
    %1147 = vmatprep.subr.bf16.mxu0 0
    %1148 = vmatpush1.bf16.xpose.msra.mxu0 0
    %1149 = vmatprep.subr.bf16.mxu0 0
    %1150 = vmatpush1.bf16.xpose.msra.mxu0 0
    %1151 = vmatprep.subr.bf16.mxu0 0
    %1152 = vmatpush1.bf16.xpose.msra.mxu0 %v1141
    %1153 = vmatprep.subr.bf16.mxu0 0
    %1154 = vmatpush1.bf16.xpose.msra.mxu0 %v1138
    %1155 = vmatprep.subr.bf16.mxu0 0
    %1156 = vmatpush1.bf16.xpose.msra.mxu0 %v1135
    %1157 = vmatprep.subr.bf16.mxu0 0
    %1158 = vmatpush1.bf16.xpose.msra.mxu0 %v1132
    %1159 = vmatprep.subr.bf16.mxu0 0
    %1160 = vmatpush2.bf16.xpose.msra.mxu0 0
    %1161 = vmatprep.subr.bf16.mxu0 0
    %1162 = vmatpush2.bf16.xpose.msra.mxu0 0
    %1163 = vmatprep.subr.bf16.mxu0 0
    %1164 = vmatpush2.bf16.xpose.msra.mxu0 0
    %1165 = vmatprep.subr.bf16.mxu0 0
    %1166 = vmatpush2.bf16.xpose.msra.mxu0 0
    %1167 = vmatprep.subr.bf16.mxu0 0
    %1168 = vmatpush2.bf16.xpose.msra.mxu0 0
    %1169 = vmatprep.subr.bf16.mxu0 0
    %1170 = vmatpush2.bf16.xpose.msra.mxu0 0
    %1171 = vmatprep.subr.bf16.mxu0 0
    %1172 = vmatpush2.bf16.xpose.msra.mxu0 0
    %1173 = vmatprep.subr.bf16.mxu0 0
    %1174 = vmatpush2.bf16.xpose.msra.mxu0 0
    %1175 = vmatprep.mubr.bf16.mxu0 0
    %1176 = vmatmul.mubr.bf16.gmra.mxu0 %v1123
    %v1177 = vpop.f32.mrf.mxu0
    %v1178 = vadd.f32 0.0, %v1177
    %v1179 = vpop.f32.mrf.mxu0
    %v1180 = vpop.f32.mrf.mxu0
    %v1181 = vadd.f32 0.0, %v1180
    %v1182 = vpop.f32.mrf.mxu0
    %1183 = vmatprep.mubr.bf16.mxu0 0
    %1184 = vmatmul.mubr.bf16.gmra.mxu0 %v1126
    %v1185 = vpop.f32.mrf.mxu0
    %v1186 = vadd.f32 0.0, %v1185
    %v1187 = vpop.f32.mrf.mxu0
    %v1188 = vpop.f32.mrf.mxu0
    %v1189 = vadd.f32 0.0, %v1188
    %v1190 = vpop.f32.mrf.mxu0
    %1191 = vmatprep.mubr.bf16.mxu0 0
    %1192 = vmatmul.mubr.bf16.gmra.mxu0 %v1129
    %v1193 = vpop.f32.mrf.mxu0
    %v1194 = vadd.f32 0.0, %v1193
    %v1195 = vpop.f32.mrf.mxu0
    %v1196 = vpop.f32.mrf.mxu0
    %v1197 = vadd.f32 0.0, %v1196
    %v1198 = vpop.f32.mrf.mxu0
    %1199 = vdwg.mxu0
    %v1201 = vsel %vm965, %v592, 0
    %v1204 = vsel %vm965, %v594, 0
    %v1207 = vsel %vm965, %v596, 0
    %v1210 = vsel %vm965, %v686, 0
    %v1213 = vsel %vm965, %v688, 0
    %v1216 = vsel %vm965, %v690, 0
    %v1219 = vsel %vm965, %v692, 0
    %1221 = vmatprep.subr.bf16.mxu0 0
    %1222 = vmatpush1.bf16.xpose.msra.mxu0 0
    %1223 = vmatprep.subr.bf16.mxu0 0
    %1224 = vmatpush1.bf16.xpose.msra.mxu0 0
    %1225 = vmatprep.subr.bf16.mxu0 0
    %1226 = vmatpush1.bf16.xpose.msra.mxu0 0
    %1227 = vmatprep.subr.bf16.mxu0 0
    %1228 = vmatpush1.bf16.xpose.msra.mxu0 0
    %1229 = vmatprep.subr.bf16.mxu0 0
    %1230 = vmatpush1.bf16.xpose.msra.mxu0 %v1219
    %1231 = vmatprep.subr.bf16.mxu0 0
    %1232 = vmatpush1.bf16.xpose.msra.mxu0 %v1216
    %1233 = vmatprep.subr.bf16.mxu0 0
    %1234 = vmatpush1.bf16.xpose.msra.mxu0 %v1213
    %1235 = vmatprep.subr.bf16.mxu0 0
    %1236 = vmatpush1.bf16.xpose.msra.mxu0 %v1210
    %1237 = vmatprep.subr.bf16.mxu0 0
    %1238 = vmatpush2.bf16.xpose.msra.mxu0 0
    %1239 = vmatprep.subr.bf16.mxu0 0
    %1240 = vmatpush2.bf16.xpose.msra.mxu0 0
    %1241 = vmatprep.subr.bf16.mxu0 0
    %1242 = vmatpush2.bf16.xpose.msra.mxu0 0
    %1243 = vmatprep.subr.bf16.mxu0 0
    %1244 = vmatpush2.bf16.xpose.msra.mxu0 0
    %1245 = vmatprep.subr.bf16.mxu0 0
    %1246 = vmatpush2.bf16.xpose.msra.mxu0 0
    %1247 = vmatprep.subr.bf16.mxu0 0
    %1248 = vmatpush2.bf16.xpose.msra.mxu0 0
    %1249 = vmatprep.subr.bf16.mxu0 0
    %1250 = vmatpush2.bf16.xpose.msra.mxu0 0
    %1251 = vmatprep.subr.bf16.mxu0 0
    %1252 = vmatpush2.bf16.xpose.msra.mxu0 0
    %1253 = vmatprep.mubr.bf16.mxu0 0
    %1254 = vmatmul.mubr.bf16.gmra.mxu0 %v1201
    %v1255 = vpop.f32.mrf.mxu0
    %v1256 = vadd.f32 0.0, %v1255
    %v1257 = vpop.f32.mrf.mxu0
    %v1258 = vpop.f32.mrf.mxu0
    %v1259 = vadd.f32 0.0, %v1258
    %v1260 = vpop.f32.mrf.mxu0
    %1261 = vmatprep.mubr.bf16.mxu0 0
    %1262 = vmatmul.mubr.bf16.gmra.mxu0 %v1204
    %v1263 = vpop.f32.mrf.mxu0
    %v1264 = vadd.f32 0.0, %v1263
    %v1265 = vpop.f32.mrf.mxu0
    %v1266 = vpop.f32.mrf.mxu0
    %v1267 = vadd.f32 0.0, %v1266
    %v1268 = vpop.f32.mrf.mxu0
    %1269 = vmatprep.mubr.bf16.mxu0 0
    %1270 = vmatmul.mubr.bf16.gmra.mxu0 %v1207
    %v1271 = vpop.f32.mrf.mxu0
    %v1272 = vadd.f32 0.0, %v1271
    %v1273 = vpop.f32.mrf.mxu0
    %v1274 = vpop.f32.mrf.mxu0
    %v1275 = vadd.f32 0.0, %v1274
    %v1276 = vpop.f32.mrf.mxu0
    %1277 = vdwg.mxu0
    %v1279 = vsel %vm965, %v598, 0
    %v1282 = vsel %vm965, %v600, 0
    %v1285 = vsel %vm965, %v602, 0
    %v1288 = vsel %vm965, %v694, 0
    %v1291 = vsel %vm965, %v696, 0
    %v1294 = vsel %vm965, %v698, 0
    %v1297 = vsel %vm965, %v700, 0
    %1299 = vmatprep.subr.bf16.mxu0 0
    %1300 = vmatpush1.bf16.xpose.msra.mxu0 0
    %1301 = vmatprep.subr.bf16.mxu0 0
    %1302 = vmatpush1.bf16.xpose.msra.mxu0 0
    %1303 = vmatprep.subr.bf16.mxu0 0
    %1304 = vmatpush1.bf16.xpose.msra.mxu0 0
    %1305 = vmatprep.subr.bf16.mxu0 0
    %1306 = vmatpush1.bf16.xpose.msra.mxu0 0
    %1307 = vmatprep.subr.bf16.mxu0 0
    %1308 = vmatpush1.bf16.xpose.msra.mxu0 %v1297
    %1309 = vmatprep.subr.bf16.mxu0 0
    %1310 = vmatpush1.bf16.xpose.msra.mxu0 %v1294
    %1311 = vmatprep.subr.bf16.mxu0 0
    %1312 = vmatpush1.bf16.xpose.msra.mxu0 %v1291
    %1313 = vmatprep.subr.bf16.mxu0 0
    %1314 = vmatpush1.bf16.xpose.msra.mxu0 %v1288
    %1315 = vmatprep.subr.bf16.mxu0 0
    %1316 = vmatpush2.bf16.xpose.msra.mxu0 0
    %1317 = vmatprep.subr.bf16.mxu0 0
    %1318 = vmatpush2.bf16.xpose.msra.mxu0 0
    %1319 = vmatprep.subr.bf16.mxu0 0
    %1320 = vmatpush2.bf16.xpose.msra.mxu0 0
    %1321 = vmatprep.subr.bf16.mxu0 0
    %1322 = vmatpush2.bf16.xpose.msra.mxu0 0
    %1323 = vmatprep.subr.bf16.mxu0 0
    %1324 = vmatpush2.bf16.xpose.msra.mxu0 0
    %1325 = vmatprep.subr.bf16.mxu0 0
    %1326 = vmatpush2.bf16.xpose.msra.mxu0 0
    %1327 = vmatprep.subr.bf16.mxu0 0
    %1328 = vmatpush2.bf16.xpose.msra.mxu0 0
    %1329 = vmatprep.subr.bf16.mxu0 0
    %1330 = vmatpush2.bf16.xpose.msra.mxu0 0
    %1331 = vmatprep.mubr.bf16.mxu0 0
    %1332 = vmatmul.mubr.bf16.gmra.mxu0 %v1279
    %v1333 = vpop.f32.mrf.mxu0
    %v1334 = vadd.f32 0.0, %v1333
    %v1335 = vpop.f32.mrf.mxu0
    %v1336 = vpop.f32.mrf.mxu0
    %v1337 = vadd.f32 0.0, %v1336
    %v1338 = vpop.f32.mrf.mxu0
    %1339 = vmatprep.mubr.bf16.mxu0 0
    %1340 = vmatmul.mubr.bf16.gmra.mxu0 %v1282
    %v1341 = vpop.f32.mrf.mxu0
    %v1342 = vadd.f32 0.0, %v1341
    %v1343 = vpop.f32.mrf.mxu0
    %v1344 = vpop.f32.mrf.mxu0
    %v1345 = vadd.f32 0.0, %v1344
    %v1346 = vpop.f32.mrf.mxu0
    %1347 = vmatprep.mubr.bf16.mxu0 0
    %1348 = vmatmul.mubr.bf16.gmra.mxu0 %v1285
    %v1349 = vpop.f32.mrf.mxu0
    %v1350 = vadd.f32 0.0, %v1349
    %v1351 = vpop.f32.mrf.mxu0
    %v1352 = vpop.f32.mrf.mxu0
    %v1353 = vadd.f32 0.0, %v1352
    %v1354 = vpop.f32.mrf.mxu0
    %1355 = vdwg.mxu0
    %v1357 = vsel %vm965, %v604, 0
    %v1360 = vsel %vm965, %v606, 0
    %v1363 = vsel %vm965, %v608, 0
    %v1366 = vsel %vm965, %v702, 0
    %v1369 = vsel %vm965, %v704, 0
    %v1372 = vsel %vm965, %v706, 0
    %v1375 = vsel %vm965, %v708, 0
    %1377 = vmatprep.subr.bf16.mxu0 0
    %1378 = vmatpush1.bf16.xpose.msra.mxu0 0
    %1379 = vmatprep.subr.bf16.mxu0 0
    %1380 = vmatpush1.bf16.xpose.msra.mxu0 0
    %1381 = vmatprep.subr.bf16.mxu0 0
    %1382 = vmatpush1.bf16.xpose.msra.mxu0 0
    %1383 = vmatprep.subr.bf16.mxu0 0
    %1384 = vmatpush1.bf16.xpose.msra.mxu0 0
    %1385 = vmatprep.subr.bf16.mxu0 0
    %1386 = vmatpush1.bf16.xpose.msra.mxu0 %v1375
    %1387 = vmatprep.subr.bf16.mxu0 0
    %1388 = vmatpush1.bf16.xpose.msra.mxu0 %v1372
    %1389 = vmatprep.subr.bf16.mxu0 0
    %1390 = vmatpush1.bf16.xpose.msra.mxu0 %v1369
    %1391 = vmatprep.subr.bf16.mxu0 0
    %1392 = vmatpush1.bf16.xpose.msra.mxu0 %v1366
    %1393 = vmatprep.subr.bf16.mxu0 0
    %1394 = vmatpush2.bf16.xpose.msra.mxu0 0
    %1395 = vmatprep.subr.bf16.mxu0 0
    %1396 = vmatpush2.bf16.xpose.msra.mxu0 0
    %1397 = vmatprep.subr.bf16.mxu0 0
    %1398 = vmatpush2.bf16.xpose.msra.mxu0 0
    %1399 = vmatprep.subr.bf16.mxu0 0
    %1400 = vmatpush2.bf16.xpose.msra.mxu0 0
    %1401 = vmatprep.subr.bf16.mxu0 0
    %1402 = vmatpush2.bf16.xpose.msra.mxu0 0
    %1403 = vmatprep.subr.bf16.mxu0 0
    %1404 = vmatpush2.bf16.xpose.msra.mxu0 0
    %1405 = vmatprep.subr.bf16.mxu0 0
    %1406 = vmatpush2.bf16.xpose.msra.mxu0 0
    %1407 = vmatprep.subr.bf16.mxu0 0
    %1408 = vmatpush2.bf16.xpose.msra.mxu0 0
    %1409 = vmatprep.mubr.bf16.mxu0 0
    %1410 = vmatmul.mubr.bf16.gmra.mxu0 %v1357
    %v1411 = vpop.f32.mrf.mxu0
    %v1412 = vadd.f32 0.0, %v1411
    %v1413 = vpop.f32.mrf.mxu0
    %v1414 = vpop.f32.mrf.mxu0
    %v1415 = vadd.f32 0.0, %v1414
    %v1416 = vpop.f32.mrf.mxu0
    %1417 = vmatprep.mubr.bf16.mxu0 0
    %1418 = vmatmul.mubr.bf16.gmra.mxu0 %v1360
    %v1419 = vpop.f32.mrf.mxu0
    %v1420 = vadd.f32 0.0, %v1419
    %v1421 = vpop.f32.mrf.mxu0
    %v1422 = vpop.f32.mrf.mxu0
    %v1423 = vadd.f32 0.0, %v1422
    %v1424 = vpop.f32.mrf.mxu0
    %1425 = vmatprep.mubr.bf16.mxu0 0
    %1426 = vmatmul.mubr.bf16.gmra.mxu0 %v1363
    %v1427 = vpop.f32.mrf.mxu0
    %v1428 = vadd.f32 0.0, %v1427
    %v1429 = vpop.f32.mrf.mxu0
    %v1430 = vpop.f32.mrf.mxu0
    %v1431 = vadd.f32 0.0, %v1430
    %v1432 = vpop.f32.mrf.mxu0
    %1433 = vdwg.mxu0
    %v1435 = vsel %vm965, %v610, 0
    %v1438 = vsel %vm965, %v612, 0
    %v1441 = vsel %vm965, %v614, 0
    %v1444 = vsel %vm965, %v710, 0
    %v1447 = vsel %vm965, %v712, 0
    %v1450 = vsel %vm965, %v714, 0
    %v1453 = vsel %vm965, %v716, 0
    %1455 = vmatprep.subr.bf16.mxu0 0
    %1456 = vmatpush1.bf16.xpose.msra.mxu0 0
    %1457 = vmatprep.subr.bf16.mxu0 0
    %1458 = vmatpush1.bf16.xpose.msra.mxu0 0
    %1459 = vmatprep.subr.bf16.mxu0 0
    %1460 = vmatpush1.bf16.xpose.msra.mxu0 0
    %1461 = vmatprep.subr.bf16.mxu0 0
    %1462 = vmatpush1.bf16.xpose.msra.mxu0 0
    %1463 = vmatprep.subr.bf16.mxu0 0
    %1464 = vmatpush1.bf16.xpose.msra.mxu0 %v1453
    %1465 = vmatprep.subr.bf16.mxu0 0
    %1466 = vmatpush1.bf16.xpose.msra.mxu0 %v1450
    %1467 = vmatprep.subr.bf16.mxu0 0
    %1468 = vmatpush1.bf16.xpose.msra.mxu0 %v1447
    %1469 = vmatprep.subr.bf16.mxu0 0
    %1470 = vmatpush1.bf16.xpose.msra.mxu0 %v1444
    %1471 = vmatprep.subr.bf16.mxu0 0
    %1472 = vmatpush2.bf16.xpose.msra.mxu0 0
    %1473 = vmatprep.subr.bf16.mxu0 0
    %1474 = vmatpush2.bf16.xpose.msra.mxu0 0
    %1475 = vmatprep.subr.bf16.mxu0 0
    %1476 = vmatpush2.bf16.xpose.msra.mxu0 0
    %1477 = vmatprep.subr.bf16.mxu0 0
    %1478 = vmatpush2.bf16.xpose.msra.mxu0 0
    %1479 = vmatprep.subr.bf16.mxu0 0
    %1480 = vmatpush2.bf16.xpose.msra.mxu0 0
    %1481 = vmatprep.subr.bf16.mxu0 0
    %1482 = vmatpush2.bf16.xpose.msra.mxu0 0
    %1483 = vmatprep.subr.bf16.mxu0 0
    %1484 = vmatpush2.bf16.xpose.msra.mxu0 0
    %1485 = vmatprep.subr.bf16.mxu0 0
    %1486 = vmatpush2.bf16.xpose.msra.mxu0 0
    %1487 = vmatprep.mubr.bf16.mxu0 0
    %1488 = vmatmul.mubr.bf16.gmra.mxu0 %v1435
    %v1489 = vpop.f32.mrf.mxu0
    %v1490 = vadd.f32 0.0, %v1489
    %v1491 = vpop.f32.mrf.mxu0
    %v1492 = vpop.f32.mrf.mxu0
    %v1493 = vadd.f32 0.0, %v1492
    %v1494 = vpop.f32.mrf.mxu0
    %1495 = vmatprep.mubr.bf16.mxu0 0
    %1496 = vmatmul.mubr.bf16.gmra.mxu0 %v1438
    %v1497 = vpop.f32.mrf.mxu0
    %v1498 = vadd.f32 0.0, %v1497
    %v1499 = vpop.f32.mrf.mxu0
    %v1500 = vpop.f32.mrf.mxu0
    %v1501 = vadd.f32 0.0, %v1500
    %v1502 = vpop.f32.mrf.mxu0
    %1503 = vmatprep.mubr.bf16.mxu0 0
    %1504 = vmatmul.mubr.bf16.gmra.mxu0 %v1441
    %v1505 = vpop.f32.mrf.mxu0
    %v1506 = vadd.f32 0.0, %v1505
    %v1507 = vpop.f32.mrf.mxu0
    %v1508 = vpop.f32.mrf.mxu0
    %v1509 = vadd.f32 0.0, %v1508
    %v1510 = vpop.f32.mrf.mxu0
    %1511 = vdwg.mxu0
    %v1513 = vsel %vm965, %v616, 0
    %v1516 = vsel %vm965, %v618, 0
    %v1519 = vsel %vm965, %v620, 0
    %v1522 = vsel %vm965, %v718, 0
    %v1525 = vsel %vm965, %v720, 0
    %v1528 = vsel %vm965, %v722, 0
    %v1531 = vsel %vm965, %v724, 0
    %1533 = vmatprep.subr.bf16.mxu0 0
    %1534 = vmatpush1.bf16.xpose.msra.mxu0 0
    %1535 = vmatprep.subr.bf16.mxu0 0
    %1536 = vmatpush1.bf16.xpose.msra.mxu0 0
    %1537 = vmatprep.subr.bf16.mxu0 0
    %1538 = vmatpush1.bf16.xpose.msra.mxu0 0
    %1539 = vmatprep.subr.bf16.mxu0 0
    %1540 = vmatpush1.bf16.xpose.msra.mxu0 0
    %1541 = vmatprep.subr.bf16.mxu0 0
    %1542 = vmatpush1.bf16.xpose.msra.mxu0 %v1531
    %1543 = vmatprep.subr.bf16.mxu0 0
    %1544 = vmatpush1.bf16.xpose.msra.mxu0 %v1528
    %1545 = vmatprep.subr.bf16.mxu0 0
    %1546 = vmatpush1.bf16.xpose.msra.mxu0 %v1525
    %1547 = vmatprep.subr.bf16.mxu0 0
    %1548 = vmatpush1.bf16.xpose.msra.mxu0 %v1522
    %1549 = vmatprep.subr.bf16.mxu0 0
    %1550 = vmatpush2.bf16.xpose.msra.mxu0 0
    %1551 = vmatprep.subr.bf16.mxu0 0
    %1552 = vmatpush2.bf16.xpose.msra.mxu0 0
    %1553 = vmatprep.subr.bf16.mxu0 0
    %1554 = vmatpush2.bf16.xpose.msra.mxu0 0
    %1555 = vmatprep.subr.bf16.mxu0 0
    %1556 = vmatpush2.bf16.xpose.msra.mxu0 0
    %1557 = vmatprep.subr.bf16.mxu0 0
    %1558 = vmatpush2.bf16.xpose.msra.mxu0 0
    %1559 = vmatprep.subr.bf16.mxu0 0
    %1560 = vmatpush2.bf16.xpose.msra.mxu0 0
    %1561 = vmatprep.subr.bf16.mxu0 0
    %1562 = vmatpush2.bf16.xpose.msra.mxu0 0
    %1563 = vmatprep.subr.bf16.mxu0 0
    %1564 = vmatpush2.bf16.xpose.msra.mxu0 0
    %1565 = vmatprep.mubr.bf16.mxu0 0
    %1566 = vmatmul.mubr.bf16.gmra.mxu0 %v1513
    %v1567 = vpop.f32.mrf.mxu0
    %v1568 = vadd.f32 0.0, %v1567
    %v1569 = vpop.f32.mrf.mxu0
    %v1570 = vpop.f32.mrf.mxu0
    %v1571 = vadd.f32 0.0, %v1570
    %v1572 = vpop.f32.mrf.mxu0
    %1573 = vmatprep.mubr.bf16.mxu0 0
    %1574 = vmatmul.mubr.bf16.gmra.mxu0 %v1516
    %v1575 = vpop.f32.mrf.mxu0
    %v1576 = vadd.f32 0.0, %v1575
    %v1577 = vpop.f32.mrf.mxu0
    %v1578 = vpop.f32.mrf.mxu0
    %v1579 = vadd.f32 0.0, %v1578
    %v1580 = vpop.f32.mrf.mxu0
    %1581 = vmatprep.mubr.bf16.mxu0 0
    %1582 = vmatmul.mubr.bf16.gmra.mxu0 %v1519
    %v1583 = vpop.f32.mrf.mxu0
    %v1584 = vadd.f32 0.0, %v1583
    %v1585 = vpop.f32.mrf.mxu0
    %v1586 = vpop.f32.mrf.mxu0
    %v1587 = vadd.f32 0.0, %v1586
    %v1588 = vpop.f32.mrf.mxu0
    %1589 = vdwg.mxu0
    %v1591 = vsel %vm965, %v622, 0
    %v1594 = vsel %vm965, %v624, 0
    %v1597 = vsel %vm965, %v626, 0
    %v1600 = vsel %vm965, %v726, 0
    %v1603 = vsel %vm965, %v728, 0
    %v1606 = vsel %vm965, %v730, 0
    %v1609 = vsel %vm965, %v732, 0
    %1611 = vmatprep.subr.bf16.mxu0 0
    %1612 = vmatpush1.bf16.xpose.msra.mxu0 0
    %1613 = vmatprep.subr.bf16.mxu0 0
    %1614 = vmatpush1.bf16.xpose.msra.mxu0 0
    %1615 = vmatprep.subr.bf16.mxu0 0
    %1616 = vmatpush1.bf16.xpose.msra.mxu0 0
    %1617 = vmatprep.subr.bf16.mxu0 0
    %1618 = vmatpush1.bf16.xpose.msra.mxu0 0
    %1619 = vmatprep.subr.bf16.mxu0 0
    %1620 = vmatpush1.bf16.xpose.msra.mxu0 %v1609
    %1621 = vmatprep.subr.bf16.mxu0 0
    %1622 = vmatpush1.bf16.xpose.msra.mxu0 %v1606
    %1623 = vmatprep.subr.bf16.mxu0 0
    %1624 = vmatpush1.bf16.xpose.msra.mxu0 %v1603
    %1625 = vmatprep.subr.bf16.mxu0 0
    %1626 = vmatpush1.bf16.xpose.msra.mxu0 %v1600
    %1627 = vmatprep.subr.bf16.mxu0 0
    %1628 = vmatpush2.bf16.xpose.msra.mxu0 0
    %1629 = vmatprep.subr.bf16.mxu0 0
    %1630 = vmatpush2.bf16.xpose.msra.mxu0 0
    %1631 = vmatprep.subr.bf16.mxu0 0
    %1632 = vmatpush2.bf16.xpose.msra.mxu0 0
    %1633 = vmatprep.subr.bf16.mxu0 0
    %1634 = vmatpush2.bf16.xpose.msra.mxu0 0
    %1635 = vmatprep.subr.bf16.mxu0 0
    %1636 = vmatpush2.bf16.xpose.msra.mxu0 0
    %1637 = vmatprep.subr.bf16.mxu0 0
    %1638 = vmatpush2.bf16.xpose.msra.mxu0 0
    %1639 = vmatprep.subr.bf16.mxu0 0
    %1640 = vmatpush2.bf16.xpose.msra.mxu0 0
    %1641 = vmatprep.subr.bf16.mxu0 0
    %1642 = vmatpush2.bf16.xpose.msra.mxu0 0
    %1643 = vmatprep.mubr.bf16.mxu0 0
    %1644 = vmatmul.mubr.bf16.gmra.mxu0 %v1591
    %v1645 = vpop.f32.mrf.mxu0
    %v1646 = vadd.f32 0.0, %v1645
    %v1647 = vpop.f32.mrf.mxu0
    %v1648 = vpop.f32.mrf.mxu0
    %v1649 = vadd.f32 0.0, %v1648
    %v1650 = vpop.f32.mrf.mxu0
    %1651 = vmatprep.mubr.bf16.mxu0 0
    %1652 = vmatmul.mubr.bf16.gmra.mxu0 %v1594
    %v1653 = vpop.f32.mrf.mxu0
    %v1654 = vadd.f32 0.0, %v1653
    %v1655 = vpop.f32.mrf.mxu0
    %v1656 = vpop.f32.mrf.mxu0
    %v1657 = vadd.f32 0.0, %v1656
    %v1658 = vpop.f32.mrf.mxu0
    %1659 = vmatprep.mubr.bf16.mxu0 0
    %1660 = vmatmul.mubr.bf16.gmra.mxu0 %v1597
    %v1661 = vpop.f32.mrf.mxu0
    %v1662 = vadd.f32 0.0, %v1661
    %v1663 = vpop.f32.mrf.mxu0
    %v1664 = vpop.f32.mrf.mxu0
    %v1665 = vadd.f32 0.0, %v1664
    %v1666 = vpop.f32.mrf.mxu0
    %1667 = vdwg.mxu0
    %v1669 = vsel %vm965, %v628, 0
    %v1672 = vsel %vm965, %v630, 0
    %v1675 = vsel %vm965, %v632, 0
    %v1678 = vsel %vm965, %v734, 0
    %v1681 = vsel %vm965, %v736, 0
    %v1684 = vsel %vm965, %v738, 0
    %v1687 = vsel %vm965, %v740, 0
    %1689 = vmatprep.subr.bf16.mxu0 0
    %1690 = vmatpush1.bf16.xpose.msra.mxu0 0
    %1691 = vmatprep.subr.bf16.mxu0 0
    %1692 = vmatpush1.bf16.xpose.msra.mxu0 0
    %1693 = vmatprep.subr.bf16.mxu0 0
    %1694 = vmatpush1.bf16.xpose.msra.mxu0 0
    %1695 = vmatprep.subr.bf16.mxu0 0
    %1696 = vmatpush1.bf16.xpose.msra.mxu0 0
    %1697 = vmatprep.subr.bf16.mxu0 0
    %1698 = vmatpush1.bf16.xpose.msra.mxu0 %v1687
    %1699 = vmatprep.subr.bf16.mxu0 0
    %1700 = vmatpush1.bf16.xpose.msra.mxu0 %v1684
    %1701 = vmatprep.subr.bf16.mxu0 0
    %1702 = vmatpush1.bf16.xpose.msra.mxu0 %v1681
    %1703 = vmatprep.subr.bf16.mxu0 0
    %1704 = vmatpush1.bf16.xpose.msra.mxu0 %v1678
    %1705 = vmatprep.subr.bf16.mxu0 0
    %1706 = vmatpush2.bf16.xpose.msra.mxu0 0
    %1707 = vmatprep.subr.bf16.mxu0 0
    %1708 = vmatpush2.bf16.xpose.msra.mxu0 0
    %1709 = vmatprep.subr.bf16.mxu0 0
    %1710 = vmatpush2.bf16.xpose.msra.mxu0 0
    %1711 = vmatprep.subr.bf16.mxu0 0
    %1712 = vmatpush2.bf16.xpose.msra.mxu0 0
    %1713 = vmatprep.subr.bf16.mxu0 0
    %1714 = vmatpush2.bf16.xpose.msra.mxu0 0
    %1715 = vmatprep.subr.bf16.mxu0 0
    %1716 = vmatpush2.bf16.xpose.msra.mxu0 0
    %1717 = vmatprep.subr.bf16.mxu0 0
    %1718 = vmatpush2.bf16.xpose.msra.mxu0 0
    %1719 = vmatprep.subr.bf16.mxu0 0
    %1720 = vmatpush2.bf16.xpose.msra.mxu0 0
    %1721 = vmatprep.mubr.bf16.mxu0 0
    %1722 = vmatmul.mubr.bf16.gmra.mxu0 %v1669
    %v1723 = vpop.f32.mrf.mxu0
    %v1724 = vadd.f32 0.0, %v1723
    %v1725 = vpop.f32.mrf.mxu0
    %v1726 = vpop.f32.mrf.mxu0
    %v1727 = vadd.f32 0.0, %v1726
    %v1728 = vpop.f32.mrf.mxu0
    %1729 = vmatprep.mubr.bf16.mxu0 0
    %1730 = vmatmul.mubr.bf16.gmra.mxu0 %v1672
    %v1731 = vpop.f32.mrf.mxu0
    %v1732 = vadd.f32 0.0, %v1731
    %v1733 = vpop.f32.mrf.mxu0
    %v1734 = vpop.f32.mrf.mxu0
    %v1735 = vadd.f32 0.0, %v1734
    %v1736 = vpop.f32.mrf.mxu0
    %1737 = vmatprep.mubr.bf16.mxu0 0
    %1738 = vmatmul.mubr.bf16.gmra.mxu0 %v1675
    %v1739 = vpop.f32.mrf.mxu0
    %v1740 = vadd.f32 0.0, %v1739
    %v1741 = vpop.f32.mrf.mxu0
    %v1742 = vpop.f32.mrf.mxu0
    %v1743 = vadd.f32 0.0, %v1742
    %v1744 = vpop.f32.mrf.mxu0
    %1745 = vdwg.mxu0
    %v1747 = vsel %vm965, %v634, 0
    %v1750 = vsel %vm965, %v636, 0
    %v1753 = vsel %vm965, %v638, 0
    %v1756 = vsel %vm965, %v742, 0
    %v1759 = vsel %vm965, %v744, 0
    %v1762 = vsel %vm965, %v746, 0
    %v1765 = vsel %vm965, %v748, 0
    %1767 = vmatprep.subr.bf16.mxu0 0
    %1768 = vmatpush1.bf16.xpose.msra.mxu0 0
    %1769 = vmatprep.subr.bf16.mxu0 0
    %1770 = vmatpush1.bf16.xpose.msra.mxu0 0
    %1771 = vmatprep.subr.bf16.mxu0 0
    %1772 = vmatpush1.bf16.xpose.msra.mxu0 0
    %1773 = vmatprep.subr.bf16.mxu0 0
    %1774 = vmatpush1.bf16.xpose.msra.mxu0 0
    %1775 = vmatprep.subr.bf16.mxu0 0
    %1776 = vmatpush1.bf16.xpose.msra.mxu0 %v1765
    %1777 = vmatprep.subr.bf16.mxu0 0
    %1778 = vmatpush1.bf16.xpose.msra.mxu0 %v1762
    %1779 = vmatprep.subr.bf16.mxu0 0
    %1780 = vmatpush1.bf16.xpose.msra.mxu0 %v1759
    %1781 = vmatprep.subr.bf16.mxu0 0
    %1782 = vmatpush1.bf16.xpose.msra.mxu0 %v1756
    %1783 = vmatprep.subr.bf16.mxu0 0
    %1784 = vmatpush2.bf16.xpose.msra.mxu0 0
    %1785 = vmatprep.subr.bf16.mxu0 0
    %1786 = vmatpush2.bf16.xpose.msra.mxu0 0
    %1787 = vmatprep.subr.bf16.mxu0 0
    %1788 = vmatpush2.bf16.xpose.msra.mxu0 0
    %1789 = vmatprep.subr.bf16.mxu0 0
    %1790 = vmatpush2.bf16.xpose.msra.mxu0 0
    %1791 = vmatprep.subr.bf16.mxu0 0
    %1792 = vmatpush2.bf16.xpose.msra.mxu0 0
    %1793 = vmatprep.subr.bf16.mxu0 0
    %1794 = vmatpush2.bf16.xpose.msra.mxu0 0
    %1795 = vmatprep.subr.bf16.mxu0 0
    %1796 = vmatpush2.bf16.xpose.msra.mxu0 0
    %1797 = vmatprep.subr.bf16.mxu0 0
    %1798 = vmatpush2.bf16.xpose.msra.mxu0 0
    %1799 = vmatprep.mubr.bf16.mxu0 0
    %1800 = vmatmul.mubr.bf16.gmra.mxu0 %v1747
    %v1801 = vpop.f32.mrf.mxu0
    %v1802 = vadd.f32 0.0, %v1801
    %v1803 = vpop.f32.mrf.mxu0
    %v1804 = vpop.f32.mrf.mxu0
    %v1805 = vadd.f32 0.0, %v1804
    %v1806 = vpop.f32.mrf.mxu0
    %1807 = vmatprep.mubr.bf16.mxu0 0
    %1808 = vmatmul.mubr.bf16.gmra.mxu0 %v1750
    %v1809 = vpop.f32.mrf.mxu0
    %v1810 = vadd.f32 0.0, %v1809
    %v1811 = vpop.f32.mrf.mxu0
    %v1812 = vpop.f32.mrf.mxu0
    %v1813 = vadd.f32 0.0, %v1812
    %v1814 = vpop.f32.mrf.mxu0
    %1815 = vmatprep.mubr.bf16.mxu0 0
    %1816 = vmatmul.mubr.bf16.gmra.mxu0 %v1753
    %v1817 = vpop.f32.mrf.mxu0
    %v1818 = vadd.f32 0.0, %v1817
    %v1819 = vpop.f32.mrf.mxu0
    %v1820 = vpop.f32.mrf.mxu0
    %v1821 = vadd.f32 0.0, %v1820
    %v1822 = vpop.f32.mrf.mxu0
    %1823 = vdwg.mxu0
    %v1825 = vsel %vm965, %v640, 0
    %v1828 = vsel %vm965, %v642, 0
    %v1831 = vsel %vm965, %v644, 0
    %v1834 = vsel %vm965, %v750, 0
    %v1837 = vsel %vm965, %v752, 0
    %v1840 = vsel %vm965, %v754, 0
    %v1843 = vsel %vm965, %v756, 0
    %1845 = vmatprep.subr.bf16.mxu0 0
    %1846 = vmatpush1.bf16.xpose.msra.mxu0 0
    %1847 = vmatprep.subr.bf16.mxu0 0
    %1848 = vmatpush1.bf16.xpose.msra.mxu0 0
    %1849 = vmatprep.subr.bf16.mxu0 0
    %1850 = vmatpush1.bf16.xpose.msra.mxu0 0
    %1851 = vmatprep.subr.bf16.mxu0 0
    %1852 = vmatpush1.bf16.xpose.msra.mxu0 0
    %1853 = vmatprep.subr.bf16.mxu0 0
    %1854 = vmatpush1.bf16.xpose.msra.mxu0 %v1843
    %1855 = vmatprep.subr.bf16.mxu0 0
    %1856 = vmatpush1.bf16.xpose.msra.mxu0 %v1840
    %1857 = vmatprep.subr.bf16.mxu0 0
    %1858 = vmatpush1.bf16.xpose.msra.mxu0 %v1837
    %1859 = vmatprep.subr.bf16.mxu0 0
    %1860 = vmatpush1.bf16.xpose.msra.mxu0 %v1834
    %1861 = vmatprep.subr.bf16.mxu0 0
    %1862 = vmatpush2.bf16.xpose.msra.mxu0 0
    %1863 = vmatprep.subr.bf16.mxu0 0
    %1864 = vmatpush2.bf16.xpose.msra.mxu0 0
    %1865 = vmatprep.subr.bf16.mxu0 0
    %1866 = vmatpush2.bf16.xpose.msra.mxu0 0
    %1867 = vmatprep.subr.bf16.mxu0 0
    %1868 = vmatpush2.bf16.xpose.msra.mxu0 0
    %1869 = vmatprep.subr.bf16.mxu0 0
    %1870 = vmatpush2.bf16.xpose.msra.mxu0 0
    %1871 = vmatprep.subr.bf16.mxu0 0
    %1872 = vmatpush2.bf16.xpose.msra.mxu0 0
    %1873 = vmatprep.subr.bf16.mxu0 0
    %1874 = vmatpush2.bf16.xpose.msra.mxu0 0
    %1875 = vmatprep.subr.bf16.mxu0 0
    %1876 = vmatpush2.bf16.xpose.msra.mxu0 0
    %1877 = vmatprep.mubr.bf16.mxu0 0
    %1878 = vmatmul.mubr.bf16.gmra.mxu0 %v1825
    %v1879 = vpop.f32.mrf.mxu0
    %v1880 = vadd.f32 0.0, %v1879
    %v1881 = vpop.f32.mrf.mxu0
    %v1882 = vpop.f32.mrf.mxu0
    %v1883 = vadd.f32 0.0, %v1882
    %v1884 = vpop.f32.mrf.mxu0
    %1885 = vmatprep.mubr.bf16.mxu0 0
    %1886 = vmatmul.mubr.bf16.gmra.mxu0 %v1828
    %v1887 = vpop.f32.mrf.mxu0
    %v1888 = vadd.f32 0.0, %v1887
    %v1889 = vpop.f32.mrf.mxu0
    %v1890 = vpop.f32.mrf.mxu0
    %v1891 = vadd.f32 0.0, %v1890
    %v1892 = vpop.f32.mrf.mxu0
    %1893 = vmatprep.mubr.bf16.mxu0 0
    %1894 = vmatmul.mubr.bf16.gmra.mxu0 %v1831
    %v1895 = vpop.f32.mrf.mxu0
    %v1896 = vadd.f32 0.0, %v1895
    %v1897 = vpop.f32.mrf.mxu0
    %v1898 = vpop.f32.mrf.mxu0
    %v1899 = vadd.f32 0.0, %v1898
    %v1900 = vpop.f32.mrf.mxu0
    %1901 = vdwg.mxu0
    %v1903 = vsel %vm965, %v646, 0
    %v1906 = vsel %vm965, %v648, 0
    %v1909 = vsel %vm965, %v650, 0
    %v1912 = vsel %vm965, %v758, 0
    %v1915 = vsel %vm965, %v760, 0
    %v1918 = vsel %vm965, %v762, 0
    %v1921 = vsel %vm965, %v764, 0
    %1923 = vmatprep.subr.bf16.mxu0 0
    %1924 = vmatpush1.bf16.xpose.msra.mxu0 0
    %1925 = vmatprep.subr.bf16.mxu0 0
    %1926 = vmatpush1.bf16.xpose.msra.mxu0 0
    %1927 = vmatprep.subr.bf16.mxu0 0
    %1928 = vmatpush1.bf16.xpose.msra.mxu0 0
    %1929 = vmatprep.subr.bf16.mxu0 0
    %1930 = vmatpush1.bf16.xpose.msra.mxu0 0
    %1931 = vmatprep.subr.bf16.mxu0 0
    %1932 = vmatpush1.bf16.xpose.msra.mxu0 %v1921
    %1933 = vmatprep.subr.bf16.mxu0 0
    %1934 = vmatpush1.bf16.xpose.msra.mxu0 %v1918
    %1935 = vmatprep.subr.bf16.mxu0 0
    %1936 = vmatpush1.bf16.xpose.msra.mxu0 %v1915
    %1937 = vmatprep.subr.bf16.mxu0 0
    %1938 = vmatpush1.bf16.xpose.msra.mxu0 %v1912
    %1939 = vmatprep.subr.bf16.mxu0 0
    %1940 = vmatpush2.bf16.xpose.msra.mxu0 0
    %1941 = vmatprep.subr.bf16.mxu0 0
    %1942 = vmatpush2.bf16.xpose.msra.mxu0 0
    %1943 = vmatprep.subr.bf16.mxu0 0
    %1944 = vmatpush2.bf16.xpose.msra.mxu0 0
    %1945 = vmatprep.subr.bf16.mxu0 0
    %1946 = vmatpush2.bf16.xpose.msra.mxu0 0
    %1947 = vmatprep.subr.bf16.mxu0 0
    %1948 = vmatpush2.bf16.xpose.msra.mxu0 0
    %1949 = vmatprep.subr.bf16.mxu0 0
    %1950 = vmatpush2.bf16.xpose.msra.mxu0 0
    %1951 = vmatprep.subr.bf16.mxu0 0
    %1952 = vmatpush2.bf16.xpose.msra.mxu0 0
    %1953 = vmatprep.subr.bf16.mxu0 0
    %1954 = vmatpush2.bf16.xpose.msra.mxu0 0
    %1955 = vmatprep.mubr.bf16.mxu0 0
    %1956 = vmatmul.mubr.bf16.gmra.mxu0 %v1903
    %v1957 = vpop.f32.mrf.mxu0
    %v1958 = vadd.f32 0.0, %v1957
    %v1959 = vpop.f32.mrf.mxu0
    %v1960 = vpop.f32.mrf.mxu0
    %v1961 = vadd.f32 0.0, %v1960
    %v1962 = vpop.f32.mrf.mxu0
    %1963 = vmatprep.mubr.bf16.mxu0 0
    %1964 = vmatmul.mubr.bf16.gmra.mxu0 %v1906
    %v1965 = vpop.f32.mrf.mxu0
    %v1966 = vadd.f32 0.0, %v1965
    %v1967 = vpop.f32.mrf.mxu0
    %v1968 = vpop.f32.mrf.mxu0
    %v1969 = vadd.f32 0.0, %v1968
    %v1970 = vpop.f32.mrf.mxu0
    %1971 = vmatprep.mubr.bf16.mxu0 0
    %1972 = vmatmul.mubr.bf16.gmra.mxu0 %v1909
    %v1973 = vpop.f32.mrf.mxu0
    %v1974 = vadd.f32 0.0, %v1973
    %v1975 = vpop.f32.mrf.mxu0
    %v1976 = vpop.f32.mrf.mxu0
    %v1977 = vadd.f32 0.0, %v1976
    %v1978 = vpop.f32.mrf.mxu0
    %1979 = vdwg.mxu0
    %v1981 = vsel %vm965, %v652, 0
    %v1984 = vsel %vm965, %v654, 0
    %v1987 = vsel %vm965, %v656, 0
    %v1990 = vsel %vm965, %v766, 0
    %v1993 = vsel %vm965, %v768, 0
    %v1996 = vsel %vm965, %v770, 0
    %v1999 = vsel %vm965, %v772, 0
    %2001 = vmatprep.subr.bf16.mxu0 0
    %2002 = vmatpush1.bf16.xpose.msra.mxu0 0
    %2003 = vmatprep.subr.bf16.mxu0 0
    %2004 = vmatpush1.bf16.xpose.msra.mxu0 0
    %2005 = vmatprep.subr.bf16.mxu0 0
    %2006 = vmatpush1.bf16.xpose.msra.mxu0 0
    %2007 = vmatprep.subr.bf16.mxu0 0
    %2008 = vmatpush1.bf16.xpose.msra.mxu0 0
    %2009 = vmatprep.subr.bf16.mxu0 0
    %2010 = vmatpush1.bf16.xpose.msra.mxu0 %v1999
    %2011 = vmatprep.subr.bf16.mxu0 0
    %2012 = vmatpush1.bf16.xpose.msra.mxu0 %v1996
    %2013 = vmatprep.subr.bf16.mxu0 0
    %2014 = vmatpush1.bf16.xpose.msra.mxu0 %v1993
    %2015 = vmatprep.subr.bf16.mxu0 0
    %2016 = vmatpush1.bf16.xpose.msra.mxu0 %v1990
    %2017 = vmatprep.subr.bf16.mxu0 0
    %2018 = vmatpush2.bf16.xpose.msra.mxu0 0
    %2019 = vmatprep.subr.bf16.mxu0 0
    %2020 = vmatpush2.bf16.xpose.msra.mxu0 0
    %2021 = vmatprep.subr.bf16.mxu0 0
    %2022 = vmatpush2.bf16.xpose.msra.mxu0 0
    %2023 = vmatprep.subr.bf16.mxu0 0
    %2024 = vmatpush2.bf16.xpose.msra.mxu0 0
    %2025 = vmatprep.subr.bf16.mxu0 0
    %2026 = vmatpush2.bf16.xpose.msra.mxu0 0
    %2027 = vmatprep.subr.bf16.mxu0 0
    %2028 = vmatpush2.bf16.xpose.msra.mxu0 0
    %2029 = vmatprep.subr.bf16.mxu0 0
    %2030 = vmatpush2.bf16.xpose.msra.mxu0 0
    %2031 = vmatprep.subr.bf16.mxu0 0
    %2032 = vmatpush2.bf16.xpose.msra.mxu0 0
    %2033 = vmatprep.mubr.bf16.mxu0 0
    %2034 = vmatmul.mubr.bf16.gmra.mxu0 %v1981
    %v2035 = vpop.f32.mrf.mxu0
    %v2036 = vadd.f32 0.0, %v2035
    %v2037 = vpop.f32.mrf.mxu0
    %v2038 = vpop.f32.mrf.mxu0
    %v2039 = vadd.f32 0.0, %v2038
    %v2040 = vpop.f32.mrf.mxu0
    %2041 = vmatprep.mubr.bf16.mxu0 0
    %2042 = vmatmul.mubr.bf16.gmra.mxu0 %v1984
    %v2043 = vpop.f32.mrf.mxu0
    %v2044 = vadd.f32 0.0, %v2043
    %v2045 = vpop.f32.mrf.mxu0
    %v2046 = vpop.f32.mrf.mxu0
    %v2047 = vadd.f32 0.0, %v2046
    %v2048 = vpop.f32.mrf.mxu0
    %2049 = vmatprep.mubr.bf16.mxu0 0
    %2050 = vmatmul.mubr.bf16.gmra.mxu0 %v1987
    %v2051 = vpop.f32.mrf.mxu0
    %v2052 = vadd.f32 0.0, %v2051
    %v2053 = vpop.f32.mrf.mxu0
    %v2054 = vpop.f32.mrf.mxu0
    %v2055 = vadd.f32 0.0, %v2054
    %v2056 = vpop.f32.mrf.mxu0
    %2057 = vdwg.mxu0
    %v2059 = vsel %vm965, %v658, 0
    %v2062 = vsel %vm965, %v660, 0
    %v2065 = vsel %vm965, %v662, 0
    %v2068 = vsel %vm965, %v774, 0
    %v2071 = vsel %vm965, %v776, 0
    %v2074 = vsel %vm965, %v778, 0
    %v2077 = vsel %vm965, %v780, 0
    %2079 = vmatprep.subr.bf16.mxu0 0
    %2080 = vmatpush1.bf16.xpose.msra.mxu0 0
    %2081 = vmatprep.subr.bf16.mxu0 0
    %2082 = vmatpush1.bf16.xpose.msra.mxu0 0
    %2083 = vmatprep.subr.bf16.mxu0 0
    %2084 = vmatpush1.bf16.xpose.msra.mxu0 0
    %2085 = vmatprep.subr.bf16.mxu0 0
    %2086 = vmatpush1.bf16.xpose.msra.mxu0 0
    %2087 = vmatprep.subr.bf16.mxu0 0
    %2088 = vmatpush1.bf16.xpose.msra.mxu0 %v2077
    %2089 = vmatprep.subr.bf16.mxu0 0
    %2090 = vmatpush1.bf16.xpose.msra.mxu0 %v2074
    %2091 = vmatprep.subr.bf16.mxu0 0
    %2092 = vmatpush1.bf16.xpose.msra.mxu0 %v2071
    %2093 = vmatprep.subr.bf16.mxu0 0
    %2094 = vmatpush1.bf16.xpose.msra.mxu0 %v2068
    %2095 = vmatprep.subr.bf16.mxu0 0
    %2096 = vmatpush2.bf16.xpose.msra.mxu0 0
    %2097 = vmatprep.subr.bf16.mxu0 0
    %2098 = vmatpush2.bf16.xpose.msra.mxu0 0
    %2099 = vmatprep.subr.bf16.mxu0 0
    %2100 = vmatpush2.bf16.xpose.msra.mxu0 0
    %2101 = vmatprep.subr.bf16.mxu0 0
    %2102 = vmatpush2.bf16.xpose.msra.mxu0 0
    %2103 = vmatprep.subr.bf16.mxu0 0
    %2104 = vmatpush2.bf16.xpose.msra.mxu0 0
    %2105 = vmatprep.subr.bf16.mxu0 0
    %2106 = vmatpush2.bf16.xpose.msra.mxu0 0
    %2107 = vmatprep.subr.bf16.mxu0 0
    %2108 = vmatpush2.bf16.xpose.msra.mxu0 0
    %2109 = vmatprep.subr.bf16.mxu0 0
    %2110 = vmatpush2.bf16.xpose.msra.mxu0 0
    %2111 = vmatprep.mubr.bf16.mxu0 0
    %2112 = vmatmul.mubr.bf16.gmra.mxu0 %v2059
    %v2113 = vpop.f32.mrf.mxu0
    %v2114 = vadd.f32 0.0, %v2113
    %v2115 = vpop.f32.mrf.mxu0
    %v2116 = vpop.f32.mrf.mxu0
    %v2117 = vadd.f32 0.0, %v2116
    %v2118 = vpop.f32.mrf.mxu0
    %2119 = vmatprep.mubr.bf16.mxu0 0
    %2120 = vmatmul.mubr.bf16.gmra.mxu0 %v2062
    %v2121 = vpop.f32.mrf.mxu0
    %v2122 = vadd.f32 0.0, %v2121
    %v2123 = vpop.f32.mrf.mxu0
    %v2124 = vpop.f32.mrf.mxu0
    %v2125 = vadd.f32 0.0, %v2124
    %v2126 = vpop.f32.mrf.mxu0
    %2127 = vmatprep.mubr.bf16.mxu0 0
    %2128 = vmatmul.mubr.bf16.gmra.mxu0 %v2065
    %v2129 = vpop.f32.mrf.mxu0
    %v2130 = vadd.f32 0.0, %v2129
    %v2131 = vpop.f32.mrf.mxu0
    %v2132 = vpop.f32.mrf.mxu0
    %v2133 = vadd.f32 0.0, %v2132
    %v2134 = vpop.f32.mrf.mxu0
    %2135 = vdwg.mxu0
    %v2137 = vsel %vm965, %v664, 0
    %v2140 = vsel %vm965, %v666, 0
    %v2143 = vsel %vm965, %v668, 0
    %v2146 = vsel %vm965, %v782, 0
    %v2149 = vsel %vm965, %v784, 0
    %v2152 = vsel %vm965, %v786, 0
    %v2155 = vsel %vm965, %v788, 0
    %2157 = vmatprep.subr.bf16.mxu0 0
    %2158 = vmatpush1.bf16.xpose.msra.mxu0 0
    %2159 = vmatprep.subr.bf16.mxu0 0
    %2160 = vmatpush1.bf16.xpose.msra.mxu0 0
    %2161 = vmatprep.subr.bf16.mxu0 0
    %2162 = vmatpush1.bf16.xpose.msra.mxu0 0
    %2163 = vmatprep.subr.bf16.mxu0 0
    %2164 = vmatpush1.bf16.xpose.msra.mxu0 0
    %2165 = vmatprep.subr.bf16.mxu0 0
    %2166 = vmatpush1.bf16.xpose.msra.mxu0 %v2155
    %2167 = vmatprep.subr.bf16.mxu0 0
    %2168 = vmatpush1.bf16.xpose.msra.mxu0 %v2152
    %2169 = vmatprep.subr.bf16.mxu0 0
    %2170 = vmatpush1.bf16.xpose.msra.mxu0 %v2149
    %2171 = vmatprep.subr.bf16.mxu0 0
    %2172 = vmatpush1.bf16.xpose.msra.mxu0 %v2146
    %2173 = vmatprep.subr.bf16.mxu0 0
    %2174 = vmatpush2.bf16.xpose.msra.mxu0 0
    %2175 = vmatprep.subr.bf16.mxu0 0
    %2176 = vmatpush2.bf16.xpose.msra.mxu0 0
    %2177 = vmatprep.subr.bf16.mxu0 0
    %2178 = vmatpush2.bf16.xpose.msra.mxu0 0
    %2179 = vmatprep.subr.bf16.mxu0 0
    %2180 = vmatpush2.bf16.xpose.msra.mxu0 0
    %2181 = vmatprep.subr.bf16.mxu0 0
    %2182 = vmatpush2.bf16.xpose.msra.mxu0 0
    %2183 = vmatprep.subr.bf16.mxu0 0
    %2184 = vmatpush2.bf16.xpose.msra.mxu0 0
    %2185 = vmatprep.subr.bf16.mxu0 0
    %2186 = vmatpush2.bf16.xpose.msra.mxu0 0
    %2187 = vmatprep.subr.bf16.mxu0 0
    %2188 = vmatpush2.bf16.xpose.msra.mxu0 0
    %2189 = vmatprep.mubr.bf16.mxu0 0
    %2190 = vmatmul.mubr.bf16.gmra.mxu0 %v2137
    %v2191 = vpop.f32.mrf.mxu0
    %v2192 = vadd.f32 0.0, %v2191
    %v2193 = vpop.f32.mrf.mxu0
    %v2194 = vpop.f32.mrf.mxu0
    %v2195 = vadd.f32 0.0, %v2194
    %v2196 = vpop.f32.mrf.mxu0
    %2197 = vmatprep.mubr.bf16.mxu0 0
    %2198 = vmatmul.mubr.bf16.gmra.mxu0 %v2140
    %v2199 = vpop.f32.mrf.mxu0
    %v2200 = vadd.f32 0.0, %v2199
    %v2201 = vpop.f32.mrf.mxu0
    %v2202 = vpop.f32.mrf.mxu0
    %v2203 = vadd.f32 0.0, %v2202
    %v2204 = vpop.f32.mrf.mxu0
    %2205 = vmatprep.mubr.bf16.mxu0 0
    %2206 = vmatmul.mubr.bf16.gmra.mxu0 %v2143
    %v2207 = vpop.f32.mrf.mxu0
    %v2208 = vadd.f32 0.0, %v2207
    %v2209 = vpop.f32.mrf.mxu0
    %v2210 = vpop.f32.mrf.mxu0
    %v2211 = vadd.f32 0.0, %v2210
    %v2212 = vpop.f32.mrf.mxu0
    %2213 = vdwg.mxu0
    %v2214 = vsel %vm171, %v1022, -inf
    %2215 = vmax.xlane.f32.xlu0 %v2214
    %v2216 = vpop.xlane.xlu0 %2215
    %v2217 = vsel %vm171, %v1025, -inf
    %2218 = vmax.xlane.f32.xlu0 %v2217
    %v2219 = vpop.xlane.xlu0 %2218
    %v2220 = vsel %vm171, %v1030, -inf
    %2221 = vmax.xlane.f32.xlu0 %v2220
    %v2222 = vpop.xlane.xlu0 %2221
    %v2223 = vsel %vm171, %v1033, -inf
    %2224 = vmax.xlane.f32.xlu0 %v2223
    %v2225 = vpop.xlane.xlu0 %2224
    %v2226 = vsel %vm171, %v1038, -inf
    %2227 = vmax.xlane.f32.xlu0 %v2226
    %v2228 = vpop.xlane.xlu0 %2227
    %v2229 = vsel %vm171, %v1041, -inf
    %2230 = vmax.xlane.f32.xlu0 %v2229
    %v2231 = vpop.xlane.xlu0 %2230
    %v2232 = vsel %vm171, %v1100, -inf
    %2233 = vmax.xlane.f32.xlu0 %v2232
    %v2234 = vpop.xlane.xlu0 %2233
    %v2235 = vsel %vm171, %v1103, -inf
    %2236 = vmax.xlane.f32.xlu0 %v2235
    %v2237 = vpop.xlane.xlu0 %2236
    %v2238 = vsel %vm171, %v1108, -inf
    %2239 = vmax.xlane.f32.xlu0 %v2238
    %v2240 = vpop.xlane.xlu0 %2239
    %v2241 = vsel %vm171, %v1111, -inf
    %2242 = vmax.xlane.f32.xlu0 %v2241
    %v2243 = vpop.xlane.xlu0 %2242
    %v2244 = vsel %vm171, %v1116, -inf
    %2245 = vmax.xlane.f32.xlu0 %v2244
    %v2246 = vpop.xlane.xlu0 %2245
    %v2247 = vsel %vm171, %v1119, -inf
    %2248 = vmax.xlane.f32.xlu0 %v2247
    %v2249 = vpop.xlane.xlu0 %2248
    %v2250 = vsel %vm171, %v1178, -inf
    %2251 = vmax.xlane.f32.xlu0 %v2250
    %v2252 = vpop.xlane.xlu0 %2251
    %v2253 = vsel %vm171, %v1181, -inf
    %2254 = vmax.xlane.f32.xlu0 %v2253
    %v2255 = vpop.xlane.xlu0 %2254
    %v2256 = vsel %vm171, %v1186, -inf
    %2257 = vmax.xlane.f32.xlu0 %v2256
    %v2258 = vpop.xlane.xlu0 %2257
    %v2259 = vsel %vm171, %v1189, -inf
    %2260 = vmax.xlane.f32.xlu0 %v2259
    %v2261 = vpop.xlane.xlu0 %2260
    %v2262 = vsel %vm171, %v1194, -inf
    %2263 = vmax.xlane.f32.xlu0 %v2262
    %v2264 = vpop.xlane.xlu0 %2263
    %v2265 = vsel %vm171, %v1197, -inf
    %2266 = vmax.xlane.f32.xlu0 %v2265
    %v2267 = vpop.xlane.xlu0 %2266
    %v2268 = vsel %vm171, %v1256, -inf
    %2269 = vmax.xlane.f32.xlu0 %v2268
    %v2270 = vpop.xlane.xlu0 %2269
    %v2271 = vsel %vm171, %v1259, -inf
    %2272 = vmax.xlane.f32.xlu0 %v2271
    %v2273 = vpop.xlane.xlu0 %2272
    %v2274 = vsel %vm171, %v1264, -inf
    %2275 = vmax.xlane.f32.xlu0 %v2274
    %v2276 = vpop.xlane.xlu0 %2275
    %v2277 = vsel %vm171, %v1267, -inf
    %2278 = vmax.xlane.f32.xlu0 %v2277
    %v2279 = vpop.xlane.xlu0 %2278
    %v2280 = vsel %vm171, %v1272, -inf
    %2281 = vmax.xlane.f32.xlu0 %v2280
    %v2282 = vpop.xlane.xlu0 %2281
    %v2283 = vsel %vm171, %v1275, -inf
    %2284 = vmax.xlane.f32.xlu0 %v2283
    %v2285 = vpop.xlane.xlu0 %2284
    %v2286 = vsel %vm171, %v1334, -inf
    %2287 = vmax.xlane.f32.xlu0 %v2286
    %v2288 = vpop.xlane.xlu0 %2287
    %v2289 = vsel %vm171, %v1337, -inf
    %2290 = vmax.xlane.f32.xlu0 %v2289
    %v2291 = vpop.xlane.xlu0 %2290
    %v2292 = vsel %vm171, %v1342, -inf
    %2293 = vmax.xlane.f32.xlu0 %v2292
    %v2294 = vpop.xlane.xlu0 %2293
    %v2295 = vsel %vm171, %v1345, -inf
    %2296 = vmax.xlane.f32.xlu0 %v2295
    %v2297 = vpop.xlane.xlu0 %2296
    %v2298 = vsel %vm171, %v1350, -inf
    %2299 = vmax.xlane.f32.xlu0 %v2298
    %v2300 = vpop.xlane.xlu0 %2299
    %v2301 = vsel %vm171, %v1353, -inf
    %2302 = vmax.xlane.f32.xlu0 %v2301
    %v2303 = vpop.xlane.xlu0 %2302
    %v2304 = vsel %vm171, %v1412, -inf
    %2305 = vmax.xlane.f32.xlu0 %v2304
    %v2306 = vpop.xlane.xlu0 %2305
    %v2307 = vsel %vm171, %v1415, -inf
    %2308 = vmax.xlane.f32.xlu0 %v2307
    %v2309 = vpop.xlane.xlu0 %2308
    %v2310 = vsel %vm171, %v1420, -inf
    %2311 = vmax.xlane.f32.xlu0 %v2310
    %v2312 = vpop.xlane.xlu0 %2311
    %v2313 = vsel %vm171, %v1423, -inf
    %2314 = vmax.xlane.f32.xlu0 %v2313
    %v2315 = vpop.xlane.xlu0 %2314
    %v2316 = vsel %vm171, %v1428, -inf
    %2317 = vmax.xlane.f32.xlu0 %v2316
    %v2318 = vpop.xlane.xlu0 %2317
    %v2319 = vsel %vm171, %v1431, -inf
    %2320 = vmax.xlane.f32.xlu0 %v2319
    %v2321 = vpop.xlane.xlu0 %2320
    %v2322 = vsel %vm171, %v1490, -inf
    %2323 = vmax.xlane.f32.xlu0 %v2322
    %v2324 = vpop.xlane.xlu0 %2323
    %v2325 = vsel %vm171, %v1493, -inf
    %2326 = vmax.xlane.f32.xlu0 %v2325
    %v2327 = vpop.xlane.xlu0 %2326
    %v2328 = vsel %vm171, %v1498, -inf
    %2329 = vmax.xlane.f32.xlu0 %v2328
    %v2330 = vpop.xlane.xlu0 %2329
    %v2331 = vsel %vm171, %v1501, -inf
    %2332 = vmax.xlane.f32.xlu0 %v2331
    %v2333 = vpop.xlane.xlu0 %2332
    %v2334 = vsel %vm171, %v1506, -inf
    %2335 = vmax.xlane.f32.xlu0 %v2334
    %v2336 = vpop.xlane.xlu0 %2335
    %v2337 = vsel %vm171, %v1509, -inf
    %2338 = vmax.xlane.f32.xlu0 %v2337
    %v2339 = vpop.xlane.xlu0 %2338
    %v2340 = vsel %vm171, %v1568, -inf
    %2341 = vmax.xlane.f32.xlu0 %v2340
    %v2342 = vpop.xlane.xlu0 %2341
    %v2343 = vsel %vm171, %v1571, -inf
    %2344 = vmax.xlane.f32.xlu0 %v2343
    %v2345 = vpop.xlane.xlu0 %2344
    %v2346 = vsel %vm171, %v1576, -inf
    %2347 = vmax.xlane.f32.xlu0 %v2346
    %v2348 = vpop.xlane.xlu0 %2347
    %v2349 = vsel %vm171, %v1579, -inf
    %2350 = vmax.xlane.f32.xlu0 %v2349
    %v2351 = vpop.xlane.xlu0 %2350
    %v2352 = vsel %vm171, %v1584, -inf
    %2353 = vmax.xlane.f32.xlu0 %v2352
    %v2354 = vpop.xlane.xlu0 %2353
    %v2355 = vsel %vm171, %v1587, -inf
    %2356 = vmax.xlane.f32.xlu0 %v2355
    %v2357 = vpop.xlane.xlu0 %2356
    %v2358 = vsel %vm171, %v1646, -inf
    %2359 = vmax.xlane.f32.xlu0 %v2358
    %v2360 = vpop.xlane.xlu0 %2359
    %v2361 = vsel %vm171, %v1649, -inf
    %2362 = vmax.xlane.f32.xlu0 %v2361
    %v2363 = vpop.xlane.xlu0 %2362
    %v2364 = vsel %vm171, %v1654, -inf
    %2365 = vmax.xlane.f32.xlu0 %v2364
    %v2366 = vpop.xlane.xlu0 %2365
    %v2367 = vsel %vm171, %v1657, -inf
    %2368 = vmax.xlane.f32.xlu0 %v2367
    %v2369 = vpop.xlane.xlu0 %2368
    %v2370 = vsel %vm171, %v1662, -inf
    %2371 = vmax.xlane.f32.xlu0 %v2370
    %v2372 = vpop.xlane.xlu0 %2371
    %v2373 = vsel %vm171, %v1665, -inf
    %2374 = vmax.xlane.f32.xlu0 %v2373
    %v2375 = vpop.xlane.xlu0 %2374
    %v2376 = vsel %vm171, %v1724, -inf
    %2377 = vmax.xlane.f32.xlu0 %v2376
    %v2378 = vpop.xlane.xlu0 %2377
    %v2379 = vsel %vm171, %v1727, -inf
    %2380 = vmax.xlane.f32.xlu0 %v2379
    %v2381 = vpop.xlane.xlu0 %2380
    %v2382 = vsel %vm171, %v1732, -inf
    %2383 = vmax.xlane.f32.xlu0 %v2382
    %v2384 = vpop.xlane.xlu0 %2383
    %v2385 = vsel %vm171, %v1735, -inf
    %2386 = vmax.xlane.f32.xlu0 %v2385
    %v2387 = vpop.xlane.xlu0 %2386
    %v2388 = vsel %vm171, %v1740, -inf
    %2389 = vmax.xlane.f32.xlu0 %v2388
    %v2390 = vpop.xlane.xlu0 %2389
    %v2391 = vsel %vm171, %v1743, -inf
    %2392 = vmax.xlane.f32.xlu0 %v2391
    %v2393 = vpop.xlane.xlu0 %2392
    %v2394 = vsel %vm171, %v1802, -inf
    %2395 = vmax.xlane.f32.xlu0 %v2394
    %v2396 = vpop.xlane.xlu0 %2395
    %v2397 = vsel %vm171, %v1805, -inf
    %2398 = vmax.xlane.f32.xlu0 %v2397
    %v2399 = vpop.xlane.xlu0 %2398
    %v2400 = vsel %vm171, %v1810, -inf
    %2401 = vmax.xlane.f32.xlu0 %v2400
    %v2402 = vpop.xlane.xlu0 %2401
    %v2403 = vsel %vm171, %v1813, -inf
    %2404 = vmax.xlane.f32.xlu0 %v2403
    %v2405 = vpop.xlane.xlu0 %2404
    %v2406 = vsel %vm171, %v1818, -inf
    %2407 = vmax.xlane.f32.xlu0 %v2406
    %v2408 = vpop.xlane.xlu0 %2407
    %v2409 = vsel %vm171, %v1821, -inf
    %2410 = vmax.xlane.f32.xlu0 %v2409
    %v2411 = vpop.xlane.xlu0 %2410
    %v2412 = vsel %vm171, %v1880, -inf
    %2413 = vmax.xlane.f32.xlu0 %v2412
    %v2414 = vpop.xlane.xlu0 %2413
    %v2415 = vsel %vm171, %v1883, -inf
    %2416 = vmax.xlane.f32.xlu0 %v2415
    %v2417 = vpop.xlane.xlu0 %2416
    %v2418 = vsel %vm171, %v1888, -inf
    %2419 = vmax.xlane.f32.xlu0 %v2418
    %v2420 = vpop.xlane.xlu0 %2419
    %v2421 = vsel %vm171, %v1891, -inf
    %2422 = vmax.xlane.f32.xlu0 %v2421
    %v2423 = vpop.xlane.xlu0 %2422
    %v2424 = vsel %vm171, %v1896, -inf
    %2425 = vmax.xlane.f32.xlu0 %v2424
    %v2426 = vpop.xlane.xlu0 %2425
    %v2427 = vsel %vm171, %v1899, -inf
    %2428 = vmax.xlane.f32.xlu0 %v2427
    %v2429 = vpop.xlane.xlu0 %2428
    %v2430 = vsel %vm171, %v1958, -inf
    %2431 = vmax.xlane.f32.xlu0 %v2430
    %v2432 = vpop.xlane.xlu0 %2431
    %v2433 = vsel %vm171, %v1961, -inf
    %2434 = vmax.xlane.f32.xlu0 %v2433
    %v2435 = vpop.xlane.xlu0 %2434
    %v2436 = vsel %vm171, %v1966, -inf
    %2437 = vmax.xlane.f32.xlu0 %v2436
    %v2438 = vpop.xlane.xlu0 %2437
    %v2439 = vsel %vm171, %v1969, -inf
    %2440 = vmax.xlane.f32.xlu0 %v2439
    %v2441 = vpop.xlane.xlu0 %2440
    %v2442 = vsel %vm171, %v1974, -inf
    %2443 = vmax.xlane.f32.xlu0 %v2442
    %v2444 = vpop.xlane.xlu0 %2443
    %v2445 = vsel %vm171, %v1977, -inf
    %2446 = vmax.xlane.f32.xlu0 %v2445
    %v2447 = vpop.xlane.xlu0 %2446
    %v2448 = vsel %vm171, %v2036, -inf
    %2449 = vmax.xlane.f32.xlu0 %v2448
    %v2450 = vpop.xlane.xlu0 %2449
    %v2451 = vsel %vm171, %v2039, -inf
    %2452 = vmax.xlane.f32.xlu0 %v2451
    %v2453 = vpop.xlane.xlu0 %2452
    %v2454 = vsel %vm171, %v2044, -inf
    %2455 = vmax.xlane.f32.xlu0 %v2454
    %v2456 = vpop.xlane.xlu0 %2455
    %v2457 = vsel %vm171, %v2047, -inf
    %2458 = vmax.xlane.f32.xlu0 %v2457
    %v2459 = vpop.xlane.xlu0 %2458
    %v2460 = vsel %vm171, %v2052, -inf
    %2461 = vmax.xlane.f32.xlu0 %v2460
    %v2462 = vpop.xlane.xlu0 %2461
    %v2463 = vsel %vm171, %v2055, -inf
    %2464 = vmax.xlane.f32.xlu0 %v2463
    %v2465 = vpop.xlane.xlu0 %2464
    %v2466 = vsel %vm171, %v2114, -inf
    %2467 = vmax.xlane.f32.xlu0 %v2466
    %v2468 = vpop.xlane.xlu0 %2467
    %v2469 = vsel %vm171, %v2117, -inf
    %2470 = vmax.xlane.f32.xlu0 %v2469
    %v2471 = vpop.xlane.xlu0 %2470
    %v2472 = vsel %vm171, %v2122, -inf
    %2473 = vmax.xlane.f32.xlu0 %v2472
    %v2474 = vpop.xlane.xlu0 %2473
    %v2475 = vsel %vm171, %v2125, -inf
    %2476 = vmax.xlane.f32.xlu0 %v2475
    %v2477 = vpop.xlane.xlu0 %2476
    %v2478 = vsel %vm171, %v2130, -inf
    %2479 = vmax.xlane.f32.xlu0 %v2478
    %v2480 = vpop.xlane.xlu0 %2479
    %v2481 = vsel %vm171, %v2133, -inf
    %2482 = vmax.xlane.f32.xlu0 %v2481
    %v2483 = vpop.xlane.xlu0 %2482
    %v2484 = vsel %vm171, %v2192, -inf
    %2485 = vmax.xlane.f32.xlu0 %v2484
    %v2486 = vpop.xlane.xlu0 %2485
    %v2487 = vsel %vm171, %v2195, -inf
    %2488 = vmax.xlane.f32.xlu0 %v2487
    %v2489 = vpop.xlane.xlu0 %2488
    %v2490 = vsel %vm171, %v2200, -inf
    %2491 = vmax.xlane.f32.xlu0 %v2490
    %v2492 = vpop.xlane.xlu0 %2491
    %v2493 = vsel %vm171, %v2203, -inf
    %2494 = vmax.xlane.f32.xlu0 %v2493
    %v2495 = vpop.xlane.xlu0 %2494
    %v2496 = vsel %vm171, %v2208, -inf
    %2497 = vmax.xlane.f32.xlu0 %v2496
    %v2498 = vpop.xlane.xlu0 %2497
    %v2499 = vsel %vm171, %v2211, -inf
    %2500 = vmax.xlane.f32.xlu0 %v2499
    %v2501 = vpop.xlane.xlu0 %2500
    %v2502 = vsub.f32 %v1022, %v2216
    %v2503 = vsub.f32 %v1025, %v2219
    %v2504 = vsub.f32 %v1030, %v2222
    %v2505 = vsub.f32 %v1033, %v2225
    %v2506 = vsub.f32 %v1038, %v2228
    %v2507 = vsub.f32 %v1041, %v2231
    %v2508 = vsub.f32 %v1100, %v2234
    %v2509 = vsub.f32 %v1103, %v2237
    %v2510 = vsub.f32 %v1108, %v2240
    %v2511 = vsub.f32 %v1111, %v2243
    %v2512 = vsub.f32 %v1116, %v2246
    %v2513 = vsub.f32 %v1119, %v2249
    %v2514 = vsub.f32 %v1178, %v2252
    %v2515 = vsub.f32 %v1181, %v2255
    %v2516 = vsub.f32 %v1186, %v2258
    %v2517 = vsub.f32 %v1189, %v2261
    %v2518 = vsub.f32 %v1194, %v2264
    %v2519 = vsub.f32 %v1197, %v2267
    %v2520 = vsub.f32 %v1256, %v2270
    %v2521 = vsub.f32 %v1259, %v2273
    %v2522 = vsub.f32 %v1264, %v2276
    %v2523 = vsub.f32 %v1267, %v2279
    %v2524 = vsub.f32 %v1272, %v2282
    %v2525 = vsub.f32 %v1275, %v2285
    %v2526 = vsub.f32 %v1334, %v2288
    %v2527 = vsub.f32 %v1337, %v2291
    %v2528 = vsub.f32 %v1342, %v2294
    %v2529 = vsub.f32 %v1345, %v2297
    %v2530 = vsub.f32 %v1350, %v2300
    %v2531 = vsub.f32 %v1353, %v2303
    %v2532 = vsub.f32 %v1412, %v2306
    %v2533 = vsub.f32 %v1415, %v2309
    %v2534 = vsub.f32 %v1420, %v2312
    %v2535 = vsub.f32 %v1423, %v2315
    %v2536 = vsub.f32 %v1428, %v2318
    %v2537 = vsub.f32 %v1431, %v2321
    %v2538 = vsub.f32 %v1490, %v2324
    %v2539 = vsub.f32 %v1493, %v2327
    %v2540 = vsub.f32 %v1498, %v2330
    %v2541 = vsub.f32 %v1501, %v2333
    %v2542 = vsub.f32 %v1506, %v2336
    %v2543 = vsub.f32 %v1509, %v2339
    %v2544 = vsub.f32 %v1568, %v2342
    %v2545 = vsub.f32 %v1571, %v2345
    %v2546 = vsub.f32 %v1576, %v2348
    %v2547 = vsub.f32 %v1579, %v2351
    %v2548 = vsub.f32 %v1584, %v2354
    %v2549 = vsub.f32 %v1587, %v2357
    %v2550 = vsub.f32 %v1646, %v2360
    %v2551 = vsub.f32 %v1649, %v2363
    %v2552 = vsub.f32 %v1654, %v2366
    %v2553 = vsub.f32 %v1657, %v2369
    %v2554 = vsub.f32 %v1662, %v2372
    %v2555 = vsub.f32 %v1665, %v2375
    %v2556 = vsub.f32 %v1724, %v2378
    %v2557 = vsub.f32 %v1727, %v2381
    %v2558 = vsub.f32 %v1732, %v2384
    %v2559 = vsub.f32 %v1735, %v2387
    %v2560 = vsub.f32 %v1740, %v2390
    %v2561 = vsub.f32 %v1743, %v2393
    %v2562 = vsub.f32 %v1802, %v2396
    %v2563 = vsub.f32 %v1805, %v2399
    %v2564 = vsub.f32 %v1810, %v2402
    %v2565 = vsub.f32 %v1813, %v2405
    %v2566 = vsub.f32 %v1818, %v2408
    %v2567 = vsub.f32 %v1821, %v2411
    %v2568 = vsub.f32 %v1880, %v2414
    %v2569 = vsub.f32 %v1883, %v2417
    %v2570 = vsub.f32 %v1888, %v2420
    %v2571 = vsub.f32 %v1891, %v2423
    %v2572 = vsub.f32 %v1896, %v2426
    %v2573 = vsub.f32 %v1899, %v2429
    %v2574 = vsub.f32 %v1958, %v2432
    %v2575 = vsub.f32 %v1961, %v2435
    %v2576 = vsub.f32 %v1966, %v2438
    %v2577 = vsub.f32 %v1969, %v2441
    %v2578 = vsub.f32 %v1974, %v2444
    %v2579 = vsub.f32 %v1977, %v2447
    %v2580 = vsub.f32 %v2036, %v2450
    %v2581 = vsub.f32 %v2039, %v2453
    %v2582 = vsub.f32 %v2044, %v2456
    %v2583 = vsub.f32 %v2047, %v2459
    %v2584 = vsub.f32 %v2052, %v2462
    %v2585 = vsub.f32 %v2055, %v2465
    %v2586 = vsub.f32 %v2114, %v2468
    %v2587 = vsub.f32 %v2117, %v2471
    %v2588 = vsub.f32 %v2122, %v2474
    %v2589 = vsub.f32 %v2125, %v2477
    %v2590 = vsub.f32 %v2130, %v2480
    %v2591 = vsub.f32 %v2133, %v2483
    %v2592 = vsub.f32 %v2192, %v2486
    %v2593 = vsub.f32 %v2195, %v2489
    %v2594 = vsub.f32 %v2200, %v2492
    %v2595 = vsub.f32 %v2203, %v2495
    %v2596 = vsub.f32 %v2208, %v2498
    %v2597 = vsub.f32 %v2211, %v2501
    %v2598 = vmul.f32 %v2502, 1.442695
    %v2599 = vpow.pop %v2598
    %v2600 = vmul.f32 %v2503, 1.442695
    %v2601 = vpow.pop %v2600
    %v2602 = vmul.f32 %v2504, 1.442695
    %v2603 = vpow.pop %v2602
    %v2604 = vmul.f32 %v2505, 1.442695
    %v2605 = vpow.pop %v2604
    %v2606 = vmul.f32 %v2506, 1.442695
    %v2607 = vpow.pop %v2606
    %v2608 = vmul.f32 %v2507, 1.442695
    %v2609 = vpow.pop %v2608
    %v2610 = vmul.f32 %v2508, 1.442695
    %v2611 = vpow.pop %v2610
    %v2612 = vmul.f32 %v2509, 1.442695
    %v2613 = vpow.pop %v2612
    %v2614 = vmul.f32 %v2510, 1.442695
    %v2615 = vpow.pop %v2614
    %v2616 = vmul.f32 %v2511, 1.442695
    %v2617 = vpow.pop %v2616
    %v2618 = vmul.f32 %v2512, 1.442695
    %v2619 = vpow.pop %v2618
    %v2620 = vmul.f32 %v2513, 1.442695
    %v2621 = vpow.pop %v2620
    %v2622 = vmul.f32 %v2514, 1.442695
    %v2623 = vpow.pop %v2622
    %v2624 = vmul.f32 %v2515, 1.442695
    %v2625 = vpow.pop %v2624
    %v2626 = vmul.f32 %v2516, 1.442695
    %v2627 = vpow.pop %v2626
    %v2628 = vmul.f32 %v2517, 1.442695
    %v2629 = vpow.pop %v2628
    %v2630 = vmul.f32 %v2518, 1.442695
    %v2631 = vpow.pop %v2630
    %v2632 = vmul.f32 %v2519, 1.442695
    %v2633 = vpow.pop %v2632
    %v2634 = vmul.f32 %v2520, 1.442695
    %v2635 = vpow.pop %v2634
    %v2636 = vmul.f32 %v2521, 1.442695
    %v2637 = vpow.pop %v2636
    %v2638 = vmul.f32 %v2522, 1.442695
    %v2639 = vpow.pop %v2638
    %v2640 = vmul.f32 %v2523, 1.442695
    %v2641 = vpow.pop %v2640
    %v2642 = vmul.f32 %v2524, 1.442695
    %v2643 = vpow.pop %v2642
    %v2644 = vmul.f32 %v2525, 1.442695
    %v2645 = vpow.pop %v2644
    %v2646 = vmul.f32 %v2526, 1.442695
    %v2647 = vpow.pop %v2646
    %v2648 = vmul.f32 %v2527, 1.442695
    %v2649 = vpow.pop %v2648
    %v2650 = vmul.f32 %v2528, 1.442695
    %v2651 = vpow.pop %v2650
    %v2652 = vmul.f32 %v2529, 1.442695
    %v2653 = vpow.pop %v2652
    %v2654 = vmul.f32 %v2530, 1.442695
    %v2655 = vpow.pop %v2654
    %v2656 = vmul.f32 %v2531, 1.442695
    %v2657 = vpow.pop %v2656
    %v2658 = vmul.f32 %v2532, 1.442695
    %v2659 = vpow.pop %v2658
    %v2660 = vmul.f32 %v2533, 1.442695
    %v2661 = vpow.pop %v2660
    %v2662 = vmul.f32 %v2534, 1.442695
    %v2663 = vpow.pop %v2662
    %v2664 = vmul.f32 %v2535, 1.442695
    %v2665 = vpow.pop %v2664
    %v2666 = vmul.f32 %v2536, 1.442695
    %v2667 = vpow.pop %v2666
    %v2668 = vmul.f32 %v2537, 1.442695
    %v2669 = vpow.pop %v2668
    %v2670 = vmul.f32 %v2538, 1.442695
    %v2671 = vpow.pop %v2670
    %v2672 = vmul.f32 %v2539, 1.442695
    %v2673 = vpow.pop %v2672
    %v2674 = vmul.f32 %v2540, 1.442695
    %v2675 = vpow.pop %v2674
    %v2676 = vmul.f32 %v2541, 1.442695
    %v2677 = vpow.pop %v2676
    %v2678 = vmul.f32 %v2542, 1.442695
    %v2679 = vpow.pop %v2678
    %v2680 = vmul.f32 %v2543, 1.442695
    %v2681 = vpow.pop %v2680
    %v2682 = vmul.f32 %v2544, 1.442695
    %v2683 = vpow.pop %v2682
    %v2684 = vmul.f32 %v2545, 1.442695
    %v2685 = vpow.pop %v2684
    %v2686 = vmul.f32 %v2546, 1.442695
    %v2687 = vpow.pop %v2686
    %v2688 = vmul.f32 %v2547, 1.442695
    %v2689 = vpow.pop %v2688
    %v2690 = vmul.f32 %v2548, 1.442695
    %v2691 = vpow.pop %v2690
    %v2692 = vmul.f32 %v2549, 1.442695
    %v2693 = vpow.pop %v2692
    %v2694 = vmul.f32 %v2550, 1.442695
    %v2695 = vpow.pop %v2694
    %v2696 = vmul.f32 %v2551, 1.442695
    %v2697 = vpow.pop %v2696
    %v2698 = vmul.f32 %v2552, 1.442695
    %v2699 = vpow.pop %v2698
    %v2700 = vmul.f32 %v2553, 1.442695
    %v2701 = vpow.pop %v2700
    %v2702 = vmul.f32 %v2554, 1.442695
    %v2703 = vpow.pop %v2702
    %v2704 = vmul.f32 %v2555, 1.442695
    %v2705 = vpow.pop %v2704
    %v2706 = vmul.f32 %v2556, 1.442695
    %v2707 = vpow.pop %v2706
    %v2708 = vmul.f32 %v2557, 1.442695
    %v2709 = vpow.pop %v2708
    %v2710 = vmul.f32 %v2558, 1.442695
    %v2711 = vpow.pop %v2710
    %v2712 = vmul.f32 %v2559, 1.442695
    %v2713 = vpow.pop %v2712
    %v2714 = vmul.f32 %v2560, 1.442695
    %v2715 = vpow.pop %v2714
    %v2716 = vmul.f32 %v2561, 1.442695
    %v2717 = vpow.pop %v2716
    %v2718 = vmul.f32 %v2562, 1.442695
    %v2719 = vpow.pop %v2718
    %v2720 = vmul.f32 %v2563, 1.442695
    %v2721 = vpow.pop %v2720
    %v2722 = vmul.f32 %v2564, 1.442695
    %v2723 = vpow.pop %v2722
    %v2724 = vmul.f32 %v2565, 1.442695
    %v2725 = vpow.pop %v2724
    %v2726 = vmul.f32 %v2566, 1.442695
    %v2727 = vpow.pop %v2726
    %v2728 = vmul.f32 %v2567, 1.442695
    %v2729 = vpow.pop %v2728
    %v2730 = vmul.f32 %v2568, 1.442695
    %v2731 = vpow.pop %v2730
    %v2732 = vmul.f32 %v2569, 1.442695
    %v2733 = vpow.pop %v2732
    %v2734 = vmul.f32 %v2570, 1.442695
    %v2735 = vpow.pop %v2734
    %v2736 = vmul.f32 %v2571, 1.442695
    %v2737 = vpow.pop %v2736
    %v2738 = vmul.f32 %v2572, 1.442695
    %v2739 = vpow.pop %v2738
    %v2740 = vmul.f32 %v2573, 1.442695
    %v2741 = vpow.pop %v2740
    %v2742 = vmul.f32 %v2574, 1.442695
    %v2743 = vpow.pop %v2742
    %v2744 = vmul.f32 %v2575, 1.442695
    %v2745 = vpow.pop %v2744
    %v2746 = vmul.f32 %v2576, 1.442695
    %v2747 = vpow.pop %v2746
    %v2748 = vmul.f32 %v2577, 1.442695
    %v2749 = vpow.pop %v2748
    %v2750 = vmul.f32 %v2578, 1.442695
    %v2751 = vpow.pop %v2750
    %v2752 = vmul.f32 %v2579, 1.442695
    %v2753 = vpow.pop %v2752
    %v2754 = vmul.f32 %v2580, 1.442695
    %v2755 = vpow.pop %v2754
    %v2756 = vmul.f32 %v2581, 1.442695
    %v2757 = vpow.pop %v2756
    %v2758 = vmul.f32 %v2582, 1.442695
    %v2759 = vpow.pop %v2758
    %v2760 = vmul.f32 %v2583, 1.442695
    %v2761 = vpow.pop %v2760
    %v2762 = vmul.f32 %v2584, 1.442695
    %v2763 = vpow.pop %v2762
    %v2764 = vmul.f32 %v2585, 1.442695
    %v2765 = vpow.pop %v2764
    %v2766 = vmul.f32 %v2586, 1.442695
    %v2767 = vpow.pop %v2766
    %v2768 = vmul.f32 %v2587, 1.442695
    %v2769 = vpow.pop %v2768
    %v2770 = vmul.f32 %v2588, 1.442695
    %v2771 = vpow.pop %v2770
    %v2772 = vmul.f32 %v2589, 1.442695
    %v2773 = vpow.pop %v2772
    %v2774 = vmul.f32 %v2590, 1.442695
    %v2775 = vpow.pop %v2774
    %v2776 = vmul.f32 %v2591, 1.442695
    %v2777 = vpow.pop %v2776
    %v2778 = vmul.f32 %v2592, 1.442695
    %v2779 = vpow.pop %v2778
    %v2780 = vmul.f32 %v2593, 1.442695
    %v2781 = vpow.pop %v2780
    %v2782 = vmul.f32 %v2594, 1.442695
    %v2783 = vpow.pop %v2782
    %v2784 = vmul.f32 %v2595, 1.442695
    %v2785 = vpow.pop %v2784
    %v2786 = vmul.f32 %v2596, 1.442695
    %v2787 = vpow.pop %v2786
    %v2788 = vmul.f32 %v2597, 1.442695
    %v2789 = vpow.pop %v2788
    %v2790 = vsel %vm171, %v2599, 0.0
    %2791 = vadd.xlane.f32.xlu0 %v2790
    %v2792 = vpop.xlane.xlu0 %2791
    %v2793 = vsel %vm171, %v2601, 0.0
    %2794 = vadd.xlane.f32.xlu0 %v2793
    %v2795 = vpop.xlane.xlu0 %2794
    %v2796 = vsel %vm171, %v2603, 0.0
    %2797 = vadd.xlane.f32.xlu0 %v2796
    %v2798 = vpop.xlane.xlu0 %2797
    %v2799 = vsel %vm171, %v2605, 0.0
    %2800 = vadd.xlane.f32.xlu0 %v2799
    %v2801 = vpop.xlane.xlu0 %2800
    %v2802 = vsel %vm171, %v2607, 0.0
    %2803 = vadd.xlane.f32.xlu0 %v2802
    %v2804 = vpop.xlane.xlu0 %2803
    %v2805 = vsel %vm171, %v2609, 0.0
    %2806 = vadd.xlane.f32.xlu0 %v2805
    %v2807 = vpop.xlane.xlu0 %2806
    %v2808 = vsel %vm171, %v2611, 0.0
    %2809 = vadd.xlane.f32.xlu0 %v2808
    %v2810 = vpop.xlane.xlu0 %2809
    %v2811 = vsel %vm171, %v2613, 0.0
    %2812 = vadd.xlane.f32.xlu0 %v2811
    %v2813 = vpop.xlane.xlu0 %2812
    %v2814 = vsel %vm171, %v2615, 0.0
    %2815 = vadd.xlane.f32.xlu0 %v2814
    %v2816 = vpop.xlane.xlu0 %2815
    %v2817 = vsel %vm171, %v2617, 0.0
    %2818 = vadd.xlane.f32.xlu0 %v2817
    %v2819 = vpop.xlane.xlu0 %2818
    %v2820 = vsel %vm171, %v2619, 0.0
    %2821 = vadd.xlane.f32.xlu0 %v2820
    %v2822 = vpop.xlane.xlu0 %2821
    %v2823 = vsel %vm171, %v2621, 0.0
    %2824 = vadd.xlane.f32.xlu0 %v2823
    %v2825 = vpop.xlane.xlu0 %2824
    %v2826 = vsel %vm171, %v2623, 0.0
    %2827 = vadd.xlane.f32.xlu0 %v2826
    %v2828 = vpop.xlane.xlu0 %2827
    %v2829 = vsel %vm171, %v2625, 0.0
    %2830 = vadd.xlane.f32.xlu0 %v2829
    %v2831 = vpop.xlane.xlu0 %2830
    %v2832 = vsel %vm171, %v2627, 0.0
    %2833 = vadd.xlane.f32.xlu0 %v2832
    %v2834 = vpop.xlane.xlu0 %2833
    %v2835 = vsel %vm171, %v2629, 0.0
    %2836 = vadd.xlane.f32.xlu0 %v2835
    %v2837 = vpop.xlane.xlu0 %2836
    %v2838 = vsel %vm171, %v2631, 0.0
    %2839 = vadd.xlane.f32.xlu0 %v2838
    %v2840 = vpop.xlane.xlu0 %2839
    %v2841 = vsel %vm171, %v2633, 0.0
    %2842 = vadd.xlane.f32.xlu0 %v2841
    %v2843 = vpop.xlane.xlu0 %2842
    %v2844 = vsel %vm171, %v2635, 0.0
    %2845 = vadd.xlane.f32.xlu0 %v2844
    %v2846 = vpop.xlane.xlu0 %2845
    %v2847 = vsel %vm171, %v2637, 0.0
    %2848 = vadd.xlane.f32.xlu0 %v2847
    %v2849 = vpop.xlane.xlu0 %2848
    %v2850 = vsel %vm171, %v2639, 0.0
    %2851 = vadd.xlane.f32.xlu0 %v2850
    %v2852 = vpop.xlane.xlu0 %2851
    %v2853 = vsel %vm171, %v2641, 0.0
    %2854 = vadd.xlane.f32.xlu0 %v2853
    %v2855 = vpop.xlane.xlu0 %2854
    %v2856 = vsel %vm171, %v2643, 0.0
    %2857 = vadd.xlane.f32.xlu0 %v2856
    %v2858 = vpop.xlane.xlu0 %2857
    %v2859 = vsel %vm171, %v2645, 0.0
    %2860 = vadd.xlane.f32.xlu0 %v2859
    %v2861 = vpop.xlane.xlu0 %2860
    %v2862 = vsel %vm171, %v2647, 0.0
    %2863 = vadd.xlane.f32.xlu0 %v2862
    %v2864 = vpop.xlane.xlu0 %2863
    %v2865 = vsel %vm171, %v2649, 0.0
    %2866 = vadd.xlane.f32.xlu0 %v2865
    %v2867 = vpop.xlane.xlu0 %2866
    %v2868 = vsel %vm171, %v2651, 0.0
    %2869 = vadd.xlane.f32.xlu0 %v2868
    %v2870 = vpop.xlane.xlu0 %2869
    %v2871 = vsel %vm171, %v2653, 0.0
    %2872 = vadd.xlane.f32.xlu0 %v2871
    %v2873 = vpop.xlane.xlu0 %2872
    %v2874 = vsel %vm171, %v2655, 0.0
    %2875 = vadd.xlane.f32.xlu0 %v2874
    %v2876 = vpop.xlane.xlu0 %2875
    %v2877 = vsel %vm171, %v2657, 0.0
    %2878 = vadd.xlane.f32.xlu0 %v2877
    %v2879 = vpop.xlane.xlu0 %2878
    %v2880 = vsel %vm171, %v2659, 0.0
    %2881 = vadd.xlane.f32.xlu0 %v2880
    %v2882 = vpop.xlane.xlu0 %2881
    %v2883 = vsel %vm171, %v2661, 0.0
    %2884 = vadd.xlane.f32.xlu0 %v2883
    %v2885 = vpop.xlane.xlu0 %2884
    %v2886 = vsel %vm171, %v2663, 0.0
    %2887 = vadd.xlane.f32.xlu0 %v2886
    %v2888 = vpop.xlane.xlu0 %2887
    %v2889 = vsel %vm171, %v2665, 0.0
    %2890 = vadd.xlane.f32.xlu0 %v2889
    %v2891 = vpop.xlane.xlu0 %2890
    %v2892 = vsel %vm171, %v2667, 0.0
    %2893 = vadd.xlane.f32.xlu0 %v2892
    %v2894 = vpop.xlane.xlu0 %2893
    %v2895 = vsel %vm171, %v2669, 0.0
    %2896 = vadd.xlane.f32.xlu0 %v2895
    %v2897 = vpop.xlane.xlu0 %2896
    %v2898 = vsel %vm171, %v2671, 0.0
    %2899 = vadd.xlane.f32.xlu0 %v2898
    %v2900 = vpop.xlane.xlu0 %2899
    %v2901 = vsel %vm171, %v2673, 0.0
    %2902 = vadd.xlane.f32.xlu0 %v2901
    %v2903 = vpop.xlane.xlu0 %2902
    %v2904 = vsel %vm171, %v2675, 0.0
    %2905 = vadd.xlane.f32.xlu0 %v2904
    %v2906 = vpop.xlane.xlu0 %2905
    %v2907 = vsel %vm171, %v2677, 0.0
    %2908 = vadd.xlane.f32.xlu0 %v2907
    %v2909 = vpop.xlane.xlu0 %2908
    %v2910 = vsel %vm171, %v2679, 0.0
    %2911 = vadd.xlane.f32.xlu0 %v2910
    %v2912 = vpop.xlane.xlu0 %2911
    %v2913 = vsel %vm171, %v2681, 0.0
    %2914 = vadd.xlane.f32.xlu0 %v2913
    %v2915 = vpop.xlane.xlu0 %2914
    %v2916 = vsel %vm171, %v2683, 0.0
    %2917 = vadd.xlane.f32.xlu0 %v2916
    %v2918 = vpop.xlane.xlu0 %2917
    %v2919 = vsel %vm171, %v2685, 0.0
    %2920 = vadd.xlane.f32.xlu0 %v2919
    %v2921 = vpop.xlane.xlu0 %2920
    %v2922 = vsel %vm171, %v2687, 0.0
    %2923 = vadd.xlane.f32.xlu0 %v2922
    %v2924 = vpop.xlane.xlu0 %2923
    %v2925 = vsel %vm171, %v2689, 0.0
    %2926 = vadd.xlane.f32.xlu0 %v2925
    %v2927 = vpop.xlane.xlu0 %2926
    %v2928 = vsel %vm171, %v2691, 0.0
    %2929 = vadd.xlane.f32.xlu0 %v2928
    %v2930 = vpop.xlane.xlu0 %2929
    %v2931 = vsel %vm171, %v2693, 0.0
    %2932 = vadd.xlane.f32.xlu0 %v2931
    %v2933 = vpop.xlane.xlu0 %2932
    %v2934 = vsel %vm171, %v2695, 0.0
    %2935 = vadd.xlane.f32.xlu0 %v2934
    %v2936 = vpop.xlane.xlu0 %2935
    %v2937 = vsel %vm171, %v2697, 0.0
    %2938 = vadd.xlane.f32.xlu0 %v2937
    %v2939 = vpop.xlane.xlu0 %2938
    %v2940 = vsel %vm171, %v2699, 0.0
    %2941 = vadd.xlane.f32.xlu0 %v2940
    %v2942 = vpop.xlane.xlu0 %2941
    %v2943 = vsel %vm171, %v2701, 0.0
    %2944 = vadd.xlane.f32.xlu0 %v2943
    %v2945 = vpop.xlane.xlu0 %2944
    %v2946 = vsel %vm171, %v2703, 0.0
    %2947 = vadd.xlane.f32.xlu0 %v2946
    %v2948 = vpop.xlane.xlu0 %2947
    %v2949 = vsel %vm171, %v2705, 0.0
    %2950 = vadd.xlane.f32.xlu0 %v2949
    %v2951 = vpop.xlane.xlu0 %2950
    %v2952 = vsel %vm171, %v2707, 0.0
    %2953 = vadd.xlane.f32.xlu0 %v2952
    %v2954 = vpop.xlane.xlu0 %2953
    %v2955 = vsel %vm171, %v2709, 0.0
    %2956 = vadd.xlane.f32.xlu0 %v2955
    %v2957 = vpop.xlane.xlu0 %2956
    %v2958 = vsel %vm171, %v2711, 0.0
    %2959 = vadd.xlane.f32.xlu0 %v2958
    %v2960 = vpop.xlane.xlu0 %2959
    %v2961 = vsel %vm171, %v2713, 0.0
    %2962 = vadd.xlane.f32.xlu0 %v2961
    %v2963 = vpop.xlane.xlu0 %2962
    %v2964 = vsel %vm171, %v2715, 0.0
    %2965 = vadd.xlane.f32.xlu0 %v2964
    %v2966 = vpop.xlane.xlu0 %2965
    %v2967 = vsel %vm171, %v2717, 0.0
    %2968 = vadd.xlane.f32.xlu0 %v2967
    %v2969 = vpop.xlane.xlu0 %2968
    %v2970 = vsel %vm171, %v2719, 0.0
    %2971 = vadd.xlane.f32.xlu0 %v2970
    %v2972 = vpop.xlane.xlu0 %2971
    %v2973 = vsel %vm171, %v2721, 0.0
    %2974 = vadd.xlane.f32.xlu0 %v2973
    %v2975 = vpop.xlane.xlu0 %2974
    %v2976 = vsel %vm171, %v2723, 0.0
    %2977 = vadd.xlane.f32.xlu0 %v2976
    %v2978 = vpop.xlane.xlu0 %2977
    %v2979 = vsel %vm171, %v2725, 0.0
    %2980 = vadd.xlane.f32.xlu0 %v2979
    %v2981 = vpop.xlane.xlu0 %2980
    %v2982 = vsel %vm171, %v2727, 0.0
    %2983 = vadd.xlane.f32.xlu0 %v2982
    %v2984 = vpop.xlane.xlu0 %2983
    %v2985 = vsel %vm171, %v2729, 0.0
    %2986 = vadd.xlane.f32.xlu0 %v2985
    %v2987 = vpop.xlane.xlu0 %2986
    %v2988 = vsel %vm171, %v2731, 0.0
    %2989 = vadd.xlane.f32.xlu0 %v2988
    %v2990 = vpop.xlane.xlu0 %2989
    %v2991 = vsel %vm171, %v2733, 0.0
    %2992 = vadd.xlane.f32.xlu0 %v2991
    %v2993 = vpop.xlane.xlu0 %2992
    %v2994 = vsel %vm171, %v2735, 0.0
    %2995 = vadd.xlane.f32.xlu0 %v2994
    %v2996 = vpop.xlane.xlu0 %2995
    %v2997 = vsel %vm171, %v2737, 0.0
    %2998 = vadd.xlane.f32.xlu0 %v2997
    %v2999 = vpop.xlane.xlu0 %2998
    %v3000 = vsel %vm171, %v2739, 0.0
    %3001 = vadd.xlane.f32.xlu0 %v3000
    %v3002 = vpop.xlane.xlu0 %3001
    %v3003 = vsel %vm171, %v2741, 0.0
    %3004 = vadd.xlane.f32.xlu0 %v3003
    %v3005 = vpop.xlane.xlu0 %3004
    %v3006 = vsel %vm171, %v2743, 0.0
    %3007 = vadd.xlane.f32.xlu0 %v3006
    %v3008 = vpop.xlane.xlu0 %3007
    %v3009 = vsel %vm171, %v2745, 0.0
    %3010 = vadd.xlane.f32.xlu0 %v3009
    %v3011 = vpop.xlane.xlu0 %3010
    %v3012 = vsel %vm171, %v2747, 0.0
    %3013 = vadd.xlane.f32.xlu0 %v3012
    %v3014 = vpop.xlane.xlu0 %3013
    %v3015 = vsel %vm171, %v2749, 0.0
    %3016 = vadd.xlane.f32.xlu0 %v3015
    %v3017 = vpop.xlane.xlu0 %3016
    %v3018 = vsel %vm171, %v2751, 0.0
    %3019 = vadd.xlane.f32.xlu0 %v3018
    %v3020 = vpop.xlane.xlu0 %3019
    %v3021 = vsel %vm171, %v2753, 0.0
    %3022 = vadd.xlane.f32.xlu0 %v3021
    %v3023 = vpop.xlane.xlu0 %3022
    %v3024 = vsel %vm171, %v2755, 0.0
    %3025 = vadd.xlane.f32.xlu0 %v3024
    %v3026 = vpop.xlane.xlu0 %3025
    %v3027 = vsel %vm171, %v2757, 0.0
    %3028 = vadd.xlane.f32.xlu0 %v3027
    %v3029 = vpop.xlane.xlu0 %3028
    %v3030 = vsel %vm171, %v2759, 0.0
    %3031 = vadd.xlane.f32.xlu0 %v3030
    %v3032 = vpop.xlane.xlu0 %3031
    %v3033 = vsel %vm171, %v2761, 0.0
    %3034 = vadd.xlane.f32.xlu0 %v3033
    %v3035 = vpop.xlane.xlu0 %3034
    %v3036 = vsel %vm171, %v2763, 0.0
    %3037 = vadd.xlane.f32.xlu0 %v3036
    %v3038 = vpop.xlane.xlu0 %3037
    %v3039 = vsel %vm171, %v2765, 0.0
    %3040 = vadd.xlane.f32.xlu0 %v3039
    %v3041 = vpop.xlane.xlu0 %3040
    %v3042 = vsel %vm171, %v2767, 0.0
    %3043 = vadd.xlane.f32.xlu0 %v3042
    %v3044 = vpop.xlane.xlu0 %3043
    %v3045 = vsel %vm171, %v2769, 0.0
    %3046 = vadd.xlane.f32.xlu0 %v3045
    %v3047 = vpop.xlane.xlu0 %3046
    %v3048 = vsel %vm171, %v2771, 0.0
    %3049 = vadd.xlane.f32.xlu0 %v3048
    %v3050 = vpop.xlane.xlu0 %3049
    %v3051 = vsel %vm171, %v2773, 0.0
    %3052 = vadd.xlane.f32.xlu0 %v3051
    %v3053 = vpop.xlane.xlu0 %3052
    %v3054 = vsel %vm171, %v2775, 0.0
    %3055 = vadd.xlane.f32.xlu0 %v3054
    %v3056 = vpop.xlane.xlu0 %3055
    %v3057 = vsel %vm171, %v2777, 0.0
    %3058 = vadd.xlane.f32.xlu0 %v3057
    %v3059 = vpop.xlane.xlu0 %3058
    %v3060 = vsel %vm171, %v2779, 0.0
    %3061 = vadd.xlane.f32.xlu0 %v3060
    %v3062 = vpop.xlane.xlu0 %3061
    %v3063 = vsel %vm171, %v2781, 0.0
    %3064 = vadd.xlane.f32.xlu0 %v3063
    %v3065 = vpop.xlane.xlu0 %3064
    %v3066 = vsel %vm171, %v2783, 0.0
    %3067 = vadd.xlane.f32.xlu0 %v3066
    %v3068 = vpop.xlane.xlu0 %3067
    %v3069 = vsel %vm171, %v2785, 0.0
    %3070 = vadd.xlane.f32.xlu0 %v3069
    %v3071 = vpop.xlane.xlu0 %3070
    %v3072 = vsel %vm171, %v2787, 0.0
    %3073 = vadd.xlane.f32.xlu0 %v3072
    %v3074 = vpop.xlane.xlu0 %3073
    %v3075 = vsel %vm171, %v2789, 0.0
    %3076 = vadd.xlane.f32.xlu0 %v3075
    %v3077 = vpop.xlane.xlu0 %3076
    %v3078 = vrcp.pop %v2792
    %v3079 = vrcp.pop %v2795
    %v3080 = vrcp.pop %v2798
    %v3081 = vrcp.pop %v2801
    %v3082 = vrcp.pop %v2804
    %v3083 = vrcp.pop %v2807
    %v3084 = vrcp.pop %v2810
    %v3085 = vrcp.pop %v2813
    %v3086 = vrcp.pop %v2816
    %v3087 = vrcp.pop %v2819
    %v3088 = vrcp.pop %v2822
    %v3089 = vrcp.pop %v2825
    %v3090 = vrcp.pop %v2828
    %v3091 = vrcp.pop %v2831
    %v3092 = vrcp.pop %v2834
    %v3093 = vrcp.pop %v2837
    %v3094 = vrcp.pop %v2840
    %v3095 = vrcp.pop %v2843
    %v3096 = vrcp.pop %v2846
    %v3097 = vrcp.pop %v2849
    %v3098 = vrcp.pop %v2852
    %v3099 = vrcp.pop %v2855
    %v3100 = vrcp.pop %v2858
    %v3101 = vrcp.pop %v2861
    %v3102 = vrcp.pop %v2864
    %v3103 = vrcp.pop %v2867
    %v3104 = vrcp.pop %v2870
    %v3105 = vrcp.pop %v2873
    %v3106 = vrcp.pop %v2876
    %v3107 = vrcp.pop %v2879
    %v3108 = vrcp.pop %v2882
    %v3109 = vrcp.pop %v2885
    %v3110 = vrcp.pop %v2888
    %v3111 = vrcp.pop %v2891
    %v3112 = vrcp.pop %v2894
    %v3113 = vrcp.pop %v2897
    %v3114 = vrcp.pop %v2900
    %v3115 = vrcp.pop %v2903
    %v3116 = vrcp.pop %v2906
    %v3117 = vrcp.pop %v2909
    %v3118 = vrcp.pop %v2912
    %v3119 = vrcp.pop %v2915
    %v3120 = vrcp.pop %v2918
    %v3121 = vrcp.pop %v2921
    %v3122 = vrcp.pop %v2924
    %v3123 = vrcp.pop %v2927
    %v3124 = vrcp.pop %v2930
    %v3125 = vrcp.pop %v2933
    %v3126 = vrcp.pop %v2936
    %v3127 = vrcp.pop %v2939
    %v3128 = vrcp.pop %v2942
    %v3129 = vrcp.pop %v2945
    %v3130 = vrcp.pop %v2948
    %v3131 = vrcp.pop %v2951
    %v3132 = vrcp.pop %v2954
    %v3133 = vrcp.pop %v2957
    %v3134 = vrcp.pop %v2960
    %v3135 = vrcp.pop %v2963
    %v3136 = vrcp.pop %v2966
    %v3137 = vrcp.pop %v2969
    %v3138 = vrcp.pop %v2972
    %v3139 = vrcp.pop %v2975
    %v3140 = vrcp.pop %v2978
    %v3141 = vrcp.pop %v2981
    %v3142 = vrcp.pop %v2984
    %v3143 = vrcp.pop %v2987
    %v3144 = vrcp.pop %v2990
    %v3145 = vrcp.pop %v2993
    %v3146 = vrcp.pop %v2996
    %v3147 = vrcp.pop %v2999
    %v3148 = vrcp.pop %v3002
    %v3149 = vrcp.pop %v3005
    %v3150 = vrcp.pop %v3008
    %v3151 = vrcp.pop %v3011
    %v3152 = vrcp.pop %v3014
    %v3153 = vrcp.pop %v3017
    %v3154 = vrcp.pop %v3020
    %v3155 = vrcp.pop %v3023
    %v3156 = vrcp.pop %v3026
    %v3157 = vrcp.pop %v3029
    %v3158 = vrcp.pop %v3032
    %v3159 = vrcp.pop %v3035
    %v3160 = vrcp.pop %v3038
    %v3161 = vrcp.pop %v3041
    %v3162 = vrcp.pop %v3044
    %v3163 = vrcp.pop %v3047
    %v3164 = vrcp.pop %v3050
    %v3165 = vrcp.pop %v3053
    %v3166 = vrcp.pop %v3056
    %v3167 = vrcp.pop %v3059
    %v3168 = vrcp.pop %v3062
    %v3169 = vrcp.pop %v3065
    %v3170 = vrcp.pop %v3068
    %v3171 = vrcp.pop %v3071
    %v3172 = vrcp.pop %v3074
    %v3173 = vrcp.pop %v3077
    %v3174 = vmul.f32 %v2599, %v3078
    %v3175 = vmul.f32 %v2601, %v3079
    %v3176 = vmul.f32 %v2603, %v3080
    %v3177 = vmul.f32 %v2605, %v3081
    %v3178 = vmul.f32 %v2607, %v3082
    %v3179 = vmul.f32 %v2609, %v3083
    %v3180 = vmul.f32 %v2611, %v3084
    %v3181 = vmul.f32 %v2613, %v3085
    %v3182 = vmul.f32 %v2615, %v3086
    %v3183 = vmul.f32 %v2617, %v3087
    %v3184 = vmul.f32 %v2619, %v3088
    %v3185 = vmul.f32 %v2621, %v3089
    %v3186 = vmul.f32 %v2623, %v3090
    %v3187 = vmul.f32 %v2625, %v3091
    %v3188 = vmul.f32 %v2627, %v3092
    %v3189 = vmul.f32 %v2629, %v3093
    %v3190 = vmul.f32 %v2631, %v3094
    %v3191 = vmul.f32 %v2633, %v3095
    %v3192 = vmul.f32 %v2635, %v3096
    %v3193 = vmul.f32 %v2637, %v3097
    %v3194 = vmul.f32 %v2639, %v3098
    %v3195 = vmul.f32 %v2641, %v3099
    %v3196 = vmul.f32 %v2643, %v3100
    %v3197 = vmul.f32 %v2645, %v3101
    %v3198 = vmul.f32 %v2647, %v3102
    %v3199 = vmul.f32 %v2649, %v3103
    %v3200 = vmul.f32 %v2651, %v3104
    %v3201 = vmul.f32 %v2653, %v3105
    %v3202 = vmul.f32 %v2655, %v3106
    %v3203 = vmul.f32 %v2657, %v3107
    %v3204 = vmul.f32 %v2659, %v3108
    %v3205 = vmul.f32 %v2661, %v3109
    %v3206 = vmul.f32 %v2663, %v3110
    %v3207 = vmul.f32 %v2665, %v3111
    %v3208 = vmul.f32 %v2667, %v3112
    %v3209 = vmul.f32 %v2669, %v3113
    %v3210 = vmul.f32 %v2671, %v3114
    %v3211 = vmul.f32 %v2673, %v3115
    %v3212 = vmul.f32 %v2675, %v3116
    %v3213 = vmul.f32 %v2677, %v3117
    %v3214 = vmul.f32 %v2679, %v3118
    %v3215 = vmul.f32 %v2681, %v3119
    %v3216 = vmul.f32 %v2683, %v3120
    %v3217 = vmul.f32 %v2685, %v3121
    %v3218 = vmul.f32 %v2687, %v3122
    %v3219 = vmul.f32 %v2689, %v3123
    %v3220 = vmul.f32 %v2691, %v3124
    %v3221 = vmul.f32 %v2693, %v3125
    %v3222 = vmul.f32 %v2695, %v3126
    %v3223 = vmul.f32 %v2697, %v3127
    %v3224 = vmul.f32 %v2699, %v3128
    %v3225 = vmul.f32 %v2701, %v3129
    %v3226 = vmul.f32 %v2703, %v3130
    %v3227 = vmul.f32 %v2705, %v3131
    %v3228 = vmul.f32 %v2707, %v3132
    %v3229 = vmul.f32 %v2709, %v3133
    %v3230 = vmul.f32 %v2711, %v3134
    %v3231 = vmul.f32 %v2713, %v3135
    %v3232 = vmul.f32 %v2715, %v3136
    %v3233 = vmul.f32 %v2717, %v3137
    %v3234 = vmul.f32 %v2719, %v3138
    %v3235 = vmul.f32 %v2721, %v3139
    %v3236 = vmul.f32 %v2723, %v3140
    %v3237 = vmul.f32 %v2725, %v3141
    %v3238 = vmul.f32 %v2727, %v3142
    %v3239 = vmul.f32 %v2729, %v3143
    %v3240 = vmul.f32 %v2731, %v3144
    %v3241 = vmul.f32 %v2733, %v3145
    %v3242 = vmul.f32 %v2735, %v3146
    %v3243 = vmul.f32 %v2737, %v3147
    %v3244 = vmul.f32 %v2739, %v3148
    %v3245 = vmul.f32 %v2741, %v3149
    %v3246 = vmul.f32 %v2743, %v3150
    %v3247 = vmul.f32 %v2745, %v3151
    %v3248 = vmul.f32 %v2747, %v3152
    %v3249 = vmul.f32 %v2749, %v3153
    %v3250 = vmul.f32 %v2751, %v3154
    %v3251 = vmul.f32 %v2753, %v3155
    %v3252 = vmul.f32 %v2755, %v3156
    %v3253 = vmul.f32 %v2757, %v3157
    %v3254 = vmul.f32 %v2759, %v3158
    %v3255 = vmul.f32 %v2761, %v3159
    %v3256 = vmul.f32 %v2763, %v3160
    %v3257 = vmul.f32 %v2765, %v3161
    %v3258 = vmul.f32 %v2767, %v3162
    %v3259 = vmul.f32 %v2769, %v3163
    %v3260 = vmul.f32 %v2771, %v3164
    %v3261 = vmul.f32 %v2773, %v3165
    %v3262 = vmul.f32 %v2775, %v3166
    %v3263 = vmul.f32 %v2777, %v3167
    %v3264 = vmul.f32 %v2779, %v3168
    %v3265 = vmul.f32 %v2781, %v3169
    %v3266 = vmul.f32 %v2783, %v3170
    %v3267 = vmul.f32 %v2785, %v3171
    %v3268 = vmul.f32 %v2787, %v3172
    %v3269 = vmul.f32 %v2789, %v3173
    %v3270 = vpack.c.bf16 %v3175, %v3174
    %v3271 = vpack.c.bf16 %v3177, %v3176
    %v3272 = vpack.c.bf16 %v3179, %v3178
    %v3273 = vpack.c.bf16 %v3181, %v3180
    %v3274 = vpack.c.bf16 %v3183, %v3182
    %v3275 = vpack.c.bf16 %v3185, %v3184
    %v3276 = vpack.c.bf16 %v3187, %v3186
    %v3277 = vpack.c.bf16 %v3189, %v3188
    %v3278 = vpack.c.bf16 %v3191, %v3190
    %v3279 = vpack.c.bf16 %v3193, %v3192
    %v3280 = vpack.c.bf16 %v3195, %v3194
    %v3281 = vpack.c.bf16 %v3197, %v3196
    %v3282 = vpack.c.bf16 %v3199, %v3198
    %v3283 = vpack.c.bf16 %v3201, %v3200
    %v3284 = vpack.c.bf16 %v3203, %v3202
    %v3285 = vpack.c.bf16 %v3205, %v3204
    %v3286 = vpack.c.bf16 %v3207, %v3206
    %v3287 = vpack.c.bf16 %v3209, %v3208
    %v3288 = vpack.c.bf16 %v3211, %v3210
    %v3289 = vpack.c.bf16 %v3213, %v3212
    %v3290 = vpack.c.bf16 %v3215, %v3214
    %v3291 = vpack.c.bf16 %v3217, %v3216
    %v3292 = vpack.c.bf16 %v3219, %v3218
    %v3293 = vpack.c.bf16 %v3221, %v3220
    %v3294 = vpack.c.bf16 %v3223, %v3222
    %v3295 = vpack.c.bf16 %v3225, %v3224
    %v3296 = vpack.c.bf16 %v3227, %v3226
    %v3297 = vpack.c.bf16 %v3229, %v3228
    %v3298 = vpack.c.bf16 %v3231, %v3230
    %v3299 = vpack.c.bf16 %v3233, %v3232
    %v3300 = vpack.c.bf16 %v3235, %v3234
    %v3301 = vpack.c.bf16 %v3237, %v3236
    %v3302 = vpack.c.bf16 %v3239, %v3238
    %v3303 = vpack.c.bf16 %v3241, %v3240
    %v3304 = vpack.c.bf16 %v3243, %v3242
    %v3305 = vpack.c.bf16 %v3245, %v3244
    %v3306 = vpack.c.bf16 %v3247, %v3246
    %v3307 = vpack.c.bf16 %v3249, %v3248
    %v3308 = vpack.c.bf16 %v3251, %v3250
    %v3309 = vpack.c.bf16 %v3253, %v3252
    %v3310 = vpack.c.bf16 %v3255, %v3254
    %v3311 = vpack.c.bf16 %v3257, %v3256
    %v3312 = vpack.c.bf16 %v3259, %v3258
    %v3313 = vpack.c.bf16 %v3261, %v3260
    %v3314 = vpack.c.bf16 %v3263, %v3262
    %v3315 = vpack.c.bf16 %v3265, %v3264
    %v3316 = vpack.c.bf16 %v3267, %v3266
    %v3317 = vpack.c.bf16 %v3269, %v3268
    %v3319 = vsel %vm171, %v3270, 0
    %v3322 = vsel %vm171, %v3271, 0
    %v3325 = vsel %vm171, %v3272, 0
    %3327 = vmatprep.subr.bf16.mxu0 0
    %3328 = vmatpush1.bf16.msra.mxu0 0
    %3329 = vmatprep.subr.bf16.mxu0 0
    %3330 = vmatpush1.bf16.msra.mxu0 0
    %3331 = vmatprep.subr.bf16.mxu0 0
    %3332 = vmatpush1.bf16.msra.mxu0 0
    %3333 = vmatprep.subr.bf16.mxu0 0
    %3334 = vmatpush1.bf16.msra.mxu0 0
    %3335 = vmatprep.subr.bf16.mxu0 0
    %3336 = vmatpush1.bf16.msra.mxu0 %v574
    %3337 = vmatprep.subr.bf16.mxu0 0
    %3338 = vmatpush1.bf16.msra.mxu0 %v573
    %3339 = vmatprep.subr.bf16.mxu0 0
    %3340 = vmatpush1.bf16.msra.mxu0 %v572
    %3341 = vmatprep.subr.bf16.mxu0 0
    %3342 = vmatpush1.bf16.msra.mxu0 %v571
    %3343 = vmatprep.subr.bf16.mxu0 0
    %3344 = vmatpush2.bf16.msra.mxu0 0
    %3345 = vmatprep.subr.bf16.mxu0 0
    %3346 = vmatpush2.bf16.msra.mxu0 0
    %3347 = vmatprep.subr.bf16.mxu0 0
    %3348 = vmatpush2.bf16.msra.mxu0 0
    %3349 = vmatprep.subr.bf16.mxu0 0
    %3350 = vmatpush2.bf16.msra.mxu0 0
    %3351 = vmatprep.subr.bf16.mxu0 0
    %3352 = vmatpush2.bf16.msra.mxu0 0
    %3353 = vmatprep.subr.bf16.mxu0 0
    %3354 = vmatpush2.bf16.msra.mxu0 0
    %3355 = vmatprep.subr.bf16.mxu0 0
    %3356 = vmatpush2.bf16.msra.mxu0 0
    %3357 = vmatprep.subr.bf16.mxu0 0
    %3358 = vmatpush2.bf16.msra.mxu0 0
    %3359 = vmatprep.mubr.bf16.mxu0 0
    %3360 = vmatmul.mubr.bf16.gmra.mxu0 %v3319
    %v3361 = vpop.f32.mrf.mxu0
    %v3362 = vadd.f32 0.0, %v3361
    %v3363 = vpop.f32.mrf.mxu0
    %v3364 = vpop.f32.mrf.mxu0
    %v3365 = vadd.f32 0.0, %v3364
    %v3366 = vpop.f32.mrf.mxu0
    %3367 = vmatprep.mubr.bf16.mxu0 0
    %3368 = vmatmul.mubr.bf16.gmra.mxu0 %v3322
    %v3369 = vpop.f32.mrf.mxu0
    %v3370 = vadd.f32 0.0, %v3369
    %v3371 = vpop.f32.mrf.mxu0
    %v3372 = vpop.f32.mrf.mxu0
    %v3373 = vadd.f32 0.0, %v3372
    %v3374 = vpop.f32.mrf.mxu0
    %3375 = vmatprep.mubr.bf16.mxu0 0
    %3376 = vmatmul.mubr.bf16.gmra.mxu0 %v3325
    %v3377 = vpop.f32.mrf.mxu0
    %v3378 = vadd.f32 0.0, %v3377
    %v3379 = vpop.f32.mrf.mxu0
    %v3380 = vpop.f32.mrf.mxu0
    %v3381 = vadd.f32 0.0, %v3380
    %v3382 = vpop.f32.mrf.mxu0
    %3383 = vdwg.mxu0
    %v3385 = vsel %vm171, %v3273, 0
    %v3388 = vsel %vm171, %v3274, 0
    %v3391 = vsel %vm171, %v3275, 0
    %3393 = vmatprep.subr.bf16.mxu0 0
    %3394 = vmatpush1.bf16.msra.mxu0 0
    %3395 = vmatprep.subr.bf16.mxu0 0
    %3396 = vmatpush1.bf16.msra.mxu0 0
    %3397 = vmatprep.subr.bf16.mxu0 0
    %3398 = vmatpush1.bf16.msra.mxu0 0
    %3399 = vmatprep.subr.bf16.mxu0 0
    %3400 = vmatpush1.bf16.msra.mxu0 0
    %3401 = vmatprep.subr.bf16.mxu0 0
    %3402 = vmatpush1.bf16.msra.mxu0 %v578
    %3403 = vmatprep.subr.bf16.mxu0 0
    %3404 = vmatpush1.bf16.msra.mxu0 %v577
    %3405 = vmatprep.subr.bf16.mxu0 0
    %3406 = vmatpush1.bf16.msra.mxu0 %v576
    %3407 = vmatprep.subr.bf16.mxu0 0
    %3408 = vmatpush1.bf16.msra.mxu0 %v575
    %3409 = vmatprep.subr.bf16.mxu0 0
    %3410 = vmatpush2.bf16.msra.mxu0 0
    %3411 = vmatprep.subr.bf16.mxu0 0
    %3412 = vmatpush2.bf16.msra.mxu0 0
    %3413 = vmatprep.subr.bf16.mxu0 0
    %3414 = vmatpush2.bf16.msra.mxu0 0
    %3415 = vmatprep.subr.bf16.mxu0 0
    %3416 = vmatpush2.bf16.msra.mxu0 0
    %3417 = vmatprep.subr.bf16.mxu0 0
    %3418 = vmatpush2.bf16.msra.mxu0 0
    %3419 = vmatprep.subr.bf16.mxu0 0
    %3420 = vmatpush2.bf16.msra.mxu0 0
    %3421 = vmatprep.subr.bf16.mxu0 0
    %3422 = vmatpush2.bf16.msra.mxu0 0
    %3423 = vmatprep.subr.bf16.mxu0 0
    %3424 = vmatpush2.bf16.msra.mxu0 0
    %3425 = vmatprep.mubr.bf16.mxu0 0
    %3426 = vmatmul.mubr.bf16.gmra.mxu0 %v3385
    %v3427 = vpop.f32.mrf.mxu0
    %v3428 = vadd.f32 0.0, %v3427
    %v3429 = vpop.f32.mrf.mxu0
    %v3430 = vpop.f32.mrf.mxu0
    %v3431 = vadd.f32 0.0, %v3430
    %v3432 = vpop.f32.mrf.mxu0
    %3433 = vmatprep.mubr.bf16.mxu0 0
    %3434 = vmatmul.mubr.bf16.gmra.mxu0 %v3388
    %v3435 = vpop.f32.mrf.mxu0
    %v3436 = vadd.f32 0.0, %v3435
    %v3437 = vpop.f32.mrf.mxu0
    %v3438 = vpop.f32.mrf.mxu0
    %v3439 = vadd.f32 0.0, %v3438
    %v3440 = vpop.f32.mrf.mxu0
    %3441 = vmatprep.mubr.bf16.mxu0 0
    %3442 = vmatmul.mubr.bf16.gmra.mxu0 %v3391
    %v3443 = vpop.f32.mrf.mxu0
    %v3444 = vadd.f32 0.0, %v3443
    %v3445 = vpop.f32.mrf.mxu0
    %v3446 = vpop.f32.mrf.mxu0
    %v3447 = vadd.f32 0.0, %v3446
    %v3448 = vpop.f32.mrf.mxu0
    %3449 = vdwg.mxu0
    %v3451 = vsel %vm171, %v3276, 0
    %v3454 = vsel %vm171, %v3277, 0
    %v3457 = vsel %vm171, %v3278, 0
    %3459 = vmatprep.subr.bf16.mxu0 0
    %3460 = vmatpush1.bf16.msra.mxu0 0
    %3461 = vmatprep.subr.bf16.mxu0 0
    %3462 = vmatpush1.bf16.msra.mxu0 0
    %3463 = vmatprep.subr.bf16.mxu0 0
    %3464 = vmatpush1.bf16.msra.mxu0 0
    %3465 = vmatprep.subr.bf16.mxu0 0
    %3466 = vmatpush1.bf16.msra.mxu0 0
    %3467 = vmatprep.subr.bf16.mxu0 0
    %3468 = vmatpush1.bf16.msra.mxu0 %v804
    %3469 = vmatprep.subr.bf16.mxu0 0
    %3470 = vmatpush1.bf16.msra.mxu0 %v802
    %3471 = vmatprep.subr.bf16.mxu0 0
    %3472 = vmatpush1.bf16.msra.mxu0 %v800
    %3473 = vmatprep.subr.bf16.mxu0 0
    %3474 = vmatpush1.bf16.msra.mxu0 %v798
    %3475 = vmatprep.subr.bf16.mxu0 0
    %3476 = vmatpush2.bf16.msra.mxu0 0
    %3477 = vmatprep.subr.bf16.mxu0 0
    %3478 = vmatpush2.bf16.msra.mxu0 0
    %3479 = vmatprep.subr.bf16.mxu0 0
    %3480 = vmatpush2.bf16.msra.mxu0 0
    %3481 = vmatprep.subr.bf16.mxu0 0
    %3482 = vmatpush2.bf16.msra.mxu0 0
    %3483 = vmatprep.subr.bf16.mxu0 0
    %3484 = vmatpush2.bf16.msra.mxu0 0
    %3485 = vmatprep.subr.bf16.mxu0 0
    %3486 = vmatpush2.bf16.msra.mxu0 0
    %3487 = vmatprep.subr.bf16.mxu0 0
    %3488 = vmatpush2.bf16.msra.mxu0 0
    %3489 = vmatprep.subr.bf16.mxu0 0
    %3490 = vmatpush2.bf16.msra.mxu0 0
    %3491 = vmatprep.mubr.bf16.mxu0 0
    %3492 = vmatmul.mubr.bf16.gmra.mxu0 %v3451
    %v3493 = vpop.f32.mrf.mxu0
    %v3494 = vadd.f32 0.0, %v3493
    %v3495 = vpop.f32.mrf.mxu0
    %v3496 = vpop.f32.mrf.mxu0
    %v3497 = vadd.f32 0.0, %v3496
    %v3498 = vpop.f32.mrf.mxu0
    %3499 = vmatprep.mubr.bf16.mxu0 0
    %3500 = vmatmul.mubr.bf16.gmra.mxu0 %v3454
    %v3501 = vpop.f32.mrf.mxu0
    %v3502 = vadd.f32 0.0, %v3501
    %v3503 = vpop.f32.mrf.mxu0
    %v3504 = vpop.f32.mrf.mxu0
    %v3505 = vadd.f32 0.0, %v3504
    %v3506 = vpop.f32.mrf.mxu0
    %3507 = vmatprep.mubr.bf16.mxu0 0
    %3508 = vmatmul.mubr.bf16.gmra.mxu0 %v3457
    %v3509 = vpop.f32.mrf.mxu0
    %v3510 = vadd.f32 0.0, %v3509
    %v3511 = vpop.f32.mrf.mxu0
    %v3512 = vpop.f32.mrf.mxu0
    %v3513 = vadd.f32 0.0, %v3512
    %v3514 = vpop.f32.mrf.mxu0
    %3515 = vdwg.mxu0
    %v3517 = vsel %vm171, %v3279, 0
    %v3520 = vsel %vm171, %v3280, 0
    %v3523 = vsel %vm171, %v3281, 0
    %3525 = vmatprep.subr.bf16.mxu0 0
    %3526 = vmatpush1.bf16.msra.mxu0 0
    %3527 = vmatprep.subr.bf16.mxu0 0
    %3528 = vmatpush1.bf16.msra.mxu0 0
    %3529 = vmatprep.subr.bf16.mxu0 0
    %3530 = vmatpush1.bf16.msra.mxu0 0
    %3531 = vmatprep.subr.bf16.mxu0 0
    %3532 = vmatpush1.bf16.msra.mxu0 0
    %3533 = vmatprep.subr.bf16.mxu0 0
    %3534 = vmatpush1.bf16.msra.mxu0 %v812
    %3535 = vmatprep.subr.bf16.mxu0 0
    %3536 = vmatpush1.bf16.msra.mxu0 %v810
    %3537 = vmatprep.subr.bf16.mxu0 0
    %3538 = vmatpush1.bf16.msra.mxu0 %v808
    %3539 = vmatprep.subr.bf16.mxu0 0
    %3540 = vmatpush1.bf16.msra.mxu0 %v806
    %3541 = vmatprep.subr.bf16.mxu0 0
    %3542 = vmatpush2.bf16.msra.mxu0 0
    %3543 = vmatprep.subr.bf16.mxu0 0
    %3544 = vmatpush2.bf16.msra.mxu0 0
    %3545 = vmatprep.subr.bf16.mxu0 0
    %3546 = vmatpush2.bf16.msra.mxu0 0
    %3547 = vmatprep.subr.bf16.mxu0 0
    %3548 = vmatpush2.bf16.msra.mxu0 0
    %3549 = vmatprep.subr.bf16.mxu0 0
    %3550 = vmatpush2.bf16.msra.mxu0 0
    %3551 = vmatprep.subr.bf16.mxu0 0
    %3552 = vmatpush2.bf16.msra.mxu0 0
    %3553 = vmatprep.subr.bf16.mxu0 0
    %3554 = vmatpush2.bf16.msra.mxu0 0
    %3555 = vmatprep.subr.bf16.mxu0 0
    %3556 = vmatpush2.bf16.msra.mxu0 0
    %3557 = vmatprep.mubr.bf16.mxu0 0
    %3558 = vmatmul.mubr.bf16.gmra.mxu0 %v3517
    %v3559 = vpop.f32.mrf.mxu0
    %v3560 = vadd.f32 0.0, %v3559
    %v3561 = vpop.f32.mrf.mxu0
    %v3562 = vpop.f32.mrf.mxu0
    %v3563 = vadd.f32 0.0, %v3562
    %v3564 = vpop.f32.mrf.mxu0
    %3565 = vmatprep.mubr.bf16.mxu0 0
    %3566 = vmatmul.mubr.bf16.gmra.mxu0 %v3520
    %v3567 = vpop.f32.mrf.mxu0
    %v3568 = vadd.f32 0.0, %v3567
    %v3569 = vpop.f32.mrf.mxu0
    %v3570 = vpop.f32.mrf.mxu0
    %v3571 = vadd.f32 0.0, %v3570
    %v3572 = vpop.f32.mrf.mxu0
    %3573 = vmatprep.mubr.bf16.mxu0 0
    %3574 = vmatmul.mubr.bf16.gmra.mxu0 %v3523
    %v3575 = vpop.f32.mrf.mxu0
    %v3576 = vadd.f32 0.0, %v3575
    %v3577 = vpop.f32.mrf.mxu0
    %v3578 = vpop.f32.mrf.mxu0
    %v3579 = vadd.f32 0.0, %v3578
    %v3580 = vpop.f32.mrf.mxu0
    %3581 = vdwg.mxu0
    %v3583 = vsel %vm171, %v3282, 0
    %v3586 = vsel %vm171, %v3283, 0
    %v3589 = vsel %vm171, %v3284, 0
    %3591 = vmatprep.subr.bf16.mxu0 0
    %3592 = vmatpush1.bf16.msra.mxu0 0
    %3593 = vmatprep.subr.bf16.mxu0 0
    %3594 = vmatpush1.bf16.msra.mxu0 0
    %3595 = vmatprep.subr.bf16.mxu0 0
    %3596 = vmatpush1.bf16.msra.mxu0 0
    %3597 = vmatprep.subr.bf16.mxu0 0
    %3598 = vmatpush1.bf16.msra.mxu0 0
    %3599 = vmatprep.subr.bf16.mxu0 0
    %3600 = vmatpush1.bf16.msra.mxu0 %v828
    %3601 = vmatprep.subr.bf16.mxu0 0
    %3602 = vmatpush1.bf16.msra.mxu0 %v826
    %3603 = vmatprep.subr.bf16.mxu0 0
    %3604 = vmatpush1.bf16.msra.mxu0 %v824
    %3605 = vmatprep.subr.bf16.mxu0 0
    %3606 = vmatpush1.bf16.msra.mxu0 %v822
    %3607 = vmatprep.subr.bf16.mxu0 0
    %3608 = vmatpush2.bf16.msra.mxu0 0
    %3609 = vmatprep.subr.bf16.mxu0 0
    %3610 = vmatpush2.bf16.msra.mxu0 0
    %3611 = vmatprep.subr.bf16.mxu0 0
    %3612 = vmatpush2.bf16.msra.mxu0 0
    %3613 = vmatprep.subr.bf16.mxu0 0
    %3614 = vmatpush2.bf16.msra.mxu0 0
    %3615 = vmatprep.subr.bf16.mxu0 0
    %3616 = vmatpush2.bf16.msra.mxu0 0
    %3617 = vmatprep.subr.bf16.mxu0 0
    %3618 = vmatpush2.bf16.msra.mxu0 0
    %3619 = vmatprep.subr.bf16.mxu0 0
    %3620 = vmatpush2.bf16.msra.mxu0 0
    %3621 = vmatprep.subr.bf16.mxu0 0
    %3622 = vmatpush2.bf16.msra.mxu0 0
    %3623 = vmatprep.mubr.bf16.mxu0 0
    %3624 = vmatmul.mubr.bf16.gmra.mxu0 %v3583
    %v3625 = vpop.f32.mrf.mxu0
    %v3626 = vadd.f32 0.0, %v3625
    %v3627 = vpop.f32.mrf.mxu0
    %v3628 = vpop.f32.mrf.mxu0
    %v3629 = vadd.f32 0.0, %v3628
    %v3630 = vpop.f32.mrf.mxu0
    %3631 = vmatprep.mubr.bf16.mxu0 0
    %3632 = vmatmul.mubr.bf16.gmra.mxu0 %v3586
    %v3633 = vpop.f32.mrf.mxu0
    %v3634 = vadd.f32 0.0, %v3633
    %v3635 = vpop.f32.mrf.mxu0
    %v3636 = vpop.f32.mrf.mxu0
    %v3637 = vadd.f32 0.0, %v3636
    %v3638 = vpop.f32.mrf.mxu0
    %3639 = vmatprep.mubr.bf16.mxu0 0
    %3640 = vmatmul.mubr.bf16.gmra.mxu0 %v3589
    %v3641 = vpop.f32.mrf.mxu0
    %v3642 = vadd.f32 0.0, %v3641
    %v3643 = vpop.f32.mrf.mxu0
    %v3644 = vpop.f32.mrf.mxu0
    %v3645 = vadd.f32 0.0, %v3644
    %v3646 = vpop.f32.mrf.mxu0
    %3647 = vdwg.mxu0
    %v3649 = vsel %vm171, %v3285, 0
    %v3652 = vsel %vm171, %v3286, 0
    %v3655 = vsel %vm171, %v3287, 0
    %3657 = vmatprep.subr.bf16.mxu0 0
    %3658 = vmatpush1.bf16.msra.mxu0 0
    %3659 = vmatprep.subr.bf16.mxu0 0
    %3660 = vmatpush1.bf16.msra.mxu0 0
    %3661 = vmatprep.subr.bf16.mxu0 0
    %3662 = vmatpush1.bf16.msra.mxu0 0
    %3663 = vmatprep.subr.bf16.mxu0 0
    %3664 = vmatpush1.bf16.msra.mxu0 0
    %3665 = vmatprep.subr.bf16.mxu0 0
    %3666 = vmatpush1.bf16.msra.mxu0 %v836
    %3667 = vmatprep.subr.bf16.mxu0 0
    %3668 = vmatpush1.bf16.msra.mxu0 %v834
    %3669 = vmatprep.subr.bf16.mxu0 0
    %3670 = vmatpush1.bf16.msra.mxu0 %v832
    %3671 = vmatprep.subr.bf16.mxu0 0
    %3672 = vmatpush1.bf16.msra.mxu0 %v830
    %3673 = vmatprep.subr.bf16.mxu0 0
    %3674 = vmatpush2.bf16.msra.mxu0 0
    %3675 = vmatprep.subr.bf16.mxu0 0
    %3676 = vmatpush2.bf16.msra.mxu0 0
    %3677 = vmatprep.subr.bf16.mxu0 0
    %3678 = vmatpush2.bf16.msra.mxu0 0
    %3679 = vmatprep.subr.bf16.mxu0 0
    %3680 = vmatpush2.bf16.msra.mxu0 0
    %3681 = vmatprep.subr.bf16.mxu0 0
    %3682 = vmatpush2.bf16.msra.mxu0 0
    %3683 = vmatprep.subr.bf16.mxu0 0
    %3684 = vmatpush2.bf16.msra.mxu0 0
    %3685 = vmatprep.subr.bf16.mxu0 0
    %3686 = vmatpush2.bf16.msra.mxu0 0
    %3687 = vmatprep.subr.bf16.mxu0 0
    %3688 = vmatpush2.bf16.msra.mxu0 0
    %3689 = vmatprep.mubr.bf16.mxu0 0
    %3690 = vmatmul.mubr.bf16.gmra.mxu0 %v3649
    %v3691 = vpop.f32.mrf.mxu0
    %v3692 = vadd.f32 0.0, %v3691
    %v3693 = vpop.f32.mrf.mxu0
    %v3694 = vpop.f32.mrf.mxu0
    %v3695 = vadd.f32 0.0, %v3694
    %v3696 = vpop.f32.mrf.mxu0
    %3697 = vmatprep.mubr.bf16.mxu0 0
    %3698 = vmatmul.mubr.bf16.gmra.mxu0 %v3652
    %v3699 = vpop.f32.mrf.mxu0
    %v3700 = vadd.f32 0.0, %v3699
    %v3701 = vpop.f32.mrf.mxu0
    %v3702 = vpop.f32.mrf.mxu0
    %v3703 = vadd.f32 0.0, %v3702
    %v3704 = vpop.f32.mrf.mxu0
    %3705 = vmatprep.mubr.bf16.mxu0 0
    %3706 = vmatmul.mubr.bf16.gmra.mxu0 %v3655
    %v3707 = vpop.f32.mrf.mxu0
    %v3708 = vadd.f32 0.0, %v3707
    %v3709 = vpop.f32.mrf.mxu0
    %v3710 = vpop.f32.mrf.mxu0
    %v3711 = vadd.f32 0.0, %v3710
    %v3712 = vpop.f32.mrf.mxu0
    %3713 = vdwg.mxu0
    %v3715 = vsel %vm171, %v3288, 0
    %v3718 = vsel %vm171, %v3289, 0
    %v3721 = vsel %vm171, %v3290, 0
    %3723 = vmatprep.subr.bf16.mxu0 0
    %3724 = vmatpush1.bf16.msra.mxu0 0
    %3725 = vmatprep.subr.bf16.mxu0 0
    %3726 = vmatpush1.bf16.msra.mxu0 0
    %3727 = vmatprep.subr.bf16.mxu0 0
    %3728 = vmatpush1.bf16.msra.mxu0 0
    %3729 = vmatprep.subr.bf16.mxu0 0
    %3730 = vmatpush1.bf16.msra.mxu0 0
    %3731 = vmatprep.subr.bf16.mxu0 0
    %3732 = vmatpush1.bf16.msra.mxu0 %v852
    %3733 = vmatprep.subr.bf16.mxu0 0
    %3734 = vmatpush1.bf16.msra.mxu0 %v850
    %3735 = vmatprep.subr.bf16.mxu0 0
    %3736 = vmatpush1.bf16.msra.mxu0 %v848
    %3737 = vmatprep.subr.bf16.mxu0 0
    %3738 = vmatpush1.bf16.msra.mxu0 %v846
    %3739 = vmatprep.subr.bf16.mxu0 0
    %3740 = vmatpush2.bf16.msra.mxu0 0
    %3741 = vmatprep.subr.bf16.mxu0 0
    %3742 = vmatpush2.bf16.msra.mxu0 0
    %3743 = vmatprep.subr.bf16.mxu0 0
    %3744 = vmatpush2.bf16.msra.mxu0 0
    %3745 = vmatprep.subr.bf16.mxu0 0
    %3746 = vmatpush2.bf16.msra.mxu0 0
    %3747 = vmatprep.subr.bf16.mxu0 0
    %3748 = vmatpush2.bf16.msra.mxu0 0
    %3749 = vmatprep.subr.bf16.mxu0 0
    %3750 = vmatpush2.bf16.msra.mxu0 0
    %3751 = vmatprep.subr.bf16.mxu0 0
    %3752 = vmatpush2.bf16.msra.mxu0 0
    %3753 = vmatprep.subr.bf16.mxu0 0
    %3754 = vmatpush2.bf16.msra.mxu0 0
    %3755 = vmatprep.mubr.bf16.mxu0 0
    %3756 = vmatmul.mubr.bf16.gmra.mxu0 %v3715
    %v3757 = vpop.f32.mrf.mxu0
    %v3758 = vadd.f32 0.0, %v3757
    %v3759 = vpop.f32.mrf.mxu0
    %v3760 = vpop.f32.mrf.mxu0
    %v3761 = vadd.f32 0.0, %v3760
    %v3762 = vpop.f32.mrf.mxu0
    %3763 = vmatprep.mubr.bf16.mxu0 0
    %3764 = vmatmul.mubr.bf16.gmra.mxu0 %v3718
    %v3765 = vpop.f32.mrf.mxu0
    %v3766 = vadd.f32 0.0, %v3765
    %v3767 = vpop.f32.mrf.mxu0
    %v3768 = vpop.f32.mrf.mxu0
    %v3769 = vadd.f32 0.0, %v3768
    %v3770 = vpop.f32.mrf.mxu0
    %3771 = vmatprep.mubr.bf16.mxu0 0
    %3772 = vmatmul.mubr.bf16.gmra.mxu0 %v3721
    %v3773 = vpop.f32.mrf.mxu0
    %v3774 = vadd.f32 0.0, %v3773
    %v3775 = vpop.f32.mrf.mxu0
    %v3776 = vpop.f32.mrf.mxu0
    %v3777 = vadd.f32 0.0, %v3776
    %v3778 = vpop.f32.mrf.mxu0
    %3779 = vdwg.mxu0
    %v3781 = vsel %vm171, %v3291, 0
    %v3784 = vsel %vm171, %v3292, 0
    %v3787 = vsel %vm171, %v3293, 0
    %3789 = vmatprep.subr.bf16.mxu0 0
    %3790 = vmatpush1.bf16.msra.mxu0 0
    %3791 = vmatprep.subr.bf16.mxu0 0
    %3792 = vmatpush1.bf16.msra.mxu0 0
    %3793 = vmatprep.subr.bf16.mxu0 0
    %3794 = vmatpush1.bf16.msra.mxu0 0
    %3795 = vmatprep.subr.bf16.mxu0 0
    %3796 = vmatpush1.bf16.msra.mxu0 0
    %3797 = vmatprep.subr.bf16.mxu0 0
    %3798 = vmatpush1.bf16.msra.mxu0 %v860
    %3799 = vmatprep.subr.bf16.mxu0 0
    %3800 = vmatpush1.bf16.msra.mxu0 %v858
    %3801 = vmatprep.subr.bf16.mxu0 0
    %3802 = vmatpush1.bf16.msra.mxu0 %v856
    %3803 = vmatprep.subr.bf16.mxu0 0
    %3804 = vmatpush1.bf16.msra.mxu0 %v854
    %3805 = vmatprep.subr.bf16.mxu0 0
    %3806 = vmatpush2.bf16.msra.mxu0 0
    %3807 = vmatprep.subr.bf16.mxu0 0
    %3808 = vmatpush2.bf16.msra.mxu0 0
    %3809 = vmatprep.subr.bf16.mxu0 0
    %3810 = vmatpush2.bf16.msra.mxu0 0
    %3811 = vmatprep.subr.bf16.mxu0 0
    %3812 = vmatpush2.bf16.msra.mxu0 0
    %3813 = vmatprep.subr.bf16.mxu0 0
    %3814 = vmatpush2.bf16.msra.mxu0 0
    %3815 = vmatprep.subr.bf16.mxu0 0
    %3816 = vmatpush2.bf16.msra.mxu0 0
    %3817 = vmatprep.subr.bf16.mxu0 0
    %3818 = vmatpush2.bf16.msra.mxu0 0
    %3819 = vmatprep.subr.bf16.mxu0 0
    %3820 = vmatpush2.bf16.msra.mxu0 0
    %3821 = vmatprep.mubr.bf16.mxu0 0
    %3822 = vmatmul.mubr.bf16.gmra.mxu0 %v3781
    %v3823 = vpop.f32.mrf.mxu0
    %v3824 = vadd.f32 0.0, %v3823
    %v3825 = vpop.f32.mrf.mxu0
    %v3826 = vpop.f32.mrf.mxu0
    %v3827 = vadd.f32 0.0, %v3826
    %v3828 = vpop.f32.mrf.mxu0
    %3829 = vmatprep.mubr.bf16.mxu0 0
    %3830 = vmatmul.mubr.bf16.gmra.mxu0 %v3784
    %v3831 = vpop.f32.mrf.mxu0
    %v3832 = vadd.f32 0.0, %v3831
    %v3833 = vpop.f32.mrf.mxu0
    %v3834 = vpop.f32.mrf.mxu0
    %v3835 = vadd.f32 0.0, %v3834
    %v3836 = vpop.f32.mrf.mxu0
    %3837 = vmatprep.mubr.bf16.mxu0 0
    %3838 = vmatmul.mubr.bf16.gmra.mxu0 %v3787
    %v3839 = vpop.f32.mrf.mxu0
    %v3840 = vadd.f32 0.0, %v3839
    %v3841 = vpop.f32.mrf.mxu0
    %v3842 = vpop.f32.mrf.mxu0
    %v3843 = vadd.f32 0.0, %v3842
    %v3844 = vpop.f32.mrf.mxu0
    %3845 = vdwg.mxu0
    %v3847 = vsel %vm171, %v3294, 0
    %v3850 = vsel %vm171, %v3295, 0
    %v3853 = vsel %vm171, %v3296, 0
    %3855 = vmatprep.subr.bf16.mxu0 0
    %3856 = vmatpush1.bf16.msra.mxu0 0
    %3857 = vmatprep.subr.bf16.mxu0 0
    %3858 = vmatpush1.bf16.msra.mxu0 0
    %3859 = vmatprep.subr.bf16.mxu0 0
    %3860 = vmatpush1.bf16.msra.mxu0 0
    %3861 = vmatprep.subr.bf16.mxu0 0
    %3862 = vmatpush1.bf16.msra.mxu0 0
    %3863 = vmatprep.subr.bf16.mxu0 0
    %3864 = vmatpush1.bf16.msra.mxu0 %v876
    %3865 = vmatprep.subr.bf16.mxu0 0
    %3866 = vmatpush1.bf16.msra.mxu0 %v874
    %3867 = vmatprep.subr.bf16.mxu0 0
    %3868 = vmatpush1.bf16.msra.mxu0 %v872
    %3869 = vmatprep.subr.bf16.mxu0 0
    %3870 = vmatpush1.bf16.msra.mxu0 %v870
    %3871 = vmatprep.subr.bf16.mxu0 0
    %3872 = vmatpush2.bf16.msra.mxu0 0
    %3873 = vmatprep.subr.bf16.mxu0 0
    %3874 = vmatpush2.bf16.msra.mxu0 0
    %3875 = vmatprep.subr.bf16.mxu0 0
    %3876 = vmatpush2.bf16.msra.mxu0 0
    %3877 = vmatprep.subr.bf16.mxu0 0
    %3878 = vmatpush2.bf16.msra.mxu0 0
    %3879 = vmatprep.subr.bf16.mxu0 0
    %3880 = vmatpush2.bf16.msra.mxu0 0
    %3881 = vmatprep.subr.bf16.mxu0 0
    %3882 = vmatpush2.bf16.msra.mxu0 0
    %3883 = vmatprep.subr.bf16.mxu0 0
    %3884 = vmatpush2.bf16.msra.mxu0 0
    %3885 = vmatprep.subr.bf16.mxu0 0
    %3886 = vmatpush2.bf16.msra.mxu0 0
    %3887 = vmatprep.mubr.bf16.mxu0 0
    %3888 = vmatmul.mubr.bf16.gmra.mxu0 %v3847
    %v3889 = vpop.f32.mrf.mxu0
    %v3890 = vadd.f32 0.0, %v3889
    %v3891 = vpop.f32.mrf.mxu0
    %v3892 = vpop.f32.mrf.mxu0
    %v3893 = vadd.f32 0.0, %v3892
    %v3894 = vpop.f32.mrf.mxu0
    %3895 = vmatprep.mubr.bf16.mxu0 0
    %3896 = vmatmul.mubr.bf16.gmra.mxu0 %v3850
    %v3897 = vpop.f32.mrf.mxu0
    %v3898 = vadd.f32 0.0, %v3897
    %v3899 = vpop.f32.mrf.mxu0
    %v3900 = vpop.f32.mrf.mxu0
    %v3901 = vadd.f32 0.0, %v3900
    %v3902 = vpop.f32.mrf.mxu0
    %3903 = vmatprep.mubr.bf16.mxu0 0
    %3904 = vmatmul.mubr.bf16.gmra.mxu0 %v3853
    %v3905 = vpop.f32.mrf.mxu0
    %v3906 = vadd.f32 0.0, %v3905
    %v3907 = vpop.f32.mrf.mxu0
    %v3908 = vpop.f32.mrf.mxu0
    %v3909 = vadd.f32 0.0, %v3908
    %v3910 = vpop.f32.mrf.mxu0
    %3911 = vdwg.mxu0
    %v3913 = vsel %vm171, %v3297, 0
    %v3916 = vsel %vm171, %v3298, 0
    %v3919 = vsel %vm171, %v3299, 0
    %3921 = vmatprep.subr.bf16.mxu0 0
    %3922 = vmatpush1.bf16.msra.mxu0 0
    %3923 = vmatprep.subr.bf16.mxu0 0
    %3924 = vmatpush1.bf16.msra.mxu0 0
    %3925 = vmatprep.subr.bf16.mxu0 0
    %3926 = vmatpush1.bf16.msra.mxu0 0
    %3927 = vmatprep.subr.bf16.mxu0 0
    %3928 = vmatpush1.bf16.msra.mxu0 0
    %3929 = vmatprep.subr.bf16.mxu0 0
    %3930 = vmatpush1.bf16.msra.mxu0 %v884
    %3931 = vmatprep.subr.bf16.mxu0 0
    %3932 = vmatpush1.bf16.msra.mxu0 %v882
    %3933 = vmatprep.subr.bf16.mxu0 0
    %3934 = vmatpush1.bf16.msra.mxu0 %v880
    %3935 = vmatprep.subr.bf16.mxu0 0
    %3936 = vmatpush1.bf16.msra.mxu0 %v878
    %3937 = vmatprep.subr.bf16.mxu0 0
    %3938 = vmatpush2.bf16.msra.mxu0 0
    %3939 = vmatprep.subr.bf16.mxu0 0
    %3940 = vmatpush2.bf16.msra.mxu0 0
    %3941 = vmatprep.subr.bf16.mxu0 0
    %3942 = vmatpush2.bf16.msra.mxu0 0
    %3943 = vmatprep.subr.bf16.mxu0 0
    %3944 = vmatpush2.bf16.msra.mxu0 0
    %3945 = vmatprep.subr.bf16.mxu0 0
    %3946 = vmatpush2.bf16.msra.mxu0 0
    %3947 = vmatprep.subr.bf16.mxu0 0
    %3948 = vmatpush2.bf16.msra.mxu0 0
    %3949 = vmatprep.subr.bf16.mxu0 0
    %3950 = vmatpush2.bf16.msra.mxu0 0
    %3951 = vmatprep.subr.bf16.mxu0 0
    %3952 = vmatpush2.bf16.msra.mxu0 0
    %3953 = vmatprep.mubr.bf16.mxu0 0
    %3954 = vmatmul.mubr.bf16.gmra.mxu0 %v3913
    %v3955 = vpop.f32.mrf.mxu0
    %v3956 = vadd.f32 0.0, %v3955
    %v3957 = vpop.f32.mrf.mxu0
    %v3958 = vpop.f32.mrf.mxu0
    %v3959 = vadd.f32 0.0, %v3958
    %v3960 = vpop.f32.mrf.mxu0
    %3961 = vmatprep.mubr.bf16.mxu0 0
    %3962 = vmatmul.mubr.bf16.gmra.mxu0 %v3916
    %v3963 = vpop.f32.mrf.mxu0
    %v3964 = vadd.f32 0.0, %v3963
    %v3965 = vpop.f32.mrf.mxu0
    %v3966 = vpop.f32.mrf.mxu0
    %v3967 = vadd.f32 0.0, %v3966
    %v3968 = vpop.f32.mrf.mxu0
    %3969 = vmatprep.mubr.bf16.mxu0 0
    %3970 = vmatmul.mubr.bf16.gmra.mxu0 %v3919
    %v3971 = vpop.f32.mrf.mxu0
    %v3972 = vadd.f32 0.0, %v3971
    %v3973 = vpop.f32.mrf.mxu0
    %v3974 = vpop.f32.mrf.mxu0
    %v3975 = vadd.f32 0.0, %v3974
    %v3976 = vpop.f32.mrf.mxu0
    %3977 = vdwg.mxu0
    %v3979 = vsel %vm171, %v3300, 0
    %v3982 = vsel %vm171, %v3301, 0
    %v3985 = vsel %vm171, %v3302, 0
    %3987 = vmatprep.subr.bf16.mxu0 0
    %3988 = vmatpush1.bf16.msra.mxu0 0
    %3989 = vmatprep.subr.bf16.mxu0 0
    %3990 = vmatpush1.bf16.msra.mxu0 0
    %3991 = vmatprep.subr.bf16.mxu0 0
    %3992 = vmatpush1.bf16.msra.mxu0 0
    %3993 = vmatprep.subr.bf16.mxu0 0
    %3994 = vmatpush1.bf16.msra.mxu0 0
    %3995 = vmatprep.subr.bf16.mxu0 0
    %3996 = vmatpush1.bf16.msra.mxu0 %v900
    %3997 = vmatprep.subr.bf16.mxu0 0
    %3998 = vmatpush1.bf16.msra.mxu0 %v898
    %3999 = vmatprep.subr.bf16.mxu0 0
    %4000 = vmatpush1.bf16.msra.mxu0 %v896
    %4001 = vmatprep.subr.bf16.mxu0 0
    %4002 = vmatpush1.bf16.msra.mxu0 %v894
    %4003 = vmatprep.subr.bf16.mxu0 0
    %4004 = vmatpush2.bf16.msra.mxu0 0
    %4005 = vmatprep.subr.bf16.mxu0 0
    %4006 = vmatpush2.bf16.msra.mxu0 0
    %4007 = vmatprep.subr.bf16.mxu0 0
    %4008 = vmatpush2.bf16.msra.mxu0 0
    %4009 = vmatprep.subr.bf16.mxu0 0
    %4010 = vmatpush2.bf16.msra.mxu0 0
    %4011 = vmatprep.subr.bf16.mxu0 0
    %4012 = vmatpush2.bf16.msra.mxu0 0
    %4013 = vmatprep.subr.bf16.mxu0 0
    %4014 = vmatpush2.bf16.msra.mxu0 0
    %4015 = vmatprep.subr.bf16.mxu0 0
    %4016 = vmatpush2.bf16.msra.mxu0 0
    %4017 = vmatprep.subr.bf16.mxu0 0
    %4018 = vmatpush2.bf16.msra.mxu0 0
    %4019 = vmatprep.mubr.bf16.mxu0 0
    %4020 = vmatmul.mubr.bf16.gmra.mxu0 %v3979
    %v4021 = vpop.f32.mrf.mxu0
    %v4022 = vadd.f32 0.0, %v4021
    %v4023 = vpop.f32.mrf.mxu0
    %v4024 = vpop.f32.mrf.mxu0
    %v4025 = vadd.f32 0.0, %v4024
    %v4026 = vpop.f32.mrf.mxu0
    %4027 = vmatprep.mubr.bf16.mxu0 0
    %4028 = vmatmul.mubr.bf16.gmra.mxu0 %v3982
    %v4029 = vpop.f32.mrf.mxu0
    %v4030 = vadd.f32 0.0, %v4029
    %v4031 = vpop.f32.mrf.mxu0
    %v4032 = vpop.f32.mrf.mxu0
    %v4033 = vadd.f32 0.0, %v4032
    %v4034 = vpop.f32.mrf.mxu0
    %4035 = vmatprep.mubr.bf16.mxu0 0
    %4036 = vmatmul.mubr.bf16.gmra.mxu0 %v3985
    %v4037 = vpop.f32.mrf.mxu0
    %v4038 = vadd.f32 0.0, %v4037
    %v4039 = vpop.f32.mrf.mxu0
    %v4040 = vpop.f32.mrf.mxu0
    %v4041 = vadd.f32 0.0, %v4040
    %v4042 = vpop.f32.mrf.mxu0
    %4043 = vdwg.mxu0
    %v4045 = vsel %vm171, %v3303, 0
    %v4048 = vsel %vm171, %v3304, 0
    %v4051 = vsel %vm171, %v3305, 0
    %4053 = vmatprep.subr.bf16.mxu0 0
    %4054 = vmatpush1.bf16.msra.mxu0 0
    %4055 = vmatprep.subr.bf16.mxu0 0
    %4056 = vmatpush1.bf16.msra.mxu0 0
    %4057 = vmatprep.subr.bf16.mxu0 0
    %4058 = vmatpush1.bf16.msra.mxu0 0
    %4059 = vmatprep.subr.bf16.mxu0 0
    %4060 = vmatpush1.bf16.msra.mxu0 0
    %4061 = vmatprep.subr.bf16.mxu0 0
    %4062 = vmatpush1.bf16.msra.mxu0 %v908
    %4063 = vmatprep.subr.bf16.mxu0 0
    %4064 = vmatpush1.bf16.msra.mxu0 %v906
    %4065 = vmatprep.subr.bf16.mxu0 0
    %4066 = vmatpush1.bf16.msra.mxu0 %v904
    %4067 = vmatprep.subr.bf16.mxu0 0
    %4068 = vmatpush1.bf16.msra.mxu0 %v902
    %4069 = vmatprep.subr.bf16.mxu0 0
    %4070 = vmatpush2.bf16.msra.mxu0 0
    %4071 = vmatprep.subr.bf16.mxu0 0
    %4072 = vmatpush2.bf16.msra.mxu0 0
    %4073 = vmatprep.subr.bf16.mxu0 0
    %4074 = vmatpush2.bf16.msra.mxu0 0
    %4075 = vmatprep.subr.bf16.mxu0 0
    %4076 = vmatpush2.bf16.msra.mxu0 0
    %4077 = vmatprep.subr.bf16.mxu0 0
    %4078 = vmatpush2.bf16.msra.mxu0 0
    %4079 = vmatprep.subr.bf16.mxu0 0
    %4080 = vmatpush2.bf16.msra.mxu0 0
    %4081 = vmatprep.subr.bf16.mxu0 0
    %4082 = vmatpush2.bf16.msra.mxu0 0
    %4083 = vmatprep.subr.bf16.mxu0 0
    %4084 = vmatpush2.bf16.msra.mxu0 0
    %4085 = vmatprep.mubr.bf16.mxu0 0
    %4086 = vmatmul.mubr.bf16.gmra.mxu0 %v4045
    %v4087 = vpop.f32.mrf.mxu0
    %v4088 = vadd.f32 0.0, %v4087
    %v4089 = vpop.f32.mrf.mxu0
    %v4090 = vpop.f32.mrf.mxu0
    %v4091 = vadd.f32 0.0, %v4090
    %v4092 = vpop.f32.mrf.mxu0
    %4093 = vmatprep.mubr.bf16.mxu0 0
    %4094 = vmatmul.mubr.bf16.gmra.mxu0 %v4048
    %v4095 = vpop.f32.mrf.mxu0
    %v4096 = vadd.f32 0.0, %v4095
    %v4097 = vpop.f32.mrf.mxu0
    %v4098 = vpop.f32.mrf.mxu0
    %v4099 = vadd.f32 0.0, %v4098
    %v4100 = vpop.f32.mrf.mxu0
    %4101 = vmatprep.mubr.bf16.mxu0 0
    %4102 = vmatmul.mubr.bf16.gmra.mxu0 %v4051
    %v4103 = vpop.f32.mrf.mxu0
    %v4104 = vadd.f32 0.0, %v4103
    %v4105 = vpop.f32.mrf.mxu0
    %v4106 = vpop.f32.mrf.mxu0
    %v4107 = vadd.f32 0.0, %v4106
    %v4108 = vpop.f32.mrf.mxu0
    %4109 = vdwg.mxu0
    %v4111 = vsel %vm171, %v3306, 0
    %v4114 = vsel %vm171, %v3307, 0
    %v4117 = vsel %vm171, %v3308, 0
    %4119 = vmatprep.subr.bf16.mxu0 0
    %4120 = vmatpush1.bf16.msra.mxu0 0
    %4121 = vmatprep.subr.bf16.mxu0 0
    %4122 = vmatpush1.bf16.msra.mxu0 0
    %4123 = vmatprep.subr.bf16.mxu0 0
    %4124 = vmatpush1.bf16.msra.mxu0 0
    %4125 = vmatprep.subr.bf16.mxu0 0
    %4126 = vmatpush1.bf16.msra.mxu0 0
    %4127 = vmatprep.subr.bf16.mxu0 0
    %4128 = vmatpush1.bf16.msra.mxu0 %v924
    %4129 = vmatprep.subr.bf16.mxu0 0
    %4130 = vmatpush1.bf16.msra.mxu0 %v922
    %4131 = vmatprep.subr.bf16.mxu0 0
    %4132 = vmatpush1.bf16.msra.mxu0 %v920
    %4133 = vmatprep.subr.bf16.mxu0 0
    %4134 = vmatpush1.bf16.msra.mxu0 %v918
    %4135 = vmatprep.subr.bf16.mxu0 0
    %4136 = vmatpush2.bf16.msra.mxu0 0
    %4137 = vmatprep.subr.bf16.mxu0 0
    %4138 = vmatpush2.bf16.msra.mxu0 0
    %4139 = vmatprep.subr.bf16.mxu0 0
    %4140 = vmatpush2.bf16.msra.mxu0 0
    %4141 = vmatprep.subr.bf16.mxu0 0
    %4142 = vmatpush2.bf16.msra.mxu0 0
    %4143 = vmatprep.subr.bf16.mxu0 0
    %4144 = vmatpush2.bf16.msra.mxu0 0
    %4145 = vmatprep.subr.bf16.mxu0 0
    %4146 = vmatpush2.bf16.msra.mxu0 0
    %4147 = vmatprep.subr.bf16.mxu0 0
    %4148 = vmatpush2.bf16.msra.mxu0 0
    %4149 = vmatprep.subr.bf16.mxu0 0
    %4150 = vmatpush2.bf16.msra.mxu0 0
    %4151 = vmatprep.mubr.bf16.mxu0 0
    %4152 = vmatmul.mubr.bf16.gmra.mxu0 %v4111
    %v4153 = vpop.f32.mrf.mxu0
    %v4154 = vadd.f32 0.0, %v4153
    %v4155 = vpop.f32.mrf.mxu0
    %v4156 = vpop.f32.mrf.mxu0
    %v4157 = vadd.f32 0.0, %v4156
    %v4158 = vpop.f32.mrf.mxu0
    %4159 = vmatprep.mubr.bf16.mxu0 0
    %4160 = vmatmul.mubr.bf16.gmra.mxu0 %v4114
    %v4161 = vpop.f32.mrf.mxu0
    %v4162 = vadd.f32 0.0, %v4161
    %v4163 = vpop.f32.mrf.mxu0
    %v4164 = vpop.f32.mrf.mxu0
    %v4165 = vadd.f32 0.0, %v4164
    %v4166 = vpop.f32.mrf.mxu0
    %4167 = vmatprep.mubr.bf16.mxu0 0
    %4168 = vmatmul.mubr.bf16.gmra.mxu0 %v4117
    %v4169 = vpop.f32.mrf.mxu0
    %v4170 = vadd.f32 0.0, %v4169
    %v4171 = vpop.f32.mrf.mxu0
    %v4172 = vpop.f32.mrf.mxu0
    %v4173 = vadd.f32 0.0, %v4172
    %v4174 = vpop.f32.mrf.mxu0
    %4175 = vdwg.mxu0
    %v4177 = vsel %vm171, %v3309, 0
    %v4180 = vsel %vm171, %v3310, 0
    %v4183 = vsel %vm171, %v3311, 0
    %4185 = vmatprep.subr.bf16.mxu0 0
    %4186 = vmatpush1.bf16.msra.mxu0 0
    %4187 = vmatprep.subr.bf16.mxu0 0
    %4188 = vmatpush1.bf16.msra.mxu0 0
    %4189 = vmatprep.subr.bf16.mxu0 0
    %4190 = vmatpush1.bf16.msra.mxu0 0
    %4191 = vmatprep.subr.bf16.mxu0 0
    %4192 = vmatpush1.bf16.msra.mxu0 0
    %4193 = vmatprep.subr.bf16.mxu0 0
    %4194 = vmatpush1.bf16.msra.mxu0 %v932
    %4195 = vmatprep.subr.bf16.mxu0 0
    %4196 = vmatpush1.bf16.msra.mxu0 %v930
    %4197 = vmatprep.subr.bf16.mxu0 0
    %4198 = vmatpush1.bf16.msra.mxu0 %v928
    %4199 = vmatprep.subr.bf16.mxu0 0
    %4200 = vmatpush1.bf16.msra.mxu0 %v926
    %4201 = vmatprep.subr.bf16.mxu0 0
    %4202 = vmatpush2.bf16.msra.mxu0 0
    %4203 = vmatprep.subr.bf16.mxu0 0
    %4204 = vmatpush2.bf16.msra.mxu0 0
    %4205 = vmatprep.subr.bf16.mxu0 0
    %4206 = vmatpush2.bf16.msra.mxu0 0
    %4207 = vmatprep.subr.bf16.mxu0 0
    %4208 = vmatpush2.bf16.msra.mxu0 0
    %4209 = vmatprep.subr.bf16.mxu0 0
    %4210 = vmatpush2.bf16.msra.mxu0 0
    %4211 = vmatprep.subr.bf16.mxu0 0
    %4212 = vmatpush2.bf16.msra.mxu0 0
    %4213 = vmatprep.subr.bf16.mxu0 0
    %4214 = vmatpush2.bf16.msra.mxu0 0
    %4215 = vmatprep.subr.bf16.mxu0 0
    %4216 = vmatpush2.bf16.msra.mxu0 0
    %4217 = vmatprep.mubr.bf16.mxu0 0
    %4218 = vmatmul.mubr.bf16.gmra.mxu0 %v4177
    %v4219 = vpop.f32.mrf.mxu0
    %v4220 = vadd.f32 0.0, %v4219
    %v4221 = vpop.f32.mrf.mxu0
    %v4222 = vpop.f32.mrf.mxu0
    %v4223 = vadd.f32 0.0, %v4222
    %v4224 = vpop.f32.mrf.mxu0
    %4225 = vmatprep.mubr.bf16.mxu0 0
    %4226 = vmatmul.mubr.bf16.gmra.mxu0 %v4180
    %v4227 = vpop.f32.mrf.mxu0
    %v4228 = vadd.f32 0.0, %v4227
    %v4229 = vpop.f32.mrf.mxu0
    %v4230 = vpop.f32.mrf.mxu0
    %v4231 = vadd.f32 0.0, %v4230
    %v4232 = vpop.f32.mrf.mxu0
    %4233 = vmatprep.mubr.bf16.mxu0 0
    %4234 = vmatmul.mubr.bf16.gmra.mxu0 %v4183
    %v4235 = vpop.f32.mrf.mxu0
    %v4236 = vadd.f32 0.0, %v4235
    %v4237 = vpop.f32.mrf.mxu0
    %v4238 = vpop.f32.mrf.mxu0
    %v4239 = vadd.f32 0.0, %v4238
    %v4240 = vpop.f32.mrf.mxu0
    %4241 = vdwg.mxu0
    %v4243 = vsel %vm171, %v3312, 0
    %v4246 = vsel %vm171, %v3313, 0
    %v4249 = vsel %vm171, %v3314, 0
    %4251 = vmatprep.subr.bf16.mxu0 0
    %4252 = vmatpush1.bf16.msra.mxu0 0
    %4253 = vmatprep.subr.bf16.mxu0 0
    %4254 = vmatpush1.bf16.msra.mxu0 0
    %4255 = vmatprep.subr.bf16.mxu0 0
    %4256 = vmatpush1.bf16.msra.mxu0 0
    %4257 = vmatprep.subr.bf16.mxu0 0
    %4258 = vmatpush1.bf16.msra.mxu0 0
    %4259 = vmatprep.subr.bf16.mxu0 0
    %4260 = vmatpush1.bf16.msra.mxu0 %v948
    %4261 = vmatprep.subr.bf16.mxu0 0
    %4262 = vmatpush1.bf16.msra.mxu0 %v946
    %4263 = vmatprep.subr.bf16.mxu0 0
    %4264 = vmatpush1.bf16.msra.mxu0 %v944
    %4265 = vmatprep.subr.bf16.mxu0 0
    %4266 = vmatpush1.bf16.msra.mxu0 %v942
    %4267 = vmatprep.subr.bf16.mxu0 0
    %4268 = vmatpush2.bf16.msra.mxu0 0
    %4269 = vmatprep.subr.bf16.mxu0 0
    %4270 = vmatpush2.bf16.msra.mxu0 0
    %4271 = vmatprep.subr.bf16.mxu0 0
    %4272 = vmatpush2.bf16.msra.mxu0 0
    %4273 = vmatprep.subr.bf16.mxu0 0
    %4274 = vmatpush2.bf16.msra.mxu0 0
    %4275 = vmatprep.subr.bf16.mxu0 0
    %4276 = vmatpush2.bf16.msra.mxu0 0
    %4277 = vmatprep.subr.bf16.mxu0 0
    %4278 = vmatpush2.bf16.msra.mxu0 0
    %4279 = vmatprep.subr.bf16.mxu0 0
    %4280 = vmatpush2.bf16.msra.mxu0 0
    %4281 = vmatprep.subr.bf16.mxu0 0
    %4282 = vmatpush2.bf16.msra.mxu0 0
    %4283 = vmatprep.mubr.bf16.mxu0 0
    %4284 = vmatmul.mubr.bf16.gmra.mxu0 %v4243
    %v4285 = vpop.f32.mrf.mxu0
    %v4286 = vadd.f32 0.0, %v4285
    %v4287 = vpop.f32.mrf.mxu0
    %v4288 = vpop.f32.mrf.mxu0
    %v4289 = vadd.f32 0.0, %v4288
    %v4290 = vpop.f32.mrf.mxu0
    %4291 = vmatprep.mubr.bf16.mxu0 0
    %4292 = vmatmul.mubr.bf16.gmra.mxu0 %v4246
    %v4293 = vpop.f32.mrf.mxu0
    %v4294 = vadd.f32 0.0, %v4293
    %v4295 = vpop.f32.mrf.mxu0
    %v4296 = vpop.f32.mrf.mxu0
    %v4297 = vadd.f32 0.0, %v4296
    %v4298 = vpop.f32.mrf.mxu0
    %4299 = vmatprep.mubr.bf16.mxu0 0
    %4300 = vmatmul.mubr.bf16.gmra.mxu0 %v4249
    %v4301 = vpop.f32.mrf.mxu0
    %v4302 = vadd.f32 0.0, %v4301
    %v4303 = vpop.f32.mrf.mxu0
    %v4304 = vpop.f32.mrf.mxu0
    %v4305 = vadd.f32 0.0, %v4304
    %v4306 = vpop.f32.mrf.mxu0
    %4307 = vdwg.mxu0
    %v4309 = vsel %vm171, %v3315, 0
    %v4312 = vsel %vm171, %v3316, 0
    %v4315 = vsel %vm171, %v3317, 0
    %4317 = vmatprep.subr.bf16.mxu0 0
    %4318 = vmatpush1.bf16.msra.mxu0 0
    %4319 = vmatprep.subr.bf16.mxu0 0
    %4320 = vmatpush1.bf16.msra.mxu0 0
    %4321 = vmatprep.subr.bf16.mxu0 0
    %4322 = vmatpush1.bf16.msra.mxu0 0
    %4323 = vmatprep.subr.bf16.mxu0 0
    %4324 = vmatpush1.bf16.msra.mxu0 0
    %4325 = vmatprep.subr.bf16.mxu0 0
    %4326 = vmatpush1.bf16.msra.mxu0 %v956
    %4327 = vmatprep.subr.bf16.mxu0 0
    %4328 = vmatpush1.bf16.msra.mxu0 %v954
    %4329 = vmatprep.subr.bf16.mxu0 0
    %4330 = vmatpush1.bf16.msra.mxu0 %v952
    %4331 = vmatprep.subr.bf16.mxu0 0
    %4332 = vmatpush1.bf16.msra.mxu0 %v950
    %4333 = vmatprep.subr.bf16.mxu0 0
    %4334 = vmatpush2.bf16.msra.mxu0 0
    %4335 = vmatprep.subr.bf16.mxu0 0
    %4336 = vmatpush2.bf16.msra.mxu0 0
    %4337 = vmatprep.subr.bf16.mxu0 0
    %4338 = vmatpush2.bf16.msra.mxu0 0
    %4339 = vmatprep.subr.bf16.mxu0 0
    %4340 = vmatpush2.bf16.msra.mxu0 0
    %4341 = vmatprep.subr.bf16.mxu0 0
    %4342 = vmatpush2.bf16.msra.mxu0 0
    %4343 = vmatprep.subr.bf16.mxu0 0
    %4344 = vmatpush2.bf16.msra.mxu0 0
    %4345 = vmatprep.subr.bf16.mxu0 0
    %4346 = vmatpush2.bf16.msra.mxu0 0
    %4347 = vmatprep.subr.bf16.mxu0 0
    %4348 = vmatpush2.bf16.msra.mxu0 0
    %4349 = vmatprep.mubr.bf16.mxu0 0
    %4350 = vmatmul.mubr.bf16.gmra.mxu0 %v4309
    %v4351 = vpop.f32.mrf.mxu0
    %v4352 = vadd.f32 0.0, %v4351
    %v4353 = vpop.f32.mrf.mxu0
    %v4354 = vpop.f32.mrf.mxu0
    %v4355 = vadd.f32 0.0, %v4354
    %v4356 = vpop.f32.mrf.mxu0
    %4357 = vmatprep.mubr.bf16.mxu0 0
    %4358 = vmatmul.mubr.bf16.gmra.mxu0 %v4312
    %v4359 = vpop.f32.mrf.mxu0
    %v4360 = vadd.f32 0.0, %v4359
    %v4361 = vpop.f32.mrf.mxu0
    %v4362 = vpop.f32.mrf.mxu0
    %v4363 = vadd.f32 0.0, %v4362
    %v4364 = vpop.f32.mrf.mxu0
    %4365 = vmatprep.mubr.bf16.mxu0 0
    %4366 = vmatmul.mubr.bf16.gmra.mxu0 %v4315
    %v4367 = vpop.f32.mrf.mxu0
    %v4368 = vadd.f32 0.0, %v4367
    %v4369 = vpop.f32.mrf.mxu0
    %v4370 = vpop.f32.mrf.mxu0
    %v4371 = vadd.f32 0.0, %v4370
    %v4372 = vpop.f32.mrf.mxu0
    %4373 = vdwg.mxu0
    %v4374 = vpack.c.bf16 %v3365, %v3362
    %v4375 = vpack.c.bf16 %v3373, %v3370
    %v4376 = vpack.c.bf16 %v3381, %v3378
    %v4377 = vpack.c.bf16 %v3431, %v3428
    %v4378 = vpack.c.bf16 %v3439, %v3436
    %v4379 = vpack.c.bf16 %v3447, %v3444
    %v4380 = vld [vmem:[#allocation10] sm:$0xf]
    %v4381 = vpack.c.bf16 %v3497, %v3494
    %v4382 = vpack.c.bf16 %v3505, %v3502
    %v4383 = vpack.c.bf16 %v3513, %v3510
    %v4384 = vpack.c.bf16 %v3563, %v3560
    %v4385 = vpack.c.bf16 %v3571, %v3568
    %v4386 = vpack.c.bf16 %v3579, %v3576
    %s4387 = scalar_lea.vmem [#allocation10], 4
    %v4388 = vld [vmem:[%s4387] sm:$0xf]
    %v4390 = vsel %vm965, %v4381, 0
    %v4393 = vsel %vm965, %v4382, 0
    %v4396 = vsel %vm965, %v4383, 0
    %v4399 = vsel %vm965, %v4384, 0
    %v4402 = vsel %vm965, %v4385, 0
    %v4405 = vsel %vm965, %v4386, 0
    %vm4407 = vcmask 1043456
    %v4409 = vsel %vm4407, %v4388, 0
    %4411 = vmatprep.subr.bf16.mxu0 0
    %4412 = vmatpush1.bf16.msra.mxu0 0
    %4413 = vmatprep.subr.bf16.mxu0 0
    %4414 = vmatpush1.bf16.msra.mxu0 0
    %4415 = vmatprep.subr.bf16.mxu0 0
    %4416 = vmatpush1.bf16.msra.mxu0 0
    %4417 = vmatprep.subr.bf16.mxu0 0
    %4418 = vmatpush1.bf16.msra.mxu0 0
    %4419 = vmatprep.subr.bf16.mxu0 0
    %4420 = vmatpush1.bf16.msra.mxu0 0
    %4421 = vmatprep.subr.bf16.mxu0 0
    %4422 = vmatpush1.bf16.msra.mxu0 0
    %4423 = vmatprep.subr.bf16.mxu0 0
    %4424 = vmatpush1.bf16.msra.mxu0 0
    %4425 = vmatprep.subr.bf16.mxu0 0
    %4426 = vmatpush1.bf16.msra.mxu0 %v4409
    %4427 = vmatprep.subr.bf16.mxu0 0
    %4428 = vmatpush2.bf16.msra.mxu0 0
    %4429 = vmatprep.subr.bf16.mxu0 0
    %4430 = vmatpush2.bf16.msra.mxu0 0
    %4431 = vmatprep.subr.bf16.mxu0 0
    %4432 = vmatpush2.bf16.msra.mxu0 0
    %4433 = vmatprep.subr.bf16.mxu0 0
    %4434 = vmatpush2.bf16.msra.mxu0 0
    %4435 = vmatprep.subr.bf16.mxu0 0
    %4436 = vmatpush2.bf16.msra.mxu0 0
    %4437 = vmatprep.subr.bf16.mxu0 0
    %4438 = vmatpush2.bf16.msra.mxu0 0
    %4439 = vmatprep.subr.bf16.mxu0 0
    %4440 = vmatpush2.bf16.msra.mxu0 0
    %4441 = vmatprep.subr.bf16.mxu0 0
    %4442 = vmatpush2.bf16.msra.mxu0 0
    %4443 = vmatprep.mubr.bf16.mxu0 0
    %4444 = vmatmul.mubr.bf16.gmra.mxu0 %v4390
    %v4445 = vpop.f32.mrf.mxu0
    %v4446 = vadd.f32 0.0, %v4445
    %v4447 = vpop.f32.mrf.mxu0
    %v4448 = vpop.f32.mrf.mxu0
    %v4449 = vadd.f32 0.0, %v4448
    %v4450 = vpop.f32.mrf.mxu0
    %4451 = vmatprep.mubr.bf16.mxu0 0
    %4452 = vmatmul.mubr.bf16.gmra.mxu0 %v4393
    %v4453 = vpop.f32.mrf.mxu0
    %v4454 = vadd.f32 0.0, %v4453
    %v4455 = vpop.f32.mrf.mxu0
    %v4456 = vpop.f32.mrf.mxu0
    %v4457 = vadd.f32 0.0, %v4456
    %v4458 = vpop.f32.mrf.mxu0
    %4459 = vmatprep.mubr.bf16.mxu0 0
    %4460 = vmatmul.mubr.bf16.gmra.mxu0 %v4396
    %v4461 = vpop.f32.mrf.mxu0
    %v4462 = vadd.f32 0.0, %v4461
    %v4463 = vpop.f32.mrf.mxu0
    %v4464 = vpop.f32.mrf.mxu0
    %v4465 = vadd.f32 0.0, %v4464
    %v4466 = vpop.f32.mrf.mxu0
    %4467 = vmatprep.mubr.bf16.mxu0 0
    %4468 = vmatmul.mubr.bf16.gmra.mxu0 %v4399
    %v4469 = vpop.f32.mrf.mxu0
    %v4470 = vadd.f32 0.0, %v4469
    %v4471 = vpop.f32.mrf.mxu0
    %v4472 = vpop.f32.mrf.mxu0
    %v4473 = vadd.f32 0.0, %v4472
    %v4474 = vpop.f32.mrf.mxu0
    %4475 = vmatprep.mubr.bf16.mxu0 0
    %4476 = vmatmul.mubr.bf16.gmra.mxu0 %v4402
    %v4477 = vpop.f32.mrf.mxu0
    %v4478 = vadd.f32 0.0, %v4477
    %v4479 = vpop.f32.mrf.mxu0
    %v4480 = vpop.f32.mrf.mxu0
    %v4481 = vadd.f32 0.0, %v4480
    %v4482 = vpop.f32.mrf.mxu0
    %4483 = vmatprep.mubr.bf16.mxu0 0
    %4484 = vmatmul.mubr.bf16.gmra.mxu0 %v4405
    %v4485 = vpop.f32.mrf.mxu0
    %v4486 = vadd.f32 0.0, %v4485
    %v4487 = vpop.f32.mrf.mxu0
    %v4488 = vpop.f32.mrf.mxu0
    %v4489 = vadd.f32 0.0, %v4488
    %v4490 = vpop.f32.mrf.mxu0
    %4491 = vdwg.mxu0
    %v4493 = vsel %vm965, %v4374, 0
    %v4496 = vsel %vm965, %v4375, 0
    %v4499 = vsel %vm965, %v4376, 0
    %v4502 = vsel %vm965, %v4377, 0
    %v4505 = vsel %vm965, %v4378, 0
    %v4508 = vsel %vm965, %v4379, 0
    %v4511 = vsel %vm4407, %v4380, 0
    %4513 = vmatprep.subr.bf16.mxu0 0
    %4514 = vmatpush1.bf16.msra.mxu0 0
    %4515 = vmatprep.subr.bf16.mxu0 0
    %4516 = vmatpush1.bf16.msra.mxu0 0
    %4517 = vmatprep.subr.bf16.mxu0 0
    %4518 = vmatpush1.bf16.msra.mxu0 0
    %4519 = vmatprep.subr.bf16.mxu0 0
    %4520 = vmatpush1.bf16.msra.mxu0 0
    %4521 = vmatprep.subr.bf16.mxu0 0
    %4522 = vmatpush1.bf16.msra.mxu0 0
    %4523 = vmatprep.subr.bf16.mxu0 0
    %4524 = vmatpush1.bf16.msra.mxu0 0
    %4525 = vmatprep.subr.bf16.mxu0 0
    %4526 = vmatpush1.bf16.msra.mxu0 0
    %4527 = vmatprep.subr.bf16.mxu0 0
    %4528 = vmatpush1.bf16.msra.mxu0 %v4511
    %4529 = vmatprep.subr.bf16.mxu0 0
    %4530 = vmatpush2.bf16.msra.mxu0 0
    %4531 = vmatprep.subr.bf16.mxu0 0
    %4532 = vmatpush2.bf16.msra.mxu0 0
    %4533 = vmatprep.subr.bf16.mxu0 0
    %4534 = vmatpush2.bf16.msra.mxu0 0
    %4535 = vmatprep.subr.bf16.mxu0 0
    %4536 = vmatpush2.bf16.msra.mxu0 0
    %4537 = vmatprep.subr.bf16.mxu0 0
    %4538 = vmatpush2.bf16.msra.mxu0 0
    %4539 = vmatprep.subr.bf16.mxu0 0
    %4540 = vmatpush2.bf16.msra.mxu0 0
    %4541 = vmatprep.subr.bf16.mxu0 0
    %4542 = vmatpush2.bf16.msra.mxu0 0
    %4543 = vmatprep.subr.bf16.mxu0 0
    %4544 = vmatpush2.bf16.msra.mxu0 0
    %4545 = vmatprep.mubr.bf16.mxu0 0
    %4546 = vmatmul.mubr.bf16.gmra.mxu0 %v4493
    %v4547 = vpop.f32.mrf.mxu0
    %v4548 = vadd.f32 %v4446, %v4547
    %v4549 = vpop.f32.mrf.mxu0
    %v4550 = vpop.f32.mrf.mxu0
    %v4551 = vadd.f32 %v4449, %v4550
    %v4552 = vpop.f32.mrf.mxu0
    %4553 = vmatprep.mubr.bf16.mxu0 0
    %4554 = vmatmul.mubr.bf16.gmra.mxu0 %v4496
    %v4555 = vpop.f32.mrf.mxu0
    %v4556 = vadd.f32 %v4454, %v4555
    %v4557 = vpop.f32.mrf.mxu0
    %v4558 = vpop.f32.mrf.mxu0
    %v4559 = vadd.f32 %v4457, %v4558
    %v4560 = vpop.f32.mrf.mxu0
    %4561 = vmatprep.mubr.bf16.mxu0 0
    %4562 = vmatmul.mubr.bf16.gmra.mxu0 %v4499
    %v4563 = vpop.f32.mrf.mxu0
    %v4564 = vadd.f32 %v4462, %v4563
    %v4565 = vpop.f32.mrf.mxu0
    %v4566 = vpop.f32.mrf.mxu0
    %v4567 = vadd.f32 %v4465, %v4566
    %v4568 = vpop.f32.mrf.mxu0
    %4569 = vmatprep.mubr.bf16.mxu0 0
    %4570 = vmatmul.mubr.bf16.gmra.mxu0 %v4502
    %v4571 = vpop.f32.mrf.mxu0
    %v4572 = vadd.f32 %v4470, %v4571
    %v4573 = vpop.f32.mrf.mxu0
    %v4574 = vpop.f32.mrf.mxu0
    %v4575 = vadd.f32 %v4473, %v4574
    %v4576 = vpop.f32.mrf.mxu0
    %4577 = vmatprep.mubr.bf16.mxu0 0
    %4578 = vmatmul.mubr.bf16.gmra.mxu0 %v4505
    %v4579 = vpop.f32.mrf.mxu0
    %v4580 = vadd.f32 %v4478, %v4579
    %v4581 = vpop.f32.mrf.mxu0
    %v4582 = vpop.f32.mrf.mxu0
    %v4583 = vadd.f32 %v4481, %v4582
    %v4584 = vpop.f32.mrf.mxu0
    %4585 = vmatprep.mubr.bf16.mxu0 0
    %4586 = vmatmul.mubr.bf16.gmra.mxu0 %v4508
    %v4587 = vpop.f32.mrf.mxu0
    %v4588 = vadd.f32 %v4486, %v4587
    %v4589 = vpop.f32.mrf.mxu0
    %v4590 = vpop.f32.mrf.mxu0
    %v4591 = vadd.f32 %v4489, %v4590
    %v4592 = vpop.f32.mrf.mxu0
    %4593 = vdwg.mxu0
    %v4594 = vpack.c.bf16 %v3629, %v3626
    %v4595 = vpack.c.bf16 %v3637, %v3634
    %v4596 = vpack.c.bf16 %v3645, %v3642
    %v4597 = vpack.c.bf16 %v3695, %v3692
    %v4598 = vpack.c.bf16 %v3703, %v3700
    %v4599 = vpack.c.bf16 %v3711, %v3708
    %s4600 = scalar_lea.vmem [#allocation10], 8
    %v4601 = vld [vmem:[%s4600] sm:$0xf]
    %v4603 = vsel %vm965, %v4594, 0
    %v4606 = vsel %vm965, %v4595, 0
    %v4609 = vsel %vm965, %v4596, 0
    %v4612 = vsel %vm965, %v4597, 0
    %v4615 = vsel %vm965, %v4598, 0
    %v4618 = vsel %vm965, %v4599, 0
    %v4621 = vsel %vm4407, %v4601, 0
    %4623 = vmatprep.subr.bf16.mxu0 0
    %4624 = vmatpush1.bf16.msra.mxu0 0
    %4625 = vmatprep.subr.bf16.mxu0 0
    %4626 = vmatpush1.bf16.msra.mxu0 0
    %4627 = vmatprep.subr.bf16.mxu0 0
    %4628 = vmatpush1.bf16.msra.mxu0 0
    %4629 = vmatprep.subr.bf16.mxu0 0
    %4630 = vmatpush1.bf16.msra.mxu0 0
    %4631 = vmatprep.subr.bf16.mxu0 0
    %4632 = vmatpush1.bf16.msra.mxu0 0
    %4633 = vmatprep.subr.bf16.mxu0 0
    %4634 = vmatpush1.bf16.msra.mxu0 0
    %4635 = vmatprep.subr.bf16.mxu0 0
    %4636 = vmatpush1.bf16.msra.mxu0 0
    %4637 = vmatprep.subr.bf16.mxu0 0
    %4638 = vmatpush1.bf16.msra.mxu0 %v4621
    %4639 = vmatprep.subr.bf16.mxu0 0
    %4640 = vmatpush2.bf16.msra.mxu0 0
    %4641 = vmatprep.subr.bf16.mxu0 0
    %4642 = vmatpush2.bf16.msra.mxu0 0
    %4643 = vmatprep.subr.bf16.mxu0 0
    %4644 = vmatpush2.bf16.msra.mxu0 0
    %4645 = vmatprep.subr.bf16.mxu0 0
    %4646 = vmatpush2.bf16.msra.mxu0 0
    %4647 = vmatprep.subr.bf16.mxu0 0
    %4648 = vmatpush2.bf16.msra.mxu0 0
    %4649 = vmatprep.subr.bf16.mxu0 0
    %4650 = vmatpush2.bf16.msra.mxu0 0
    %4651 = vmatprep.subr.bf16.mxu0 0
    %4652 = vmatpush2.bf16.msra.mxu0 0
    %4653 = vmatprep.subr.bf16.mxu0 0
    %4654 = vmatpush2.bf16.msra.mxu0 0
    %4655 = vmatprep.mubr.bf16.mxu0 0
    %4656 = vmatmul.mubr.bf16.gmra.mxu0 %v4603
    %v4657 = vpop.f32.mrf.mxu0
    %v4658 = vadd.f32 0.0, %v4657
    %v4659 = vpop.f32.mrf.mxu0
    %v4660 = vpop.f32.mrf.mxu0
    %v4661 = vadd.f32 0.0, %v4660
    %v4662 = vpop.f32.mrf.mxu0
    %4663 = vmatprep.mubr.bf16.mxu0 0
    %4664 = vmatmul.mubr.bf16.gmra.mxu0 %v4606
    %v4665 = vpop.f32.mrf.mxu0
    %v4666 = vadd.f32 0.0, %v4665
    %v4667 = vpop.f32.mrf.mxu0
    %v4668 = vpop.f32.mrf.mxu0
    %v4669 = vadd.f32 0.0, %v4668
    %v4670 = vpop.f32.mrf.mxu0
    %4671 = vmatprep.mubr.bf16.mxu0 0
    %4672 = vmatmul.mubr.bf16.gmra.mxu0 %v4609
    %v4673 = vpop.f32.mrf.mxu0
    %v4674 = vadd.f32 0.0, %v4673
    %v4675 = vpop.f32.mrf.mxu0
    %v4676 = vpop.f32.mrf.mxu0
    %v4677 = vadd.f32 0.0, %v4676
    %v4678 = vpop.f32.mrf.mxu0
    %4679 = vmatprep.mubr.bf16.mxu0 0
    %4680 = vmatmul.mubr.bf16.gmra.mxu0 %v4612
    %v4681 = vpop.f32.mrf.mxu0
    %v4682 = vadd.f32 0.0, %v4681
    %v4683 = vpop.f32.mrf.mxu0
    %v4684 = vpop.f32.mrf.mxu0
    %v4685 = vadd.f32 0.0, %v4684
    %v4686 = vpop.f32.mrf.mxu0
    %4687 = vmatprep.mubr.bf16.mxu0 0
    %4688 = vmatmul.mubr.bf16.gmra.mxu0 %v4615
    %v4689 = vpop.f32.mrf.mxu0
    %v4690 = vadd.f32 0.0, %v4689
    %v4691 = vpop.f32.mrf.mxu0
    %v4692 = vpop.f32.mrf.mxu0
    %v4693 = vadd.f32 0.0, %v4692
    %v4694 = vpop.f32.mrf.mxu0
    %4695 = vmatprep.mubr.bf16.mxu0 0
    %4696 = vmatmul.mubr.bf16.gmra.mxu0 %v4618
    %v4697 = vpop.f32.mrf.mxu0
    %v4698 = vadd.f32 0.0, %v4697
    %v4699 = vpop.f32.mrf.mxu0
    %v4700 = vpop.f32.mrf.mxu0
    %v4701 = vadd.f32 0.0, %v4700
    %v4702 = vpop.f32.mrf.mxu0
    %4703 = vdwg.mxu0
    %v4704 = vadd.f32 %v4548, %v4658
    %v4705 = vadd.f32 %v4551, %v4661
    %v4706 = vadd.f32 %v4556, %v4666
    %v4707 = vadd.f32 %v4559, %v4669
    %v4708 = vadd.f32 %v4564, %v4674
    %v4709 = vadd.f32 %v4567, %v4677
    %v4710 = vadd.f32 %v4572, %v4682
    %v4711 = vadd.f32 %v4575, %v4685
    %v4712 = vadd.f32 %v4580, %v4690
    %v4713 = vadd.f32 %v4583, %v4693
    %v4714 = vadd.f32 %v4588, %v4698
    %v4715 = vadd.f32 %v4591, %v4701
    %v4716 = vpack.c.bf16 %v3761, %v3758
    %v4717 = vpack.c.bf16 %v3769, %v3766
    %v4718 = vpack.c.bf16 %v3777, %v3774
    %v4719 = vpack.c.bf16 %v3827, %v3824
    %v4720 = vpack.c.bf16 %v3835, %v3832
    %v4721 = vpack.c.bf16 %v3843, %v3840
    %s4722 = scalar_lea.vmem [#allocation10], 12
    %v4723 = vld [vmem:[%s4722] sm:$0xf]
    %v4725 = vsel %vm965, %v4716, 0
    %v4728 = vsel %vm965, %v4717, 0
    %v4731 = vsel %vm965, %v4718, 0
    %v4734 = vsel %vm965, %v4719, 0
    %v4737 = vsel %vm965, %v4720, 0
    %v4740 = vsel %vm965, %v4721, 0
    %v4743 = vsel %vm4407, %v4723, 0
    %4745 = vmatprep.subr.bf16.mxu0 0
    %4746 = vmatpush1.bf16.msra.mxu0 0
    %4747 = vmatprep.subr.bf16.mxu0 0
    %4748 = vmatpush1.bf16.msra.mxu0 0
    %4749 = vmatprep.subr.bf16.mxu0 0
    %4750 = vmatpush1.bf16.msra.mxu0 0
    %4751 = vmatprep.subr.bf16.mxu0 0
    %4752 = vmatpush1.bf16.msra.mxu0 0
    %4753 = vmatprep.subr.bf16.mxu0 0
    %4754 = vmatpush1.bf16.msra.mxu0 0
    %4755 = vmatprep.subr.bf16.mxu0 0
    %4756 = vmatpush1.bf16.msra.mxu0 0
    %4757 = vmatprep.subr.bf16.mxu0 0
    %4758 = vmatpush1.bf16.msra.mxu0 0
    %4759 = vmatprep.subr.bf16.mxu0 0
    %4760 = vmatpush1.bf16.msra.mxu0 %v4743
    %4761 = vmatprep.subr.bf16.mxu0 0
    %4762 = vmatpush2.bf16.msra.mxu0 0
    %4763 = vmatprep.subr.bf16.mxu0 0
    %4764 = vmatpush2.bf16.msra.mxu0 0
    %4765 = vmatprep.subr.bf16.mxu0 0
    %4766 = vmatpush2.bf16.msra.mxu0 0
    %4767 = vmatprep.subr.bf16.mxu0 0
    %4768 = vmatpush2.bf16.msra.mxu0 0
    %4769 = vmatprep.subr.bf16.mxu0 0
    %4770 = vmatpush2.bf16.msra.mxu0 0
    %4771 = vmatprep.subr.bf16.mxu0 0
    %4772 = vmatpush2.bf16.msra.mxu0 0
    %4773 = vmatprep.subr.bf16.mxu0 0
    %4774 = vmatpush2.bf16.msra.mxu0 0
    %4775 = vmatprep.subr.bf16.mxu0 0
    %4776 = vmatpush2.bf16.msra.mxu0 0
    %4777 = vmatprep.mubr.bf16.mxu0 0
    %4778 = vmatmul.mubr.bf16.gmra.mxu0 %v4725
    %v4779 = vpop.f32.mrf.mxu0
    %v4780 = vadd.f32 0.0, %v4779
    %v4781 = vpop.f32.mrf.mxu0
    %v4782 = vpop.f32.mrf.mxu0
    %v4783 = vadd.f32 0.0, %v4782
    %v4784 = vpop.f32.mrf.mxu0
    %4785 = vmatprep.mubr.bf16.mxu0 0
    %4786 = vmatmul.mubr.bf16.gmra.mxu0 %v4728
    %v4787 = vpop.f32.mrf.mxu0
    %v4788 = vadd.f32 0.0, %v4787
    %v4789 = vpop.f32.mrf.mxu0
    %v4790 = vpop.f32.mrf.mxu0
    %v4791 = vadd.f32 0.0, %v4790
    %v4792 = vpop.f32.mrf.mxu0
    %4793 = vmatprep.mubr.bf16.mxu0 0
    %4794 = vmatmul.mubr.bf16.gmra.mxu0 %v4731
    %v4795 = vpop.f32.mrf.mxu0
    %v4796 = vadd.f32 0.0, %v4795
    %v4797 = vpop.f32.mrf.mxu0
    %v4798 = vpop.f32.mrf.mxu0
    %v4799 = vadd.f32 0.0, %v4798
    %v4800 = vpop.f32.mrf.mxu0
    %4801 = vmatprep.mubr.bf16.mxu0 0
    %4802 = vmatmul.mubr.bf16.gmra.mxu0 %v4734
    %v4803 = vpop.f32.mrf.mxu0
    %v4804 = vadd.f32 0.0, %v4803
    %v4805 = vpop.f32.mrf.mxu0
    %v4806 = vpop.f32.mrf.mxu0
    %v4807 = vadd.f32 0.0, %v4806
    %v4808 = vpop.f32.mrf.mxu0
    %4809 = vmatprep.mubr.bf16.mxu0 0
    %4810 = vmatmul.mubr.bf16.gmra.mxu0 %v4737
    %v4811 = vpop.f32.mrf.mxu0
    %v4812 = vadd.f32 0.0, %v4811
    %v4813 = vpop.f32.mrf.mxu0
    %v4814 = vpop.f32.mrf.mxu0
    %v4815 = vadd.f32 0.0, %v4814
    %v4816 = vpop.f32.mrf.mxu0
    %4817 = vmatprep.mubr.bf16.mxu0 0
    %4818 = vmatmul.mubr.bf16.gmra.mxu0 %v4740
    %v4819 = vpop.f32.mrf.mxu0
    %v4820 = vadd.f32 0.0, %v4819
    %v4821 = vpop.f32.mrf.mxu0
    %v4822 = vpop.f32.mrf.mxu0
    %v4823 = vadd.f32 0.0, %v4822
    %v4824 = vpop.f32.mrf.mxu0
    %4825 = vdwg.mxu0
    %v4826 = vadd.f32 %v4704, %v4780
    %v4827 = vadd.f32 %v4705, %v4783
    %v4828 = vadd.f32 %v4706, %v4788
    %v4829 = vadd.f32 %v4707, %v4791
    %v4830 = vadd.f32 %v4708, %v4796
    %v4831 = vadd.f32 %v4709, %v4799
    %v4832 = vadd.f32 %v4710, %v4804
    %v4833 = vadd.f32 %v4711, %v4807
    %v4834 = vadd.f32 %v4712, %v4812
    %v4835 = vadd.f32 %v4713, %v4815
    %v4836 = vadd.f32 %v4714, %v4820
    %v4837 = vadd.f32 %v4715, %v4823
    %v4838 = vpack.c.bf16 %v3893, %v3890
    %v4839 = vpack.c.bf16 %v3901, %v3898
    %v4840 = vpack.c.bf16 %v3909, %v3906
    %v4841 = vpack.c.bf16 %v3959, %v3956
    %v4842 = vpack.c.bf16 %v3967, %v3964
    %v4843 = vpack.c.bf16 %v3975, %v3972
    %s4844 = scalar_lea.vmem [#allocation10], 16
    %v4845 = vld [vmem:[%s4844] sm:$0xf]
    %v4847 = vsel %vm965, %v4838, 0
    %v4850 = vsel %vm965, %v4839, 0
    %v4853 = vsel %vm965, %v4840, 0
    %v4856 = vsel %vm965, %v4841, 0
    %v4859 = vsel %vm965, %v4842, 0
    %v4862 = vsel %vm965, %v4843, 0
    %v4865 = vsel %vm4407, %v4845, 0
    %4867 = vmatprep.subr.bf16.mxu0 0
    %4868 = vmatpush1.bf16.msra.mxu0 0
    %4869 = vmatprep.subr.bf16.mxu0 0
    %4870 = vmatpush1.bf16.msra.mxu0 0
    %4871 = vmatprep.subr.bf16.mxu0 0
    %4872 = vmatpush1.bf16.msra.mxu0 0
    %4873 = vmatprep.subr.bf16.mxu0 0
    %4874 = vmatpush1.bf16.msra.mxu0 0
    %4875 = vmatprep.subr.bf16.mxu0 0
    %4876 = vmatpush1.bf16.msra.mxu0 0
    %4877 = vmatprep.subr.bf16.mxu0 0
    %4878 = vmatpush1.bf16.msra.mxu0 0
    %4879 = vmatprep.subr.bf16.mxu0 0
    %4880 = vmatpush1.bf16.msra.mxu0 0
    %4881 = vmatprep.subr.bf16.mxu0 0
    %4882 = vmatpush1.bf16.msra.mxu0 %v4865
    %4883 = vmatprep.subr.bf16.mxu0 0
    %4884 = vmatpush2.bf16.msra.mxu0 0
    %4885 = vmatprep.subr.bf16.mxu0 0
    %4886 = vmatpush2.bf16.msra.mxu0 0
    %4887 = vmatprep.subr.bf16.mxu0 0
    %4888 = vmatpush2.bf16.msra.mxu0 0
    %4889 = vmatprep.subr.bf16.mxu0 0
    %4890 = vmatpush2.bf16.msra.mxu0 0
    %4891 = vmatprep.subr.bf16.mxu0 0
    %4892 = vmatpush2.bf16.msra.mxu0 0
    %4893 = vmatprep.subr.bf16.mxu0 0
    %4894 = vmatpush2.bf16.msra.mxu0 0
    %4895 = vmatprep.subr.bf16.mxu0 0
    %4896 = vmatpush2.bf16.msra.mxu0 0
    %4897 = vmatprep.subr.bf16.mxu0 0
    %4898 = vmatpush2.bf16.msra.mxu0 0
    %4899 = vmatprep.mubr.bf16.mxu0 0
    %4900 = vmatmul.mubr.bf16.gmra.mxu0 %v4847
    %v4901 = vpop.f32.mrf.mxu0
    %v4902 = vadd.f32 0.0, %v4901
    %v4903 = vpop.f32.mrf.mxu0
    %v4904 = vpop.f32.mrf.mxu0
    %v4905 = vadd.f32 0.0, %v4904
    %v4906 = vpop.f32.mrf.mxu0
    %4907 = vmatprep.mubr.bf16.mxu0 0
    %4908 = vmatmul.mubr.bf16.gmra.mxu0 %v4850
    %v4909 = vpop.f32.mrf.mxu0
    %v4910 = vadd.f32 0.0, %v4909
    %v4911 = vpop.f32.mrf.mxu0
    %v4912 = vpop.f32.mrf.mxu0
    %v4913 = vadd.f32 0.0, %v4912
    %v4914 = vpop.f32.mrf.mxu0
    %4915 = vmatprep.mubr.bf16.mxu0 0
    %4916 = vmatmul.mubr.bf16.gmra.mxu0 %v4853
    %v4917 = vpop.f32.mrf.mxu0
    %v4918 = vadd.f32 0.0, %v4917
    %v4919 = vpop.f32.mrf.mxu0
    %v4920 = vpop.f32.mrf.mxu0
    %v4921 = vadd.f32 0.0, %v4920
    %v4922 = vpop.f32.mrf.mxu0
    %4923 = vmatprep.mubr.bf16.mxu0 0
    %4924 = vmatmul.mubr.bf16.gmra.mxu0 %v4856
    %v4925 = vpop.f32.mrf.mxu0
    %v4926 = vadd.f32 0.0, %v4925
    %v4927 = vpop.f32.mrf.mxu0
    %v4928 = vpop.f32.mrf.mxu0
    %v4929 = vadd.f32 0.0, %v4928
    %v4930 = vpop.f32.mrf.mxu0
    %4931 = vmatprep.mubr.bf16.mxu0 0
    %4932 = vmatmul.mubr.bf16.gmra.mxu0 %v4859
    %v4933 = vpop.f32.mrf.mxu0
    %v4934 = vadd.f32 0.0, %v4933
    %v4935 = vpop.f32.mrf.mxu0
    %v4936 = vpop.f32.mrf.mxu0
    %v4937 = vadd.f32 0.0, %v4936
    %v4938 = vpop.f32.mrf.mxu0
    %4939 = vmatprep.mubr.bf16.mxu0 0
    %4940 = vmatmul.mubr.bf16.gmra.mxu0 %v4862
    %v4941 = vpop.f32.mrf.mxu0
    %v4942 = vadd.f32 0.0, %v4941
    %v4943 = vpop.f32.mrf.mxu0
    %v4944 = vpop.f32.mrf.mxu0
    %v4945 = vadd.f32 0.0, %v4944
    %v4946 = vpop.f32.mrf.mxu0
    %4947 = vdwg.mxu0
    %v4948 = vadd.f32 %v4826, %v4902
    %v4949 = vadd.f32 %v4827, %v4905
    %v4950 = vadd.f32 %v4828, %v4910
    %v4951 = vadd.f32 %v4829, %v4913
    %v4952 = vadd.f32 %v4830, %v4918
    %v4953 = vadd.f32 %v4831, %v4921
    %v4954 = vadd.f32 %v4832, %v4926
    %v4955 = vadd.f32 %v4833, %v4929
    %v4956 = vadd.f32 %v4834, %v4934
    %v4957 = vadd.f32 %v4835, %v4937
    %v4958 = vadd.f32 %v4836, %v4942
    %v4959 = vadd.f32 %v4837, %v4945
    %v4960 = vpack.c.bf16 %v4025, %v4022
    %v4961 = vpack.c.bf16 %v4033, %v4030
    %v4962 = vpack.c.bf16 %v4041, %v4038
    %v4963 = vpack.c.bf16 %v4091, %v4088
    %v4964 = vpack.c.bf16 %v4099, %v4096
    %v4965 = vpack.c.bf16 %v4107, %v4104
    %s4966 = scalar_lea.vmem [#allocation10], 20
    %v4967 = vld [vmem:[%s4966] sm:$0xf]
    %v4969 = vsel %vm965, %v4960, 0
    %v4972 = vsel %vm965, %v4961, 0
    %v4975 = vsel %vm965, %v4962, 0
    %v4978 = vsel %vm965, %v4963, 0
    %v4981 = vsel %vm965, %v4964, 0
    %v4984 = vsel %vm965, %v4965, 0
    %v4987 = vsel %vm4407, %v4967, 0
    %4989 = vmatprep.subr.bf16.mxu0 0
    %4990 = vmatpush1.bf16.msra.mxu0 0
    %4991 = vmatprep.subr.bf16.mxu0 0
    %4992 = vmatpush1.bf16.msra.mxu0 0
    %4993 = vmatprep.subr.bf16.mxu0 0
    %4994 = vmatpush1.bf16.msra.mxu0 0
    %4995 = vmatprep.subr.bf16.mxu0 0
    %4996 = vmatpush1.bf16.msra.mxu0 0
    %4997 = vmatprep.subr.bf16.mxu0 0
    %4998 = vmatpush1.bf16.msra.mxu0 0
    %4999 = vmatprep.subr.bf16.mxu0 0
    %5000 = vmatpush1.bf16.msra.mxu0 0
    %5001 = vmatprep.subr.bf16.mxu0 0
    %5002 = vmatpush1.bf16.msra.mxu0 0
    %5003 = vmatprep.subr.bf16.mxu0 0
    %5004 = vmatpush1.bf16.msra.mxu0 %v4987
    %5005 = vmatprep.subr.bf16.mxu0 0
    %5006 = vmatpush2.bf16.msra.mxu0 0
    %5007 = vmatprep.subr.bf16.mxu0 0
    %5008 = vmatpush2.bf16.msra.mxu0 0
    %5009 = vmatprep.subr.bf16.mxu0 0
    %5010 = vmatpush2.bf16.msra.mxu0 0
    %5011 = vmatprep.subr.bf16.mxu0 0
    %5012 = vmatpush2.bf16.msra.mxu0 0
    %5013 = vmatprep.subr.bf16.mxu0 0
    %5014 = vmatpush2.bf16.msra.mxu0 0
    %5015 = vmatprep.subr.bf16.mxu0 0
    %5016 = vmatpush2.bf16.msra.mxu0 0
    %5017 = vmatprep.subr.bf16.mxu0 0
    %5018 = vmatpush2.bf16.msra.mxu0 0
    %5019 = vmatprep.subr.bf16.mxu0 0
    %5020 = vmatpush2.bf16.msra.mxu0 0
    %5021 = vmatprep.mubr.bf16.mxu0 0
    %5022 = vmatmul.mubr.bf16.gmra.mxu0 %v4969
    %v5023 = vpop.f32.mrf.mxu0
    %v5024 = vadd.f32 0.0, %v5023
    %v5025 = vpop.f32.mrf.mxu0
    %v5026 = vpop.f32.mrf.mxu0
    %v5027 = vadd.f32 0.0, %v5026
    %v5028 = vpop.f32.mrf.mxu0
    %5029 = vmatprep.mubr.bf16.mxu0 0
    %5030 = vmatmul.mubr.bf16.gmra.mxu0 %v4972
    %v5031 = vpop.f32.mrf.mxu0
    %v5032 = vadd.f32 0.0, %v5031
    %v5033 = vpop.f32.mrf.mxu0
    %v5034 = vpop.f32.mrf.mxu0
    %v5035 = vadd.f32 0.0, %v5034
    %v5036 = vpop.f32.mrf.mxu0
    %5037 = vmatprep.mubr.bf16.mxu0 0
    %5038 = vmatmul.mubr.bf16.gmra.mxu0 %v4975
    %v5039 = vpop.f32.mrf.mxu0
    %v5040 = vadd.f32 0.0, %v5039
    %v5041 = vpop.f32.mrf.mxu0
    %v5042 = vpop.f32.mrf.mxu0
    %v5043 = vadd.f32 0.0, %v5042
    %v5044 = vpop.f32.mrf.mxu0
    %5045 = vmatprep.mubr.bf16.mxu0 0
    %5046 = vmatmul.mubr.bf16.gmra.mxu0 %v4978
    %v5047 = vpop.f32.mrf.mxu0
    %v5048 = vadd.f32 0.0, %v5047
    %v5049 = vpop.f32.mrf.mxu0
    %v5050 = vpop.f32.mrf.mxu0
    %v5051 = vadd.f32 0.0, %v5050
    %v5052 = vpop.f32.mrf.mxu0
    %5053 = vmatprep.mubr.bf16.mxu0 0
    %5054 = vmatmul.mubr.bf16.gmra.mxu0 %v4981
    %v5055 = vpop.f32.mrf.mxu0
    %v5056 = vadd.f32 0.0, %v5055
    %v5057 = vpop.f32.mrf.mxu0
    %v5058 = vpop.f32.mrf.mxu0
    %v5059 = vadd.f32 0.0, %v5058
    %v5060 = vpop.f32.mrf.mxu0
    %5061 = vmatprep.mubr.bf16.mxu0 0
    %5062 = vmatmul.mubr.bf16.gmra.mxu0 %v4984
    %v5063 = vpop.f32.mrf.mxu0
    %v5064 = vadd.f32 0.0, %v5063
    %v5065 = vpop.f32.mrf.mxu0
    %v5066 = vpop.f32.mrf.mxu0
    %v5067 = vadd.f32 0.0, %v5066
    %v5068 = vpop.f32.mrf.mxu0
    %5069 = vdwg.mxu0
    %v5070 = vadd.f32 %v4948, %v5024
    %v5071 = vadd.f32 %v4949, %v5027
    %v5072 = vadd.f32 %v4950, %v5032
    %v5073 = vadd.f32 %v4951, %v5035
    %v5074 = vadd.f32 %v4952, %v5040
    %v5075 = vadd.f32 %v4953, %v5043
    %v5076 = vadd.f32 %v4954, %v5048
    %v5077 = vadd.f32 %v4955, %v5051
    %v5078 = vadd.f32 %v4956, %v5056
    %v5079 = vadd.f32 %v4957, %v5059
    %v5080 = vadd.f32 %v4958, %v5064
    %v5081 = vadd.f32 %v4959, %v5067
    %v5082 = vpack.c.bf16 %v4157, %v4154
    %v5083 = vpack.c.bf16 %v4165, %v4162
    %v5084 = vpack.c.bf16 %v4173, %v4170
    %v5085 = vpack.c.bf16 %v4223, %v4220
    %v5086 = vpack.c.bf16 %v4231, %v4228
    %v5087 = vpack.c.bf16 %v4239, %v4236
    %s5088 = scalar_lea.vmem [#allocation10], 24
    %v5089 = vld [vmem:[%s5088] sm:$0xf]
    %v5091 = vsel %vm965, %v5082, 0
    %v5094 = vsel %vm965, %v5083, 0
    %v5097 = vsel %vm965, %v5084, 0
    %v5100 = vsel %vm965, %v5085, 0
    %v5103 = vsel %vm965, %v5086, 0
    %v5106 = vsel %vm965, %v5087, 0
    %v5109 = vsel %vm4407, %v5089, 0
    %5111 = vmatprep.subr.bf16.mxu0 0
    %5112 = vmatpush1.bf16.msra.mxu0 0
    %5113 = vmatprep.subr.bf16.mxu0 0
    %5114 = vmatpush1.bf16.msra.mxu0 0
    %5115 = vmatprep.subr.bf16.mxu0 0
    %5116 = vmatpush1.bf16.msra.mxu0 0
    %5117 = vmatprep.subr.bf16.mxu0 0
    %5118 = vmatpush1.bf16.msra.mxu0 0
    %5119 = vmatprep.subr.bf16.mxu0 0
    %5120 = vmatpush1.bf16.msra.mxu0 0
    %5121 = vmatprep.subr.bf16.mxu0 0
    %5122 = vmatpush1.bf16.msra.mxu0 0
    %5123 = vmatprep.subr.bf16.mxu0 0
    %5124 = vmatpush1.bf16.msra.mxu0 0
    %5125 = vmatprep.subr.bf16.mxu0 0
    %5126 = vmatpush1.bf16.msra.mxu0 %v5109
    %5127 = vmatprep.subr.bf16.mxu0 0
    %5128 = vmatpush2.bf16.msra.mxu0 0
    %5129 = vmatprep.subr.bf16.mxu0 0
    %5130 = vmatpush2.bf16.msra.mxu0 0
    %5131 = vmatprep.subr.bf16.mxu0 0
    %5132 = vmatpush2.bf16.msra.mxu0 0
    %5133 = vmatprep.subr.bf16.mxu0 0
    %5134 = vmatpush2.bf16.msra.mxu0 0
    %5135 = vmatprep.subr.bf16.mxu0 0
    %5136 = vmatpush2.bf16.msra.mxu0 0
    %5137 = vmatprep.subr.bf16.mxu0 0
    %5138 = vmatpush2.bf16.msra.mxu0 0
    %5139 = vmatprep.subr.bf16.mxu0 0
    %5140 = vmatpush2.bf16.msra.mxu0 0
    %5141 = vmatprep.subr.bf16.mxu0 0
    %5142 = vmatpush2.bf16.msra.mxu0 0
    %5143 = vmatprep.mubr.bf16.mxu0 0
    %5144 = vmatmul.mubr.bf16.gmra.mxu0 %v5091
    %v5145 = vpop.f32.mrf.mxu0
    %v5146 = vadd.f32 0.0, %v5145
    %v5147 = vpop.f32.mrf.mxu0
    %v5148 = vpop.f32.mrf.mxu0
    %v5149 = vadd.f32 0.0, %v5148
    %v5150 = vpop.f32.mrf.mxu0
    %5151 = vmatprep.mubr.bf16.mxu0 0
    %5152 = vmatmul.mubr.bf16.gmra.mxu0 %v5094
    %v5153 = vpop.f32.mrf.mxu0
    %v5154 = vadd.f32 0.0, %v5153
    %v5155 = vpop.f32.mrf.mxu0
    %v5156 = vpop.f32.mrf.mxu0
    %v5157 = vadd.f32 0.0, %v5156
    %v5158 = vpop.f32.mrf.mxu0
    %5159 = vmatprep.mubr.bf16.mxu0 0
    %5160 = vmatmul.mubr.bf16.gmra.mxu0 %v5097
    %v5161 = vpop.f32.mrf.mxu0
    %v5162 = vadd.f32 0.0, %v5161
    %v5163 = vpop.f32.mrf.mxu0
    %v5164 = vpop.f32.mrf.mxu0
    %v5165 = vadd.f32 0.0, %v5164
    %v5166 = vpop.f32.mrf.mxu0
    %5167 = vmatprep.mubr.bf16.mxu0 0
    %5168 = vmatmul.mubr.bf16.gmra.mxu0 %v5100
    %v5169 = vpop.f32.mrf.mxu0
    %v5170 = vadd.f32 0.0, %v5169
    %v5171 = vpop.f32.mrf.mxu0
    %v5172 = vpop.f32.mrf.mxu0
    %v5173 = vadd.f32 0.0, %v5172
    %v5174 = vpop.f32.mrf.mxu0
    %5175 = vmatprep.mubr.bf16.mxu0 0
    %5176 = vmatmul.mubr.bf16.gmra.mxu0 %v5103
    %v5177 = vpop.f32.mrf.mxu0
    %v5178 = vadd.f32 0.0, %v5177
    %v5179 = vpop.f32.mrf.mxu0
    %v5180 = vpop.f32.mrf.mxu0
    %v5181 = vadd.f32 0.0, %v5180
    %v5182 = vpop.f32.mrf.mxu0
    %5183 = vmatprep.mubr.bf16.mxu0 0
    %5184 = vmatmul.mubr.bf16.gmra.mxu0 %v5106
    %v5185 = vpop.f32.mrf.mxu0
    %v5186 = vadd.f32 0.0, %v5185
    %v5187 = vpop.f32.mrf.mxu0
    %v5188 = vpop.f32.mrf.mxu0
    %v5189 = vadd.f32 0.0, %v5188
    %v5190 = vpop.f32.mrf.mxu0
    %5191 = vdwg.mxu0
    %v5192 = vadd.f32 %v5070, %v5146
    %v5193 = vadd.f32 %v5071, %v5149
    %v5194 = vadd.f32 %v5072, %v5154
    %v5195 = vadd.f32 %v5073, %v5157
    %v5196 = vadd.f32 %v5074, %v5162
    %v5197 = vadd.f32 %v5075, %v5165
    %v5198 = vadd.f32 %v5076, %v5170
    %v5199 = vadd.f32 %v5077, %v5173
    %v5200 = vadd.f32 %v5078, %v5178
    %v5201 = vadd.f32 %v5079, %v5181
    %v5202 = vadd.f32 %v5080, %v5186
    %v5203 = vadd.f32 %v5081, %v5189
    %v5204 = vpack.c.bf16 %v4289, %v4286
    %v5205 = vpack.c.bf16 %v4297, %v4294
    %v5206 = vpack.c.bf16 %v4305, %v4302
    %v5207 = vpack.c.bf16 %v4355, %v4352
    %v5208 = vpack.c.bf16 %v4363, %v4360
    %v5209 = vpack.c.bf16 %v4371, %v4368
    %s5210 = scalar_lea.vmem [#allocation10], 28
    %v5211 = vld [vmem:[%s5210] sm:$0xf]
    %v5213 = vsel %vm965, %v5204, 0
    %v5216 = vsel %vm965, %v5205, 0
    %v5219 = vsel %vm965, %v5206, 0
    %v5222 = vsel %vm965, %v5207, 0
    %v5225 = vsel %vm965, %v5208, 0
    %v5228 = vsel %vm965, %v5209, 0
    %v5231 = vsel %vm4407, %v5211, 0
    %5233 = vmatprep.subr.bf16.mxu0 0
    %5234 = vmatpush1.bf16.msra.mxu0 0
    %5235 = vmatprep.subr.bf16.mxu0 0
    %5236 = vmatpush1.bf16.msra.mxu0 0
    %5237 = vmatprep.subr.bf16.mxu0 0
    %5238 = vmatpush1.bf16.msra.mxu0 0
    %5239 = vmatprep.subr.bf16.mxu0 0
    %5240 = vmatpush1.bf16.msra.mxu0 0
    %5241 = vmatprep.subr.bf16.mxu0 0
    %5242 = vmatpush1.bf16.msra.mxu0 0
    %5243 = vmatprep.subr.bf16.mxu0 0
    %5244 = vmatpush1.bf16.msra.mxu0 0
    %5245 = vmatprep.subr.bf16.mxu0 0
    %5246 = vmatpush1.bf16.msra.mxu0 0
    %5247 = vmatprep.subr.bf16.mxu0 0
    %5248 = vmatpush1.bf16.msra.mxu0 %v5231
    %5249 = vmatprep.subr.bf16.mxu0 0
    %5250 = vmatpush2.bf16.msra.mxu0 0
    %5251 = vmatprep.subr.bf16.mxu0 0
    %5252 = vmatpush2.bf16.msra.mxu0 0
    %5253 = vmatprep.subr.bf16.mxu0 0
    %5254 = vmatpush2.bf16.msra.mxu0 0
    %5255 = vmatprep.subr.bf16.mxu0 0
    %5256 = vmatpush2.bf16.msra.mxu0 0
    %5257 = vmatprep.subr.bf16.mxu0 0
    %5258 = vmatpush2.bf16.msra.mxu0 0
    %5259 = vmatprep.subr.bf16.mxu0 0
    %5260 = vmatpush2.bf16.msra.mxu0 0
    %5261 = vmatprep.subr.bf16.mxu0 0
    %5262 = vmatpush2.bf16.msra.mxu0 0
    %5263 = vmatprep.subr.bf16.mxu0 0
    %5264 = vmatpush2.bf16.msra.mxu0 0
    %5265 = vmatprep.mubr.bf16.mxu0 0
    %5266 = vmatmul.mubr.bf16.gmra.mxu0 %v5213
    %v5267 = vpop.f32.mrf.mxu0
    %v5268 = vadd.f32 0.0, %v5267
    %v5269 = vpop.f32.mrf.mxu0
    %v5270 = vpop.f32.mrf.mxu0
    %v5271 = vadd.f32 0.0, %v5270
    %v5272 = vpop.f32.mrf.mxu0
    %5273 = vmatprep.mubr.bf16.mxu0 0
    %5274 = vmatmul.mubr.bf16.gmra.mxu0 %v5216
    %v5275 = vpop.f32.mrf.mxu0
    %v5276 = vadd.f32 0.0, %v5275
    %v5277 = vpop.f32.mrf.mxu0
    %v5278 = vpop.f32.mrf.mxu0
    %v5279 = vadd.f32 0.0, %v5278
    %v5280 = vpop.f32.mrf.mxu0
    %5281 = vmatprep.mubr.bf16.mxu0 0
    %5282 = vmatmul.mubr.bf16.gmra.mxu0 %v5219
    %v5283 = vpop.f32.mrf.mxu0
    %v5284 = vadd.f32 0.0, %v5283
    %v5285 = vpop.f32.mrf.mxu0
    %v5286 = vpop.f32.mrf.mxu0
    %v5287 = vadd.f32 0.0, %v5286
    %v5288 = vpop.f32.mrf.mxu0
    %5289 = vmatprep.mubr.bf16.mxu0 0
    %5290 = vmatmul.mubr.bf16.gmra.mxu0 %v5222
    %v5291 = vpop.f32.mrf.mxu0
    %v5292 = vadd.f32 0.0, %v5291
    %v5293 = vpop.f32.mrf.mxu0
    %v5294 = vpop.f32.mrf.mxu0
    %v5295 = vadd.f32 0.0, %v5294
    %v5296 = vpop.f32.mrf.mxu0
    %5297 = vmatprep.mubr.bf16.mxu0 0
    %5298 = vmatmul.mubr.bf16.gmra.mxu0 %v5225
    %v5299 = vpop.f32.mrf.mxu0
    %v5300 = vadd.f32 0.0, %v5299
    %v5301 = vpop.f32.mrf.mxu0
    %v5302 = vpop.f32.mrf.mxu0
    %v5303 = vadd.f32 0.0, %v5302
    %v5304 = vpop.f32.mrf.mxu0
    %5305 = vmatprep.mubr.bf16.mxu0 0
    %5306 = vmatmul.mubr.bf16.gmra.mxu0 %v5228
    %v5307 = vpop.f32.mrf.mxu0
    %v5308 = vadd.f32 0.0, %v5307
    %v5309 = vpop.f32.mrf.mxu0
    %v5310 = vpop.f32.mrf.mxu0
    %v5311 = vadd.f32 0.0, %v5310
    %v5312 = vpop.f32.mrf.mxu0
    %5313 = vdwg.mxu0
    %v5314 = vadd.f32 %v5192, %v5268
    %v5315 = vadd.f32 %v5193, %v5271
    %v5316 = vadd.f32 %v5194, %v5276
    %v5317 = vadd.f32 %v5195, %v5279
    %v5318 = vadd.f32 %v5196, %v5284
    %v5319 = vadd.f32 %v5197, %v5287
    %v5320 = vadd.f32 %v5198, %v5292
    %v5321 = vadd.f32 %v5199, %v5295
    %v5322 = vadd.f32 %v5200, %v5300
    %v5323 = vadd.f32 %v5201, %v5303
    %v5324 = vadd.f32 %v5202, %v5308
    %v5325 = vadd.f32 %v5203, %v5311
    %v5326 = vld [vmem:[%s5] sm:$0x1]
    %v5328 = vlaneseq
    %v5329 = vshrl.u32 %v5328, 7
    %v5330 = vsub.s32 0, %v5329
    %v5331 = vrot.slane %v5326, %v5330
    %v5333 = vadd.f32 %v5314, %v5331
    %v5334 = vadd.f32 %v5315, %v5331
    %v5335 = vadd.f32 %v5316, %v5331
    %v5336 = vadd.f32 %v5317, %v5331
    %v5337 = vadd.f32 %v5318, %v5331
    %v5338 = vadd.f32 %v5319, %v5331
    %v5339 = vadd.f32 %v5320, %v5331
    %v5340 = vadd.f32 %v5321, %v5331
    %v5341 = vadd.f32 %v5322, %v5331
    %v5342 = vadd.f32 %v5323, %v5331
    %v5343 = vadd.f32 %v5324, %v5331
    %v5344 = vadd.f32 %v5325, %v5331
    %5345 = vst.msk [vmem:[#allocation11] sm:$0xff] %vm171, %v5333
    %5346 = vst.msk [vmem:[#allocation11 + $0x8] sm:$0xff] %vm171, %v5334
    %5347 = vst.msk [vmem:[#allocation11 + $0x10] sm:$0xff] %vm171, %v5335
    %5348 = vst.msk [vmem:[#allocation11 + $0x18] sm:$0xff] %vm171, %v5336
    %5349 = vst.msk [vmem:[#allocation11 + $0x20] sm:$0xff] %vm171, %v5337
    %5350 = vst.msk [vmem:[#allocation11 + $0x28] sm:$0xff] %vm171, %v5338
    %5351 = vst.msk [vmem:[#allocation11 + $0x30] sm:$0xff] %vm171, %v5339
    %5352 = vst.msk [vmem:[#allocation11 + $0x38] sm:$0xff] %vm171, %v5340
    %5353 = vst.msk [vmem:[#allocation11 + $0x40] sm:$0xff] %vm171, %v5341
    %5354 = vst.msk [vmem:[#allocation11 + $0x48] sm:$0xff] %vm171, %v5342
    %5355 = vst.msk [vmem:[#allocation11 + $0x50] sm:$0xff] %vm171, %v5343
    %5356 = vst.msk [vmem:[#allocation11 + $0x58] sm:$0xff] %vm171, %v5344
    // Predicated region
    $region46: #{tpu_custom_call.1} parent=1 // pred_check
      _
    $region47: #{tpu_custom_call.1} parent=1 // pred_check_branch
      %5358 = sbr.rel (0) target = $region49
    $region48: #{tpu_custom_call.1} parent=1 // pred_region
      %s5360 = ssub.s32 1536, 1536
      %5361 = vsyncadd [#allocation4], %s5360
      %s5362 = sshll.u32 [#allocation11], 4
      %s5363 = int_to_ptr.vmem [resolvable:$true] %s5362
      %5368 = dma.vmem_to_hbm [thread:$0]  %s5363, 1536, %s6, [#allocation4], 128, 128, 8
    $region49: #{tpu_custom_call.1} parent=1 // pred_fallthru
      _
    // Predicated region
    $region50: #{tpu_custom_call.1} parent=1 // pred_check
      _
    $region51: #{tpu_custom_call.1} parent=1 // pred_check_branch
      %5370 = sbr.rel (0) target = $region53
    $region52: #{tpu_custom_call.1} parent=1 // pred_region
      %5371 = dma.done [#allocation4], 1536
    $region53: #{tpu_custom_call.1} parent=1 // pred_fallthru
      _
    %5372 = vsyncpa [#allocation3], 1
    %5373 = vsyncpa [#allocation6], 1
    %5374 = vsyncpa [#allocation9], 1
    %5375 = vsyncpa [#allocation4], 1

</llo_original>
